<compile_context>
chip_gen: v7x
topology: tpu7x:2x2x1
jax: 0.10.0
libtpu: 0.0.40
codegen_flags: <defaults>
</compile_context>

<pallas_src>
import functools

import jax
import jax.numpy as jnp
import numpy as np
from jax.experimental import pallas as pl
from jax.experimental.pallas import tpu as pltpu


# ----------------------------------------------------------------------------
# Per-generation knobs
# ----------------------------------------------------------------------------
def _device_kind():
    try:
        return jax.devices()[0].device_kind.lower()
    except Exception:  # defensive: unknown backend
        return ""


def _vmem_limit_bytes(kind):
    if "v2" in kind or "v3" in kind:
        return 12 * 1024 * 1024
    if any(v in kind for v in ("v4", "v5", "v6")):   # 128 MiB physical VMEM
        return 100 * 1024 * 1024
    return 48 * 1024 * 1024                          # v7x-class: 64 MiB physical


def _images_per_step(B, N, kind):
    """Pack images per grid step so matmuls see >=128 (v5e) / >=256 rows."""
    target = 128 if "v5" in kind else 256
    ips = max(1, min(B, target // max(N, 1)))
    while B % ips:
        ips -= 1
    # On possibly multi-TensorCore parts keep at least two parallel grid steps.
    if (not any(v in kind for v in ("v2", "v3", "v4", "v5", "v6"))
            and B // ips == 1 and ips > 1 and ips % 2 == 0):
        ips //= 2
    return ips


# ----------------------------------------------------------------------------
# Fused C2PSA forward (one pallas_call)
# ----------------------------------------------------------------------------
def c2psa_pallas(xf, params, *, B, H, W, c, nh, kd, hd):
    """xf: (B*N, c1) channels-last pixels (f32). Returns (B*N, c2f_cv2out)."""
    N = H * W
    c1 = xf.shape[-1]
    f32, b16 = jnp.float32, jnp.bfloat16
    cv1_w, cv1_b = params["cv1"]          # (c1, 2c), (2c,)
    cv2_w, cv2_b = params["cv2"]          # (2c, cout), (cout,)
    blocks = params["blocks"]
    n_blocks = len(blocks)
    cout = cv2_w.shape[1]
    gsz = 2 * kd + hd
    scale = float(kd) ** -0.5

    kind = _device_kind()
    ips = _images_per_step(B, N, kind)
    rows = ips * N

    # 3x3 depthwise-conv boundary masks (numpy -> compile-time constants).
    ys = np.repeat(np.arange(H), W)
    xs = np.tile(np.arange(W), H)
    masks = np.empty((9, N), np.float32)
    for t in range(9):
        oy, ox = t // 3 - 1, t % 3 - 1
        masks[t] = ((ys + oy >= 0) & (ys + oy < H)
                    & (xs + ox >= 0) & (xs + ox < W)).astype(np.float32)
    masks = jnp.asarray(masks)

    def w16(w):
        return w.astype(b16)

    def b_row(b):
        return b.reshape(1, -1).astype(f32)

    # cv1 / cv2 split at trace time -> no kernel-side lane slicing needed.
    inputs = [xf,
              w16(cv1_w[:, :c]), b_row(cv1_b[:c]),
              w16(cv1_w[:, c:]), b_row(cv1_b[c:]),
              w16(cv2_w[:c, :]), w16(cv2_w[c:, :]), b_row(cv2_b)]

    for blk in blocks:
        wqkv, bqkv = blk["qkv"]
        wproj, bproj = blk["proj"]
        wpe, bpe = blk["pe"]               # (3, 3, c), (c,)
        wf1, bf1 = blk["ffn1"]
        wf2, bf2 = blk["ffn2"]
        # mask * depthwise-weight folded table: one FMA per tap in the kernel.
        table = masks[:, :, None] * wpe.reshape(9, 1, c)          # (9, N, c)
        # pe bias feeds proj linearly -> fold it into the proj bias.
        bproj_eff = bproj + bpe @ wproj
        for g in range(nh):
            off = g * gsz
            inputs += [
                w16(wqkv[:, off:off + kd] * scale),               # scale folded
                b_row(bqkv[off:off + kd] * scale),
                w16(wqkv[:, off + kd:off + 2 * kd]),
                b_row(bqkv[off + kd:off + 2 * kd]),
                w16(wqkv[:, off + 2 * kd:off + gsz]),
                b_row(bqkv[off + 2 * kd:off + gsz]),
                w16(wproj[g * hd:(g + 1) * hd, :]),               # per-head rows
                table[:, :, g * hd:(g + 1) * hd].astype(f32),
            ]
        inputs += [b_row(bproj_eff), w16(wf1), b_row(bf1), w16(wf2), b_row(bf2)]

    per_head = 8
    per_blk = per_head * nh + 5

    def _roll_rows(x, sh):
        # result[n] = x[(n + sh) % N]; wrapped rows are nulled by the folded table.
        return x if sh == 0 else jnp.concatenate([x[sh:, :], x[:sh, :]], axis=0)

    def kernel(x_ref, wa_ref, ba_ref, wb_ref, bb_ref,
               w2a_ref, w2b_ref, b2_ref, *rest):
        blk_refs, o_ref = rest[:-1], rest[-1]

        # ---- cv1: two lane-aligned 1x1 convs (+folded BN) + SiLU -------------
        xb = x_ref[...].astype(b16)
        ya = jnp.dot(xb, wa_ref[...], preferred_element_type=f32) + ba_ref[...]
        a16 = (ya * jax.nn.sigmoid(ya)).astype(b16)        # held for cv2
        yb = jnp.dot(xb, wb_ref[...], preferred_element_type=f32) + bb_ref[...]
        bcur = yb * jax.nn.sigmoid(yb)                     # (rows, c) f32 residual

        # ---- n x PSABlock -----------------------------------------------------
        for bi in range(n_blocks):
            base = per_blk * bi
            bproj_ref, wf1_ref, bf1_ref, wf2_ref, bf2_ref = (
                blk_refs[base + per_head * nh:base + per_head * nh + 5])

            b16_act = bcur.astype(b16)
            proj_acc = jnp.zeros((rows, c), f32) + bproj_ref[...]
            for g in range(nh):
                (wq_ref, bq_ref, wk_ref, bk_ref, wv_ref, bv_ref,
                 wp_ref, tbl_ref) = blk_refs[base + per_head * g:
                                             base + per_head * g + per_head]
                q = jnp.dot(b16_act, wq_ref[...],
                            preferred_element_type=f32) + bq_ref[...]
                k = jnp.dot(b16_act, wk_ref[...],
                            preferred_element_type=f32) + bk_ref[...]
                v = jnp.dot(b16_act, wv_ref[...],
                            preferred_element_type=f32) + bv_ref[...]

                parts = []
                for j in range(ips):                       # attention per image
                    r0 = j * N
                    qj = q[r0:r0 + N, :].astype(b16)
                    kj = k[r0:r0 + N, :].astype(b16)
                    vj = v[r0:r0 + N, :]                   # f32, reused by pe
                    att = jax.lax.dot_general(
                        qj, kj, (((1,), (1,)), ((), ())),
                        preferred_element_type=f32)        # scale folded into q
                    att = att - jnp.max(att, axis=-1, keepdims=True)
                    p = jnp.exp(att)
                    p = p * pl.reciprocal(jnp.sum(p, axis=-1, keepdims=True),
                                          approx=True)
                    xatt = jnp.dot(p.astype(b16), vj.astype(b16),
                                   preferred_element_type=f32)
                    # depthwise 3x3 pe: 9 static row-rotations + FMAs
                    for t in range(9):
                        oy, ox = t // 3 - 1, t % 3 - 1
                        xatt = xatt + (_roll_rows(vj, (oy * W + ox) % N)
                                       * tbl_ref[t])
                    parts.append(xatt)
                xatt_all = parts[0] if ips == 1 else jnp.concatenate(parts, 0)
                proj_acc = proj_acc + jnp.dot(xatt_all.astype(b16), wp_ref[...],
                                              preferred_element_type=f32)
            bcur = bcur + proj_acc                          # attention residual

            b16_act = bcur.astype(b16)
            f = jnp.dot(b16_act, wf1_ref[...],
                        preferred_element_type=f32) + bf1_ref[...]
            f = f * jax.nn.sigmoid(f)                       # SiLU
            bcur = bcur + (jnp.dot(f.astype(b16), wf2_ref[...],
                                   preferred_element_type=f32) + bf2_ref[...])

        # ---- cv2 on [a | b]: concat folded into two matmuls, lane-dense out ---
        z = (jnp.dot(a16, w2a_ref[...], preferred_element_type=f32)
             + jnp.dot(bcur.astype(b16), w2b_ref[...], preferred_element_type=f32)
             + b2_ref[...])
        o_ref[...] = (z * jax.nn.sigmoid(z)).astype(o_ref.dtype)

    def _const_spec(arr):
        zeros = (0,) * arr.ndim
        # TODO(synk): pipeline_mode=pl.Buffered(1) would single-buffer these
        # constant weight blocks (matters at production channel counts).
        return pl.BlockSpec(arr.shape, lambda i, _z=zeros: _z)

    in_specs = ([pl.BlockSpec((rows, c1), lambda i: (i, 0))]
                + [_const_spec(arr) for arr in inputs[1:]])

    return pl.pallas_call(
        kernel,
        out_shape=jax.ShapeDtypeStruct((B * N, cout), xf.dtype),
        grid=(B // ips,),
        in_specs=in_specs,
        out_specs=pl.BlockSpec((rows, cout), lambda i: (i, 0)),
        compiler_params=pltpu.CompilerParams(
            dimension_semantics=("parallel",),
            vmem_limit_bytes=_vmem_limit_bytes(kind),
        ),
    )(*inputs)


def c2psa_forward_pallas(x, params, *, c, nh, kd, hd):
    B, c1, H, W = x.shape
    N = H * W
    xf = jnp.transpose(x, (0, 2, 3, 1)).reshape(B * N, c1)     # NCHW -> (B*N, C)
    out = c2psa_pallas(xf, params, B=B, H=H, W=W, c=c, nh=nh, kd=kd, hd=hd)
    cout = out.shape[-1]
    return jnp.transpose(out.reshape(B, H, W, cout), (0, 3, 1, 2))   # -> NCHW


# ----------------------------------------------------------------------------
# Pure-JAX reference (same math, independent f32 implementation)
# ----------------------------------------------------------------------------
def c2psa_forward_ref(x, params, *, c, nh, kd, hd):
    B, c1, H, W = x.shape
    N = H * W
    scale = float(kd) ** -0.5

    def conv(t, wb, act):
        y = t @ wb[0] + wb[1]
        return y * jax.nn.sigmoid(y) if act else y

    xf = jnp.transpose(x, (0, 2, 3, 1)).reshape(B, N, c1)
    y = conv(xf, params["cv1"], True)
    a, bf = y[..., :c], y[..., c:]
    for blk in params["blocks"]:
        qkv = conv(bf, blk["qkv"], False).reshape(B, N, nh, 2 * kd + hd)
        q, k, v = qkv[..., :kd], qkv[..., kd:2 * kd], qkv[..., 2 * kd:]
        att = jax.nn.softmax(jnp.einsum("bnhk,bmhk->bhnm", q, k) * scale, -1)
        att_sp = jnp.einsum("bhnm,bmhd->bnhd", att, v).reshape(B, N, c)
        v_sp = v.reshape(B, H, W, c)
        vpad = jnp.pad(v_sp, ((0, 0), (1, 1), (1, 1), (0, 0)))
        wpe, bpe = blk["pe"]
        pe = jnp.zeros((B, H, W, c), jnp.float32) + bpe
        for dy in range(3):
            for dx in range(3):
                pe = pe + vpad[:, dy:dy + H, dx:dx + W, :] * wpe[dy, dx, :]
        bf = bf + conv(att_sp + pe.reshape(B, N, c), blk["proj"], False)
        f = conv(bf, blk["ffn1"], True)
        bf = bf + conv(f, blk["ffn2"], False)
    out = conv(jnp.concatenate([a, bf], axis=-1), params["cv2"], True)
    return jnp.transpose(out.reshape(B, H, W, -1), (0, 3, 1, 2))


# ----------------------------------------------------------------------------
# Deterministic parameter init (Conv weight + eval-mode BatchNorm, folded)
# ----------------------------------------------------------------------------
def _bn_stats(keys, cout):
    gamma = 1.0 + 0.1 * jax.random.normal(keys[0], (cout,), jnp.float32)
    beta = 0.05 * jax.random.normal(keys[1], (cout,), jnp.float32)
    mean = 0.05 * jax.random.normal(keys[2], (cout,), jnp.float32)
    var = 0.5 + jax.random.uniform(keys[3], (cout,), jnp.float32)
    return gamma, beta, mean, var


def init_conv_bn(key, cout, cin, eps=1e-3):
    ks = jax.random.split(key, 5)
    w = 0.05 * jax.random.normal(ks[0], (cout, cin), jnp.float32)
    gamma, beta, mean, var = _bn_stats(ks[1:], cout)
    scale = gamma / jnp.sqrt(var + eps)
    w_eff = (w * scale[:, None]).T                 # (cin, cout), pre-transposed
    b_eff = beta - mean * scale
    return w_eff, b_eff


def init_dwconv_bn(key, c, eps=1e-3):
    ks = jax.random.split(key, 5)
    w = 0.1 * jax.random.normal(ks[0], (c, 3, 3), jnp.float32)
    gamma, beta, mean, var = _bn_stats(ks[1:], c)
    scale = gamma / jnp.sqrt(var + eps)
    w_eff = jnp.transpose(w * scale[:, None, None], (1, 2, 0))   # (3, 3, c)
    b_eff = beta - mean * scale
    return w_eff, b_eff


def init_params(key, c1, c, c2f_cv2out, ffn_cv1outs, nh, kd):
    keys = jax.random.split(key, 2 + len(ffn_cv1outs))
    hdim = c + 2 * nh * kd
    params = {
        "cv1": init_conv_bn(keys[0], 2 * c, c1),
        "cv2": init_conv_bn(keys[1], c2f_cv2out, 2 * c),
        "blocks": [],
    }
    for i, f in enumerate(ffn_cv1outs):
        bk = jax.random.split(keys[2 + i], 5)
        params["blocks"].append(
            {
                "qkv": init_conv_bn(bk[0], hdim, c),
                "proj": init_conv_bn(bk[1], c, c),
                "pe": init_dwconv_bn(bk[2], c),
                "ffn1": init_conv_bn(bk[3], f, c),
                "ffn2": init_conv_bn(bk[4], c, f),
            }
        )
    return params


# ----------------------------------------------------------------------------
if __name__ == "__main__":
    # C2PSAPruned(c1=128, c2=128, ffn_cv1outs=[96], c2f_cv2out=128, n=1, e=0.5)
    # (c must be a multiple of 64 because num_heads = c // 64 in the module.)
    B, c1, c2, H, W = 2, 128, 128, 8, 8
    e = 0.5
    ffn_cv1outs = [96]
    c2f_cv2out = 128

    c = int(c2 * e)          # 64 hidden channels
    nh = c // 64             # num_heads = 1
    hd = c // nh             # head_dim = 64
    kd = int(hd * 0.5)       # key_dim  = 32

    x = jax.random.normal(jax.random.PRNGKey(0), (B, c1, H, W), jnp.float32)
    params = init_params(jax.random.PRNGKey(1), c1, c, c2f_cv2out,
                         ffn_cv1outs, nh, kd)

    run_pallas = jax.jit(functools.partial(c2psa_forward_pallas,
                                           c=c, nh=nh, kd=kd, hd=hd))
    run_ref = jax.jit(functools.partial(c2psa_forward_ref,
                                        c=c, nh=nh, kd=kd, hd=hd))

    out = jax.block_until_ready(run_pallas(x, params))
    ref = jax.block_until_ready(run_ref(x, params))

    assert out.shape == (B, c2f_cv2out, H, W), out.shape
    max_err = float(jnp.max(jnp.abs(out - ref)))
    # bf16 MXU operands vs. a pure-f32 reference -> slightly looser tolerance.
    assert jnp.allclose(out, ref, atol=3e-2, rtol=3e-2), max_err
    print("KERNEL_OK")
</pallas_src>

<mosaic_0001>
module attributes {stable_mosaic.version = 11 : i64} {
  func.func @kernel(%arg0: i32, %arg1: memref<64x128xf32, #tpu.memory_space<vmem>>, %arg2: memref<128x64xbf16, #tpu.memory_space<vmem>>, %arg3: memref<1x64xf32, #tpu.memory_space<vmem>>, %arg4: memref<128x64xbf16, #tpu.memory_space<vmem>>, %arg5: memref<1x64xf32, #tpu.memory_space<vmem>>, %arg6: memref<64x128xbf16, #tpu.memory_space<vmem>>, %arg7: memref<64x128xbf16, #tpu.memory_space<vmem>>, %arg8: memref<1x128xf32, #tpu.memory_space<vmem>>, %arg9: memref<64x32xbf16, #tpu.memory_space<vmem>>, %arg10: memref<1x32xf32, #tpu.memory_space<vmem>>, %arg11: memref<64x32xbf16, #tpu.memory_space<vmem>>, %arg12: memref<1x32xf32, #tpu.memory_space<vmem>>, %arg13: memref<64x64xbf16, #tpu.memory_space<vmem>>, %arg14: memref<1x64xf32, #tpu.memory_space<vmem>>, %arg15: memref<64x64xbf16, #tpu.memory_space<vmem>>, %arg16: memref<9x64x64xf32, #tpu.memory_space<vmem>>, %arg17: memref<1x64xf32, #tpu.memory_space<vmem>>, %arg18: memref<64x96xbf16, #tpu.memory_space<vmem>>, %arg19: memref<1x96xf32, #tpu.memory_space<vmem>>, %arg20: memref<96x64xbf16, #tpu.memory_space<vmem>>, %arg21: memref<1x64xf32, #tpu.memory_space<vmem>>, %arg22: memref<64x128xf32, #tpu.memory_space<vmem>>) attributes {dimension_semantics = [#tpu.dimension_semantics<parallel>], iteration_bounds = array<i64: 2>, scalar_prefetch = 0 : i64, scratch_operands = 0 : i64, tpu.core_type = #tpu.core_type<tc>, window_params = [{transform_indices = @transform_0, window_bounds = array<i64: 64, 128>}, {pipeline_mode = #tpu.pipeline_mode<synchronous>, transform_indices = @transform_1, window_bounds = array<i64: 128, 64>}, {pipeline_mode = #tpu.pipeline_mode<synchronous>, transform_indices = @transform_2, window_bounds = array<i64: 1, 64>}, {pipeline_mode = #tpu.pipeline_mode<synchronous>, transform_indices = @transform_3, window_bounds = array<i64: 128, 64>}, {pipeline_mode = #tpu.pipeline_mode<synchronous>, transform_indices = @transform_4, window_bounds = array<i64: 1, 64>}, {pipeline_mode = #tpu.pipeline_mode<synchronous>, transform_indices = @transform_5, window_bounds = array<i64: 64, 128>}, {pipeline_mode = #tpu.pipeline_mode<synchronous>, transform_indices = @transform_6, window_bounds = array<i64: 64, 128>}, {pipeline_mode = #tpu.pipeline_mode<synchronous>, transform_indices = @transform_7, window_bounds = array<i64: 1, 128>}, {pipeline_mode = #tpu.pipeline_mode<synchronous>, transform_indices = @transform_8, window_bounds = array<i64: 64, 32>}, {pipeline_mode = #tpu.pipeline_mode<synchronous>, transform_indices = @transform_9, window_bounds = array<i64: 1, 32>}, {pipeline_mode = #tpu.pipeline_mode<synchronous>, transform_indices = @transform_10, window_bounds = array<i64: 64, 32>}, {pipeline_mode = #tpu.pipeline_mode<synchronous>, transform_indices = @transform_11, window_bounds = array<i64: 1, 32>}, {pipeline_mode = #tpu.pipeline_mode<synchronous>, transform_indices = @transform_12, window_bounds = array<i64: 64, 64>}, {pipeline_mode = #tpu.pipeline_mode<synchronous>, transform_indices = @transform_13, window_bounds = array<i64: 1, 64>}, {pipeline_mode = #tpu.pipeline_mode<synchronous>, transform_indices = @transform_14, window_bounds = array<i64: 64, 64>}, {pipeline_mode = #tpu.pipeline_mode<synchronous>, transform_indices = @transform_15, window_bounds = array<i64: 9, 64, 64>}, {pipeline_mode = #tpu.pipeline_mode<synchronous>, transform_indices = @transform_16, window_bounds = array<i64: 1, 64>}, {pipeline_mode = #tpu.pipeline_mode<synchronous>, transform_indices = @transform_17, window_bounds = array<i64: 64, 96>}, {pipeline_mode = #tpu.pipeline_mode<synchronous>, transform_indices = @transform_18, window_bounds = array<i64: 1, 96>}, {pipeline_mode = #tpu.pipeline_mode<synchronous>, transform_indices = @transform_19, window_bounds = array<i64: 96, 64>}, {pipeline_mode = #tpu.pipeline_mode<synchronous>, transform_indices = @transform_20, window_bounds = array<i64: 1, 64>}, {transform_indices = @transform_21, window_bounds = array<i64: 64, 128>}]} {
    %c0 = arith.constant 0 : index
    %c0_0 = arith.constant 0 : index
    %0 = vector.load %arg1[%c0, %c0_0] : memref<64x128xf32, #tpu.memory_space<vmem>>, vector<64x128xf32>
    %1 = arith.truncf %0 : vector<64x128xf32> to vector<64x128xbf16>
    %c0_1 = arith.constant 0 : index
    %c0_2 = arith.constant 0 : index
    %2 = vector.load %arg2[%c0_1, %c0_2] : memref<128x64xbf16, #tpu.memory_space<vmem>>, vector<128x64xbf16>
    %cst = arith.constant dense<0.000000e+00> : vector<64x64xf32>
    %3 = tpu.matmul %1, %2, %cst {dimension_numbers = #tpu.dot_dimension_numbers<[1], [0], [0], [1], [0, 0, 1, 1], [], []>} : vector<64x128xbf16>, vector<128x64xbf16>, vector<64x64xf32> -> vector<64x64xf32>
    %c0_3 = arith.constant 0 : index
    %c0_4 = arith.constant 0 : index
    %4 = vector.load %arg3[%c0_3, %c0_4] : memref<1x64xf32, #tpu.memory_space<vmem>>, vector<1x64xf32>
    %5 = vector.broadcast %4 : vector<1x64xf32> to vector<64x64xf32>
    %6 = arith.addf %3, %5 : vector<64x64xf32>
    %7 = arith.negf %6 : vector<64x64xf32>
    %8 = math.exp %7 : vector<64x64xf32>
    %cst_5 = arith.constant 1.000000e+00 : f32
    %9 = vector.broadcast %cst_5 : f32 to vector<64x64xf32>
    %10 = arith.addf %9, %8 : vector<64x64xf32>
    %11 = arith.divf %9, %10 : vector<64x64xf32>
    %12 = arith.mulf %6, %11 : vector<64x64xf32>
    %13 = arith.truncf %12 : vector<64x64xf32> to vector<64x64xbf16>
    %c0_6 = arith.constant 0 : index
    %c0_7 = arith.constant 0 : index
    %14 = vector.load %arg4[%c0_6, %c0_7] : memref<128x64xbf16, #tpu.memory_space<vmem>>, vector<128x64xbf16>
    %cst_8 = arith.constant dense<0.000000e+00> : vector<64x64xf32>
    %15 = tpu.matmul %1, %14, %cst_8 {dimension_numbers = #tpu.dot_dimension_numbers<[1], [0], [0], [1], [0, 0, 1, 1], [], []>} : vector<64x128xbf16>, vector<128x64xbf16>, vector<64x64xf32> -> vector<64x64xf32>
    %c0_9 = arith.constant 0 : index
    %c0_10 = arith.constant 0 : index
    %16 = vector.load %arg5[%c0_9, %c0_10] : memref<1x64xf32, #tpu.memory_space<vmem>>, vector<1x64xf32>
    %17 = vector.broadcast %16 : vector<1x64xf32> to vector<64x64xf32>
    %18 = arith.addf %15, %17 : vector<64x64xf32>
    %19 = arith.negf %18 : vector<64x64xf32>
    %20 = math.exp %19 : vector<64x64xf32>
    %cst_11 = arith.constant 1.000000e+00 : f32
    %21 = vector.broadcast %cst_11 : f32 to vector<64x64xf32>
    %22 = arith.addf %21, %20 : vector<64x64xf32>
    %23 = arith.divf %21, %22 : vector<64x64xf32>
    %24 = arith.mulf %18, %23 : vector<64x64xf32>
    %25 = arith.truncf %24 : vector<64x64xf32> to vector<64x64xbf16>
    %cst_12 = arith.constant 0.000000e+00 : f32
    %26 = vector.broadcast %cst_12 : f32 to vector<64x64xf32>
    %c0_13 = arith.constant 0 : index
    %c0_14 = arith.constant 0 : index
    %27 = vector.load %arg17[%c0_13, %c0_14] : memref<1x64xf32, #tpu.memory_space<vmem>>, vector<1x64xf32>
    %28 = vector.broadcast %27 : vector<1x64xf32> to vector<64x64xf32>
    %29 = arith.addf %26, %28 : vector<64x64xf32>
    %c0_15 = arith.constant 0 : index
    %c0_16 = arith.constant 0 : index
    %30 = vector.load %arg9[%c0_15, %c0_16] : memref<64x32xbf16, #tpu.memory_space<vmem>>, vector<64x32xbf16>
    %cst_17 = arith.constant dense<0.000000e+00> : vector<64x32xf32>
    %31 = tpu.matmul %25, %30, %cst_17 {dimension_numbers = #tpu.dot_dimension_numbers<[1], [0], [0], [1], [0, 0, 1, 1], [], []>} : vector<64x64xbf16>, vector<64x32xbf16>, vector<64x32xf32> -> vector<64x32xf32>
    %c0_18 = arith.constant 0 : index
    %c0_19 = arith.constant 0 : index
    %32 = vector.load %arg10[%c0_18, %c0_19] : memref<1x32xf32, #tpu.memory_space<vmem>>, vector<1x32xf32>
    %33 = vector.broadcast %32 : vector<1x32xf32> to vector<64x32xf32>
    %34 = arith.addf %31, %33 : vector<64x32xf32>
    %c0_20 = arith.constant 0 : index
    %c0_21 = arith.constant 0 : index
    %35 = vector.load %arg11[%c0_20, %c0_21] : memref<64x32xbf16, #tpu.memory_space<vmem>>, vector<64x32xbf16>
    %cst_22 = arith.constant dense<0.000000e+00> : vector<64x32xf32>
    %36 = tpu.matmul %25, %35, %cst_22 {dimension_numbers = #tpu.dot_dimension_numbers<[1], [0], [0], [1], [0, 0, 1, 1], [], []>} : vector<64x64xbf16>, vector<64x32xbf16>, vector<64x32xf32> -> vector<64x32xf32>
    %c0_23 = arith.constant 0 : index
    %c0_24 = arith.constant 0 : index
    %37 = vector.load %arg12[%c0_23, %c0_24] : memref<1x32xf32, #tpu.memory_space<vmem>>, vector<1x32xf32>
    %38 = vector.broadcast %37 : vector<1x32xf32> to vector<64x32xf32>
    %39 = arith.addf %36, %38 : vector<64x32xf32>
    %c0_25 = arith.constant 0 : index
    %c0_26 = arith.constant 0 : index
    %40 = vector.load %arg13[%c0_25, %c0_26] : memref<64x64xbf16, #tpu.memory_space<vmem>>, vector<64x64xbf16>
    %cst_27 = arith.constant dense<0.000000e+00> : vector<64x64xf32>
    %41 = tpu.matmul %25, %40, %cst_27 {dimension_numbers = #tpu.dot_dimension_numbers<[1], [0], [0], [1], [0, 0, 1, 1], [], []>} : vector<64x64xbf16>, vector<64x64xbf16>, vector<64x64xf32> -> vector<64x64xf32>
    %c0_28 = arith.constant 0 : index
    %c0_29 = arith.constant 0 : index
    %42 = vector.load %arg14[%c0_28, %c0_29] : memref<1x64xf32, #tpu.memory_space<vmem>>, vector<1x64xf32>
    %43 = vector.broadcast %42 : vector<1x64xf32> to vector<64x64xf32>
    %44 = arith.addf %41, %43 : vector<64x64xf32>
    %45 = arith.truncf %34 : vector<64x32xf32> to vector<64x32xbf16>
    %46 = arith.truncf %39 : vector<64x32xf32> to vector<64x32xbf16>
    %cst_30 = arith.constant dense<0.000000e+00> : vector<64x64xf32>
    %47 = tpu.matmul %45, %46, %cst_30 {dimension_numbers = #tpu.dot_dimension_numbers<[1], [1], [0], [0], [0, 0, 1, 0], [], []>} : vector<64x32xbf16>, vector<64x32xbf16>, vector<64x64xf32> -> vector<64x64xf32>
    %cst_31 = arith.constant dense<0xFF800000> : vector<64xf32>
    %48 = vector.multi_reduction <maximumf>, %47, %cst_31 [1] : vector<64x64xf32> to vector<64xf32>
    %49 = vector.shape_cast %48 : vector<64xf32> to vector<64x1xf32>
    %50 = vector.broadcast %49 : vector<64x1xf32> to vector<64x64xf32>
    %51 = arith.subf %47, %50 : vector<64x64xf32>
    %52 = math.exp %51 : vector<64x64xf32>
    %cst_32 = arith.constant dense<0.000000e+00> : vector<64xf32>
    %53 = vector.multi_reduction <add>, %52, %cst_32 [1] : vector<64x64xf32> to vector<64xf32>
    %54 = vector.shape_cast %53 : vector<64xf32> to vector<64x1xf32>
    %55 = tpu.reciprocal %54 {approx = true} : vector<64x1xf32> -> vector<64x1xf32>
    %56 = vector.broadcast %55 : vector<64x1xf32> to vector<64x64xf32>
    %57 = arith.mulf %52, %56 : vector<64x64xf32>
    %58 = arith.truncf %57 : vector<64x64xf32> to vector<64x64xbf16>
    %59 = arith.truncf %44 : vector<64x64xf32> to vector<64x64xbf16>
    %cst_33 = arith.constant dense<0.000000e+00> : vector<64x64xf32>
    %60 = tpu.matmul %58, %59, %cst_33 {dimension_numbers = #tpu.dot_dimension_numbers<[1], [0], [0], [1], [0, 0, 1, 1], [], []>} : vector<64x64xbf16>, vector<64x64xbf16>, vector<64x64xf32> -> vector<64x64xf32>
    %61 = vector.extract_strided_slice %44 {offsets = [55, 0], sizes = [9, 64], strides = [1, 1]} : vector<64x64xf32> to vector<9x64xf32>
    %62 = vector.extract_strided_slice %44 {offsets = [0, 0], sizes = [55, 64], strides = [1, 1]} : vector<64x64xf32> to vector<55x64xf32>
    %63 = tpu.concatenate %61, %62 in 0 : vector<9x64xf32>, vector<55x64xf32> -> vector<64x64xf32>
    %c0_34 = arith.constant 0 : index
    %c0_35 = arith.constant 0 : index
    %c0_36 = arith.constant 0 : index
    %64 = vector.load %arg16[%c0_34, %c0_35, %c0_36] : memref<9x64x64xf32, #tpu.memory_space<vmem>>, vector<1x64x64xf32>
    %65 = vector.shape_cast %64 : vector<1x64x64xf32> to vector<64x64xf32>
    %66 = arith.mulf %63, %65 : vector<64x64xf32>
    %67 = arith.addf %60, %66 : vector<64x64xf32>
    %68 = vector.extract_strided_slice %44 {offsets = [56, 0], sizes = [8, 64], strides = [1, 1]} : vector<64x64xf32> to vector<8x64xf32>
    %69 = vector.extract_strided_slice %44 {offsets = [0, 0], sizes = [56, 64], strides = [1, 1]} : vector<64x64xf32> to vector<56x64xf32>
    %70 = tpu.concatenate %68, %69 in 0 : vector<8x64xf32>, vector<56x64xf32> -> vector<64x64xf32>
    %c1 = arith.constant 1 : index
    %c0_37 = arith.constant 0 : index
    %c0_38 = arith.constant 0 : index
    %71 = vector.load %arg16[%c1, %c0_37, %c0_38] : memref<9x64x64xf32, #tpu.memory_space<vmem>>, vector<1x64x64xf32>
    %72 = vector.shape_cast %71 : vector<1x64x64xf32> to vector<64x64xf32>
    %73 = arith.mulf %70, %72 : vector<64x64xf32>
    %74 = arith.addf %67, %73 : vector<64x64xf32>
    %75 = vector.extract_strided_slice %44 {offsets = [57, 0], sizes = [7, 64], strides = [1, 1]} : vector<64x64xf32> to vector<7x64xf32>
    %76 = vector.extract_strided_slice %44 {offsets = [0, 0], sizes = [57, 64], strides = [1, 1]} : vector<64x64xf32> to vector<57x64xf32>
    %77 = tpu.concatenate %75, %76 in 0 : vector<7x64xf32>, vector<57x64xf32> -> vector<64x64xf32>
    %c2 = arith.constant 2 : index
    %c0_39 = arith.constant 0 : index
    %c0_40 = arith.constant 0 : index
    %78 = vector.load %arg16[%c2, %c0_39, %c0_40] : memref<9x64x64xf32, #tpu.memory_space<vmem>>, vector<1x64x64xf32>
    %79 = vector.shape_cast %78 : vector<1x64x64xf32> to vector<64x64xf32>
    %80 = arith.mulf %77, %79 : vector<64x64xf32>
    %81 = arith.addf %74, %80 : vector<64x64xf32>
    %82 = vector.extract_strided_slice %44 {offsets = [63, 0], sizes = [1, 64], strides = [1, 1]} : vector<64x64xf32> to vector<1x64xf32>
    %83 = vector.extract_strided_slice %44 {offsets = [0, 0], sizes = [63, 64], strides = [1, 1]} : vector<64x64xf32> to vector<63x64xf32>
    %84 = tpu.concatenate %82, %83 in 0 : vector<1x64xf32>, vector<63x64xf32> -> vector<64x64xf32>
    %c3 = arith.constant 3 : index
    %c0_41 = arith.constant 0 : index
    %c0_42 = arith.constant 0 : index
    %85 = vector.load %arg16[%c3, %c0_41, %c0_42] : memref<9x64x64xf32, #tpu.memory_space<vmem>>, vector<1x64x64xf32>
    %86 = vector.shape_cast %85 : vector<1x64x64xf32> to vector<64x64xf32>
    %87 = arith.mulf %84, %86 : vector<64x64xf32>
    %88 = arith.addf %81, %87 : vector<64x64xf32>
    %c4 = arith.constant 4 : index
    %c0_43 = arith.constant 0 : index
    %c0_44 = arith.constant 0 : index
    %89 = vector.load %arg16[%c4, %c0_43, %c0_44] : memref<9x64x64xf32, #tpu.memory_space<vmem>>, vector<1x64x64xf32>
    %90 = vector.shape_cast %89 : vector<1x64x64xf32> to vector<64x64xf32>
    %91 = arith.mulf %44, %90 : vector<64x64xf32>
    %92 = arith.addf %88, %91 : vector<64x64xf32>
    %93 = vector.extract_strided_slice %44 {offsets = [1, 0], sizes = [63, 64], strides = [1, 1]} : vector<64x64xf32> to vector<63x64xf32>
    %94 = vector.extract_strided_slice %44 {offsets = [0, 0], sizes = [1, 64], strides = [1, 1]} : vector<64x64xf32> to vector<1x64xf32>
    %95 = tpu.concatenate %93, %94 in 0 : vector<63x64xf32>, vector<1x64xf32> -> vector<64x64xf32>
    %c5 = arith.constant 5 : index
    %c0_45 = arith.constant 0 : index
    %c0_46 = arith.constant 0 : index
    %96 = vector.load %arg16[%c5, %c0_45, %c0_46] : memref<9x64x64xf32, #tpu.memory_space<vmem>>, vector<1x64x64xf32>
    %97 = vector.shape_cast %96 : vector<1x64x64xf32> to vector<64x64xf32>
    %98 = arith.mulf %95, %97 : vector<64x64xf32>
    %99 = arith.addf %92, %98 : vector<64x64xf32>
    %100 = vector.extract_strided_slice %44 {offsets = [7, 0], sizes = [57, 64], strides = [1, 1]} : vector<64x64xf32> to vector<57x64xf32>
    %101 = vector.extract_strided_slice %44 {offsets = [0, 0], sizes = [7, 64], strides = [1, 1]} : vector<64x64xf32> to vector<7x64xf32>
    %102 = tpu.concatenate %100, %101 in 0 : vector<57x64xf32>, vector<7x64xf32> -> vector<64x64xf32>
    %c6 = arith.constant 6 : index
    %c0_47 = arith.constant 0 : index
    %c0_48 = arith.constant 0 : index
    %103 = vector.load %arg16[%c6, %c0_47, %c0_48] : memref<9x64x64xf32, #tpu.memory_space<vmem>>, vector<1x64x64xf32>
    %104 = vector.shape_cast %103 : vector<1x64x64xf32> to vector<64x64xf32>
    %105 = arith.mulf %102, %104 : vector<64x64xf32>
    %106 = arith.addf %99, %105 : vector<64x64xf32>
    %107 = vector.extract_strided_slice %44 {offsets = [8, 0], sizes = [56, 64], strides = [1, 1]} : vector<64x64xf32> to vector<56x64xf32>
    %108 = vector.extract_strided_slice %44 {offsets = [0, 0], sizes = [8, 64], strides = [1, 1]} : vector<64x64xf32> to vector<8x64xf32>
    %109 = tpu.concatenate %107, %108 in 0 : vector<56x64xf32>, vector<8x64xf32> -> vector<64x64xf32>
    %c7 = arith.constant 7 : index
    %c0_49 = arith.constant 0 : index
    %c0_50 = arith.constant 0 : index
    %110 = vector.load %arg16[%c7, %c0_49, %c0_50] : memref<9x64x64xf32, #tpu.memory_space<vmem>>, vector<1x64x64xf32>
    %111 = vector.shape_cast %110 : vector<1x64x64xf32> to vector<64x64xf32>
    %112 = arith.mulf %109, %111 : vector<64x64xf32>
    %113 = arith.addf %106, %112 : vector<64x64xf32>
    %114 = vector.extract_strided_slice %44 {offsets = [9, 0], sizes = [55, 64], strides = [1, 1]} : vector<64x64xf32> to vector<55x64xf32>
    %115 = vector.extract_strided_slice %44 {offsets = [0, 0], sizes = [9, 64], strides = [1, 1]} : vector<64x64xf32> to vector<9x64xf32>
    %116 = tpu.concatenate %114, %115 in 0 : vector<55x64xf32>, vector<9x64xf32> -> vector<64x64xf32>
    %c8 = arith.constant 8 : index
    %c0_51 = arith.constant 0 : index
    %c0_52 = arith.constant 0 : index
    %117 = vector.load %arg16[%c8, %c0_51, %c0_52] : memref<9x64x64xf32, #tpu.memory_space<vmem>>, vector<1x64x64xf32>
    %118 = vector.shape_cast %117 : vector<1x64x64xf32> to vector<64x64xf32>
    %119 = arith.mulf %116, %118 : vector<64x64xf32>
    %120 = arith.addf %113, %119 : vector<64x64xf32>
    %121 = arith.truncf %120 : vector<64x64xf32> to vector<64x64xbf16>
    %c0_53 = arith.constant 0 : index
    %c0_54 = arith.constant 0 : index
    %122 = vector.load %arg15[%c0_53, %c0_54] : memref<64x64xbf16, #tpu.memory_space<vmem>>, vector<64x64xbf16>
    %cst_55 = arith.constant dense<0.000000e+00> : vector<64x64xf32>
    %123 = tpu.matmul %121, %122, %cst_55 {dimension_numbers = #tpu.dot_dimension_numbers<[1], [0], [0], [1], [0, 0, 1, 1], [], []>} : vector<64x64xbf16>, vector<64x64xbf16>, vector<64x64xf32> -> vector<64x64xf32>
    %124 = arith.addf %29, %123 : vector<64x64xf32>
    %125 = arith.addf %24, %124 : vector<64x64xf32>
    %126 = arith.truncf %125 : vector<64x64xf32> to vector<64x64xbf16>
    %c0_56 = arith.constant 0 : index
    %c0_57 = arith.constant 0 : index
    %127 = vector.load %arg18[%c0_56, %c0_57] : memref<64x96xbf16, #tpu.memory_space<vmem>>, vector<64x96xbf16>
    %cst_58 = arith.constant dense<0.000000e+00> : vector<64x96xf32>
    %128 = tpu.matmul %126, %127, %cst_58 {dimension_numbers = #tpu.dot_dimension_numbers<[1], [0], [0], [1], [0, 0, 1, 1], [], []>} : vector<64x64xbf16>, vector<64x96xbf16>, vector<64x96xf32> -> vector<64x96xf32>
    %c0_59 = arith.constant 0 : index
    %c0_60 = arith.constant 0 : index
    %129 = vector.load %arg19[%c0_59, %c0_60] : memref<1x96xf32, #tpu.memory_space<vmem>>, vector<1x96xf32>
    %130 = vector.broadcast %129 : vector<1x96xf32> to vector<64x96xf32>
    %131 = arith.addf %128, %130 : vector<64x96xf32>
    %132 = arith.negf %131 : vector<64x96xf32>
    %133 = math.exp %132 : vector<64x96xf32>
    %cst_61 = arith.constant 1.000000e+00 : f32
    %134 = vector.broadcast %cst_61 : f32 to vector<64x96xf32>
    %135 = arith.addf %134, %133 : vector<64x96xf32>
    %136 = arith.divf %134, %135 : vector<64x96xf32>
    %137 = arith.mulf %131, %136 : vector<64x96xf32>
    %138 = arith.truncf %137 : vector<64x96xf32> to vector<64x96xbf16>
    %c0_62 = arith.constant 0 : index
    %c0_63 = arith.constant 0 : index
    %139 = vector.load %arg20[%c0_62, %c0_63] : memref<96x64xbf16, #tpu.memory_space<vmem>>, vector<96x64xbf16>
    %cst_64 = arith.constant dense<0.000000e+00> : vector<64x64xf32>
    %140 = tpu.matmul %138, %139, %cst_64 {dimension_numbers = #tpu.dot_dimension_numbers<[1], [0], [0], [1], [0, 0, 1, 1], [], []>} : vector<64x96xbf16>, vector<96x64xbf16>, vector<64x64xf32> -> vector<64x64xf32>
    %c0_65 = arith.constant 0 : index
    %c0_66 = arith.constant 0 : index
    %141 = vector.load %arg21[%c0_65, %c0_66] : memref<1x64xf32, #tpu.memory_space<vmem>>, vector<1x64xf32>
    %142 = vector.broadcast %141 : vector<1x64xf32> to vector<64x64xf32>
    %143 = arith.addf %140, %142 : vector<64x64xf32>
    %144 = arith.addf %125, %143 : vector<64x64xf32>
    %c0_67 = arith.constant 0 : index
    %c0_68 = arith.constant 0 : index
    %145 = vector.load %arg6[%c0_67, %c0_68] : memref<64x128xbf16, #tpu.memory_space<vmem>>, vector<64x128xbf16>
    %cst_69 = arith.constant dense<0.000000e+00> : vector<64x128xf32>
    %146 = tpu.matmul %13, %145, %cst_69 {dimension_numbers = #tpu.dot_dimension_numbers<[1], [0], [0], [1], [0, 0, 1, 1], [], []>} : vector<64x64xbf16>, vector<64x128xbf16>, vector<64x128xf32> -> vector<64x128xf32>
    %147 = arith.truncf %144 : vector<64x64xf32> to vector<64x64xbf16>
    %c0_70 = arith.constant 0 : index
    %c0_71 = arith.constant 0 : index
    %148 = vector.load %arg7[%c0_70, %c0_71] : memref<64x128xbf16, #tpu.memory_space<vmem>>, vector<64x128xbf16>
    %cst_72 = arith.constant dense<0.000000e+00> : vector<64x128xf32>
    %149 = tpu.matmul %147, %148, %cst_72 {dimension_numbers = #tpu.dot_dimension_numbers<[1], [0], [0], [1], [0, 0, 1, 1], [], []>} : vector<64x64xbf16>, vector<64x128xbf16>, vector<64x128xf32> -> vector<64x128xf32>
    %150 = arith.addf %146, %149 : vector<64x128xf32>
    %c0_73 = arith.constant 0 : index
    %c0_74 = arith.constant 0 : index
    %151 = vector.load %arg8[%c0_73, %c0_74] : memref<1x128xf32, #tpu.memory_space<vmem>>, vector<1x128xf32>
    %152 = vector.broadcast %151 : vector<1x128xf32> to vector<64x128xf32>
    %153 = arith.addf %150, %152 : vector<64x128xf32>
    %154 = arith.negf %153 : vector<64x128xf32>
    %155 = math.exp %154 : vector<64x128xf32>
    %cst_75 = arith.constant 1.000000e+00 : f32
    %156 = vector.broadcast %cst_75 : f32 to vector<64x128xf32>
    %157 = arith.addf %156, %155 : vector<64x128xf32>
    %158 = arith.divf %156, %157 : vector<64x128xf32>
    %159 = arith.mulf %153, %158 : vector<64x128xf32>
    %c0_76 = arith.constant 0 : index
    %c0_77 = arith.constant 0 : index
    %160 = vector.load %arg22[%c0_76, %c0_77] : memref<64x128xf32, #tpu.memory_space<vmem>>, vector<64x128xf32>
    tpu.vector_store %arg22[%c0_76, %c0_77], %159 {strides = array<i32>} : memref<64x128xf32, #tpu.memory_space<vmem>>, vector<64x128xf32>,
    return
  }
  func.func @transform_0(%arg0: i32) -> (i32, i32) {
    %c0_i32 = arith.constant 0 : i32
    %c0_i32_0 = arith.constant 0 : i32
    return %arg0, %c0_i32 : i32, i32
  }
  func.func @transform_1(%arg0: i32) -> (i32, i32) {
    %c0_i32 = arith.constant 0 : i32
    %c0_i32_0 = arith.constant 0 : i32
    %c0_i32_1 = arith.constant 0 : i32
    return %c0_i32, %c0_i32_0 : i32, i32
  }
  func.func @transform_2(%arg0: i32) -> (i32, i32) {
    %c0_i32 = arith.constant 0 : i32
    %c0_i32_0 = arith.constant 0 : i32
    %c0_i32_1 = arith.constant 0 : i32
    return %c0_i32, %c0_i32_0 : i32, i32
  }
  func.func @transform_3(%arg0: i32) -> (i32, i32) {
    %c0_i32 = arith.constant 0 : i32
    %c0_i32_0 = arith.constant 0 : i32
    %c0_i32_1 = arith.constant 0 : i32
    return %c0_i32, %c0_i32_0 : i32, i32
  }
  func.func @transform_4(%arg0: i32) -> (i32, i32) {
    %c0_i32 = arith.constant 0 : i32
    %c0_i32_0 = arith.constant 0 : i32
    %c0_i32_1 = arith.constant 0 : i32
    return %c0_i32, %c0_i32_0 : i32, i32
  }
  func.func @transform_5(%arg0: i32) -> (i32, i32) {
    %c0_i32 = arith.constant 0 : i32
    %c0_i32_0 = arith.constant 0 : i32
    %c0_i32_1 = arith.constant 0 : i32
    return %c0_i32, %c0_i32_0 : i32, i32
  }
  func.func @transform_6(%arg0: i32) -> (i32, i32) {
    %c0_i32 = arith.constant 0 : i32
    %c0_i32_0 = arith.constant 0 : i32
    %c0_i32_1 = arith.constant 0 : i32
    return %c0_i32, %c0_i32_0 : i32, i32
  }
  func.func @transform_7(%arg0: i32) -> (i32, i32) {
    %c0_i32 = arith.constant 0 : i32
    %c0_i32_0 = arith.constant 0 : i32
    %c0_i32_1 = arith.constant 0 : i32
    return %c0_i32, %c0_i32_0 : i32, i32
  }
  func.func @transform_8(%arg0: i32) -> (i32, i32) {
    %c0_i32 = arith.constant 0 : i32
    %c0_i32_0 = arith.constant 0 : i32
    %c0_i32_1 = arith.constant 0 : i32
    return %c0_i32, %c0_i32_0 : i32, i32
  }
  func.func @transform_9(%arg0: i32) -> (i32, i32) {
    %c0_i32 = arith.constant 0 : i32
    %c0_i32_0 = arith.constant 0 : i32
    %c0_i32_1 = arith.constant 0 : i32
    return %c0_i32, %c0_i32_0 : i32, i32
  }
  func.func @transform_10(%arg0: i32) -> (i32, i32) {
    %c0_i32 = arith.constant 0 : i32
    %c0_i32_0 = arith.constant 0 : i32
    %c0_i32_1 = arith.constant 0 : i32
    return %c0_i32, %c0_i32_0 : i32, i32
  }
  func.func @transform_11(%arg0: i32) -> (i32, i32) {
    %c0_i32 = arith.constant 0 : i32
    %c0_i32_0 = arith.constant 0 : i32
    %c0_i32_1 = arith.constant 0 : i32
    return %c0_i32, %c0_i32_0 : i32, i32
  }
  func.func @transform_12(%arg0: i32) -> (i32, i32) {
    %c0_i32 = arith.constant 0 : i32
    %c0_i32_0 = arith.constant 0 : i32
    %c0_i32_1 = arith.constant 0 : i32
    return %c0_i32, %c0_i32_0 : i32, i32
  }
  func.func @transform_13(%arg0: i32) -> (i32, i32) {
    %c0_i32 = arith.constant 0 : i32
    %c0_i32_0 = arith.constant 0 : i32
    %c0_i32_1 = arith.constant 0 : i32
    return %c0_i32, %c0_i32_0 : i32, i32
  }
  func.func @transform_14(%arg0: i32) -> (i32, i32) {
    %c0_i32 = arith.constant 0 : i32
    %c0_i32_0 = arith.constant 0 : i32
    %c0_i32_1 = arith.constant 0 : i32
    return %c0_i32, %c0_i32_0 : i32, i32
  }
  func.func @transform_15(%arg0: i32) -> (i32, i32, i32) {
    %c0_i32 = arith.constant 0 : i32
    %c0_i32_0 = arith.constant 0 : i32
    %c0_i32_1 = arith.constant 0 : i32
    %c0_i32_2 = arith.constant 0 : i32
    return %c0_i32, %c0_i32_0, %c0_i32_1 : i32, i32, i32
  }
  func.func @transform_16(%arg0: i32) -> (i32, i32) {
    %c0_i32 = arith.constant 0 : i32
    %c0_i32_0 = arith.constant 0 : i32
    %c0_i32_1 = arith.constant 0 : i32
    return %c0_i32, %c0_i32_0 : i32, i32
  }
  func.func @transform_17(%arg0: i32) -> (i32, i32) {
    %c0_i32 = arith.constant 0 : i32
    %c0_i32_0 = arith.constant 0 : i32
    %c0_i32_1 = arith.constant 0 : i32
    return %c0_i32, %c0_i32_0 : i32, i32
  }
  func.func @transform_18(%arg0: i32) -> (i32, i32) {
    %c0_i32 = arith.constant 0 : i32
    %c0_i32_0 = arith.constant 0 : i32
    %c0_i32_1 = arith.constant 0 : i32
    return %c0_i32, %c0_i32_0 : i32, i32
  }
  func.func @transform_19(%arg0: i32) -> (i32, i32) {
    %c0_i32 = arith.constant 0 : i32
    %c0_i32_0 = arith.constant 0 : i32
    %c0_i32_1 = arith.constant 0 : i32
    return %c0_i32, %c0_i32_0 : i32, i32
  }
  func.func @transform_20(%arg0: i32) -> (i32, i32) {
    %c0_i32 = arith.constant 0 : i32
    %c0_i32_0 = arith.constant 0 : i32
    %c0_i32_1 = arith.constant 0 : i32
    return %c0_i32, %c0_i32_0 : i32, i32
  }
  func.func @transform_21(%arg0: i32) -> (i32, i32) {
    %c0_i32 = arith.constant 0 : i32
    %c0_i32_0 = arith.constant 0 : i32
    return %arg0, %c0_i32 : i32, i32
  }
}

</mosaic_0001>

<llo_original>
// kernel: mul.17
$region0: #{mul.17}
  %s0 = inlined_call_operand.vmem [shape: f32[3,3,64], index: 0, kind: input, shape index: {}]
  %s1 = inlined_call_operand.vmem [shape: f32[9,64], index: 1, kind: output, shape index: {}]
  $region1: #{mul.17} parent=0
    #allocation0 [shape = 'u8[12288]{0}', space=vmem, size = 0x3000, scoped, tag = 'scoped mem for input reshape']
    %s3 = sshllo.u32 0, 4
    %s4 = smul.addr 4, 2
    %s5 = scalar_lea.vmem %s0, %s4
    %v6 = vld [vmem:[%s5] sm:%s3]
    %s7 = scalar_lea.vmem [#allocation0], 16
    %8 = vst [vmem:[%s7] sm:%s3] %v6
    %s9 = scalar_lea.vmem %s0, 4
    %v10 = vld [vmem:[%s9] sm:%s3]
    %s11 = scalar_lea.vmem [#allocation0], 8
    %12 = vst [vmem:[%s11] sm:%s3] %v10
    %v13 = vld [vmem:[%s0] sm:%s3]
    %14 = vst [vmem:[#allocation0] sm:%s3] %v13
    %v15 = vld [vmem:[#allocation0] sm:$0x7]
    %vm16 = vcmask 523264
    %17 = vst.msk [vmem:[%s1] sm:$0x7] %vm16, %v15
    %s18 = scalar_lea.vmem [#allocation0], 8
    %v19 = vld [vmem:[%s18] sm:$0x7]
    %vm20 = vcmask 523264
    %s21 = scalar_lea.vmem %s1, 3
    %22 = vst.msk [vmem:[%s21] sm:$0x7] %vm20, %v19
    %s23 = scalar_lea.vmem [#allocation0], 16
    %v24 = vld [vmem:[%s23] sm:$0x7]
    %vm25 = vcmask 523264
    %s26 = scalar_lea.vmem %s1, 6
    %27 = vst.msk [vmem:[%s26] sm:$0x7] %vm25, %v24

// kernel: c2psa_forward_pallas.1
$region0: #{c2psa_forward_pallas.1}
  #allocation0 [shape = 'u32[]', space=smem, size = 0x4, offset = 0x4, fixed_abs, tag = 'smem constant byte address 0x4 - core index']
  #allocation1 [shape = 'u32[144,128]{1,0:T(1,128)}', space=vmem, size = 0x12000, scoped, tag = 'internal scratch']
  %s0 = inlined_call_operand.vmem [shape: f32[128,128], index: 0, kind: input, shape index: {}]
  %s1 = inlined_call_operand.vmem [shape: bf16[128,64], index: 1, kind: input, shape index: {}]
  %s2 = inlined_call_operand.vmem [shape: f32[1,64], index: 2, kind: input, shape index: {}]
  %s3 = inlined_call_operand.vmem [shape: bf16[128,64], index: 3, kind: input, shape index: {}]
  %s4 = inlined_call_operand.vmem [shape: f32[1,64], index: 4, kind: input, shape index: {}]
  %s5 = inlined_call_operand.vmem [shape: bf16[64,128], index: 5, kind: input, shape index: {}]
  %s6 = inlined_call_operand.vmem [shape: bf16[64,128], index: 6, kind: input, shape index: {}]
  %s7 = inlined_call_operand.vmem [shape: f32[1,128], index: 7, kind: input, shape index: {}]
  %s8 = inlined_call_operand.vmem [shape: bf16[64,32], index: 8, kind: input, shape index: {}]
  %s9 = inlined_call_operand.vmem [shape: f32[1,32], index: 9, kind: input, shape index: {}]
  %s10 = inlined_call_operand.vmem [shape: bf16[64,32], index: 10, kind: input, shape index: {}]
  %s11 = inlined_call_operand.vmem [shape: f32[1,32], index: 11, kind: input, shape index: {}]
  %s12 = inlined_call_operand.vmem [shape: bf16[64,64], index: 12, kind: input, shape index: {}]
  %s13 = inlined_call_operand.vmem [shape: f32[1,64], index: 13, kind: input, shape index: {}]
  %s14 = inlined_call_operand.vmem [shape: bf16[64,64], index: 14, kind: input, shape index: {}]
  %s15 = inlined_call_operand.vmem [shape: f32[9,64,64], index: 15, kind: input, shape index: {}]
  %s16 = inlined_call_operand.vmem [shape: f32[1,64], index: 16, kind: input, shape index: {}]
  %s17 = inlined_call_operand.vmem [shape: bf16[64,96], index: 17, kind: input, shape index: {}]
  %s18 = inlined_call_operand.vmem [shape: f32[1,96], index: 18, kind: input, shape index: {}]
  %s19 = inlined_call_operand.vmem [shape: bf16[96,64], index: 19, kind: input, shape index: {}]
  %s20 = inlined_call_operand.vmem [shape: f32[1,64], index: 20, kind: input, shape index: {}]
  %s21 = inlined_call_operand.hbm [shape: f32[128,128], index: 21, kind: output, shape index: {}]
  %s22 = sld [smem:[#allocation0]]
  $region117: #{c2psa_forward_pallas.1} parent=0
    _
  %s24 = ssub.s32 1, %s22
  %s25 = scalar_select 0, %s24, %s22
  $region1: #{c2psa_forward_pallas.1} parent=0
    #allocation2 [shape = 'u8[65536]{0}', space=vmem, size = 0x10000, scoped, tag = 'output window, operand 0']
    #allocation3 [shape = 's32[2]{0}', space=sflag, size = 0x8, scoped, tag = 'scoped memory for c2psa_forward_pallas.1']
    %26 = vsyncpa [#allocation3], 0
    %s27 = scalar_lea.sflag [#allocation3], 1
    %28 = vsyncpa %s27, 0
    loop: start=0, step=1, limit=4
    $region2: #{c2psa_forward_pallas.1} parent=1 // loop_pre_header
      _
    $region3: #{c2psa_forward_pallas.1} parent=1 // loop_header
      %s30 = sphi 0, %s34
      %p31 = scmp.ge.s32.totalorder %s30, 4
      %s40 = sphi 0, %s42
      %s43 = sphi 0, %s40
      %s44 = sphi 0, %s43
      %s60 = sphi 0, %s44
      %s64 = sphi 0, %s64
      %s66 = sphi 0, %s64
      %s67 = sphi 0, %s66
      %s81 = sphi 0, %s67
      %s85 = sphi 0, %s85
      %s87 = sphi 0, %s85
      %s88 = sphi 0, %s87
      %s102 = sphi 0, %s88
      %s106 = sphi 0, %s106
      %s108 = sphi 0, %s106
      %s109 = sphi 0, %s108
      %s123 = sphi 0, %s109
      %s127 = sphi 0, %s127
      %s129 = sphi 0, %s127
      %s130 = sphi 0, %s129
      %s144 = sphi 0, %s130
      %s148 = sphi 0, %s148
      %s150 = sphi 0, %s148
      %s151 = sphi 0, %s150
      %s165 = sphi 0, %s151
      %s169 = sphi 0, %s169
      %s171 = sphi 0, %s169
      %s172 = sphi 0, %s171
      %s186 = sphi 0, %s172
      %s190 = sphi 0, %s190
      %s192 = sphi 0, %s190
      %s193 = sphi 0, %s192
      %s207 = sphi 0, %s193
      %s211 = sphi 0, %s211
      %s213 = sphi 0, %s211
      %s214 = sphi 0, %s213
      %s228 = sphi 0, %s214
      %s232 = sphi 0, %s232
      %s234 = sphi 0, %s232
      %s235 = sphi 0, %s234
      %s249 = sphi 0, %s235
      %s253 = sphi 0, %s253
      %s255 = sphi 0, %s253
      %s256 = sphi 0, %s255
      %s270 = sphi 0, %s256
      %s274 = sphi 0, %s274
      %s276 = sphi 0, %s274
      %s277 = sphi 0, %s276
      %s291 = sphi 0, %s277
      %s295 = sphi 0, %s295
      %s297 = sphi 0, %s295
      %s298 = sphi 0, %s297
      %s312 = sphi 0, %s298
      %s316 = sphi 0, %s316
      %s318 = sphi 0, %s316
      %s319 = sphi 0, %s318
      %s333 = sphi 0, %s319
      %s337 = sphi 0, %s337
      %s339 = sphi 0, %s337
      %s340 = sphi 0, %s339
      %s354 = sphi 0, %s340
      %s358 = sphi 0, %s358
      %s360 = sphi 0, %s358
      %s361 = sphi 0, %s360
      %s375 = sphi 0, %s361
      %s379 = sphi 0, %s379
      %s381 = sphi 0, %s379
      %s382 = sphi 0, %s381
      %s396 = sphi 0, %s382
      %s400 = sphi 0, %s400
      %s402 = sphi 0, %s400
      %s403 = sphi 0, %s402
      %s417 = sphi 0, %s403
      %s421 = sphi 0, %s421
      %s423 = sphi 0, %s421
      %s424 = sphi 0, %s423
      %s438 = sphi 0, %s424
      %s442 = sphi 0, %s442
      %s444 = sphi 0, %s442
      %s445 = sphi 0, %s444
      %s459 = sphi 0, %s445
      %s463 = sphi 0, %s463
      %s465 = sphi 0, %s463
      %s466 = sphi 0, %s465
      %s480 = sphi 0, %s466
      %s486 = sphi 0, %s488
      %s489 = sphi 0, %s486
      %s490 = sphi 0, %s489
      %s506 = sphi 0, %s490
    $region4: #{c2psa_forward_pallas.1} parent=1 // loop_header_branch
      %33 = sbr.rel (%p31) target = $region8
    $region5: #{c2psa_forward_pallas.1} parent=1 // loop_body
      %s35 = ssub.s32 %s30, 1
      %s36 = ssub.s32 %s30, 2
      %s37 = sadd.s32 %s30, 1
      %s38 = ssub.s32 %s30, %s37
      %p39 = scmp.eq.s32.totalorder %s38, 0
      %s41 = sadd.s32 %s40, 1
      %s42 = scalar_select %p39, %s40, %s41
      %p45 = pneg %p39
      %p46 = scmp.eq.s32.totalorder %s30, 1
      %p47 = por %p45, %p46
      %p48 = scmp.ne.s32.totalorder %s40, %s43
      %p49 = scmp.eq.s32.totalorder %s30, 0
      %p50 = por %p48, %p49
      %p51 = scmp.ne.s32.totalorder %s40, %s43
      %p52 = scmp.eq.s32.totalorder %s35, 1
      %p53 = por %p51, %p52
      %p54 = scmp.ne.s32.totalorder %s43, %s44
      %p55 = scmp.eq.s32.totalorder %s35, 0
      %p56 = por %p54, %p55
      %p57 = scmp.ne.s32.totalorder %s43, %s44
      %p58 = scmp.eq.s32.totalorder %s36, 1
      %p59 = por %p57, %p58
      %p61 = scmp.ne.s32.totalorder %s44, %s60
      %p62 = scmp.eq.s32.totalorder %s36, 0
      %p63 = por %p61, %p62
      %s65 = sadd.s32 %s64, 1
      %p68 = scmp.eq.s32.totalorder %s30, 1
      %p69 = scmp.ne.s32.totalorder %s64, %s66
      %p70 = scmp.eq.s32.totalorder %s30, 0
      %p71 = por %p69, %p70
      %p72 = scmp.ne.s32.totalorder %s64, %s66
      %p73 = scmp.eq.s32.totalorder %s35, 1
      %p74 = por %p72, %p73
      %p75 = scmp.ne.s32.totalorder %s66, %s67
      %p76 = scmp.eq.s32.totalorder %s35, 0
      %p77 = por %p75, %p76
      %p78 = scmp.ne.s32.totalorder %s66, %s67
      %p79 = scmp.eq.s32.totalorder %s36, 1
      %p80 = por %p78, %p79
      %p82 = scmp.ne.s32.totalorder %s67, %s81
      %p83 = scmp.eq.s32.totalorder %s36, 0
      %p84 = por %p82, %p83
      %s86 = sadd.s32 %s85, 1
      %p89 = scmp.eq.s32.totalorder %s30, 1
      %p90 = scmp.ne.s32.totalorder %s85, %s87
      %p91 = scmp.eq.s32.totalorder %s30, 0
      %p92 = por %p90, %p91
      %p93 = scmp.ne.s32.totalorder %s85, %s87
      %p94 = scmp.eq.s32.totalorder %s35, 1
      %p95 = por %p93, %p94
      %p96 = scmp.ne.s32.totalorder %s87, %s88
      %p97 = scmp.eq.s32.totalorder %s35, 0
      %p98 = por %p96, %p97
      %p99 = scmp.ne.s32.totalorder %s87, %s88
      %p100 = scmp.eq.s32.totalorder %s36, 1
      %p101 = por %p99, %p100
      %p103 = scmp.ne.s32.totalorder %s88, %s102
      %p104 = scmp.eq.s32.totalorder %s36, 0
      %p105 = por %p103, %p104
      %s107 = sadd.s32 %s106, 1
      %p110 = scmp.eq.s32.totalorder %s30, 1
      %p111 = scmp.ne.s32.totalorder %s106, %s108
      %p112 = scmp.eq.s32.totalorder %s30, 0
      %p113 = por %p111, %p112
      %p114 = scmp.ne.s32.totalorder %s106, %s108
      %p115 = scmp.eq.s32.totalorder %s35, 1
      %p116 = por %p114, %p115
      %p117 = scmp.ne.s32.totalorder %s108, %s109
      %p118 = scmp.eq.s32.totalorder %s35, 0
      %p119 = por %p117, %p118
      %p120 = scmp.ne.s32.totalorder %s108, %s109
      %p121 = scmp.eq.s32.totalorder %s36, 1
      %p122 = por %p120, %p121
      %p124 = scmp.ne.s32.totalorder %s109, %s123
      %p125 = scmp.eq.s32.totalorder %s36, 0
      %p126 = por %p124, %p125
      %s128 = sadd.s32 %s127, 1
      %p131 = scmp.eq.s32.totalorder %s30, 1
      %p132 = scmp.ne.s32.totalorder %s127, %s129
      %p133 = scmp.eq.s32.totalorder %s30, 0
      %p134 = por %p132, %p133
      %p135 = scmp.ne.s32.totalorder %s127, %s129
      %p136 = scmp.eq.s32.totalorder %s35, 1
      %p137 = por %p135, %p136
      %p138 = scmp.ne.s32.totalorder %s129, %s130
      %p139 = scmp.eq.s32.totalorder %s35, 0
      %p140 = por %p138, %p139
      %p141 = scmp.ne.s32.totalorder %s129, %s130
      %p142 = scmp.eq.s32.totalorder %s36, 1
      %p143 = por %p141, %p142
      %p145 = scmp.ne.s32.totalorder %s130, %s144
      %p146 = scmp.eq.s32.totalorder %s36, 0
      %p147 = por %p145, %p146
      %s149 = sadd.s32 %s148, 1
      %p152 = scmp.eq.s32.totalorder %s30, 1
      %p153 = scmp.ne.s32.totalorder %s148, %s150
      %p154 = scmp.eq.s32.totalorder %s30, 0
      %p155 = por %p153, %p154
      %p156 = scmp.ne.s32.totalorder %s148, %s150
      %p157 = scmp.eq.s32.totalorder %s35, 1
      %p158 = por %p156, %p157
      %p159 = scmp.ne.s32.totalorder %s150, %s151
      %p160 = scmp.eq.s32.totalorder %s35, 0
      %p161 = por %p159, %p160
      %p162 = scmp.ne.s32.totalorder %s150, %s151
      %p163 = scmp.eq.s32.totalorder %s36, 1
      %p164 = por %p162, %p163
      %p166 = scmp.ne.s32.totalorder %s151, %s165
      %p167 = scmp.eq.s32.totalorder %s36, 0
      %p168 = por %p166, %p167
      %s170 = sadd.s32 %s169, 1
      %p173 = scmp.eq.s32.totalorder %s30, 1
      %p174 = scmp.ne.s32.totalorder %s169, %s171
      %p175 = scmp.eq.s32.totalorder %s30, 0
      %p176 = por %p174, %p175
      %p177 = scmp.ne.s32.totalorder %s169, %s171
      %p178 = scmp.eq.s32.totalorder %s35, 1
      %p179 = por %p177, %p178
      %p180 = scmp.ne.s32.totalorder %s171, %s172
      %p181 = scmp.eq.s32.totalorder %s35, 0
      %p182 = por %p180, %p181
      %p183 = scmp.ne.s32.totalorder %s171, %s172
      %p184 = scmp.eq.s32.totalorder %s36, 1
      %p185 = por %p183, %p184
      %p187 = scmp.ne.s32.totalorder %s172, %s186
      %p188 = scmp.eq.s32.totalorder %s36, 0
      %p189 = por %p187, %p188
      %s191 = sadd.s32 %s190, 1
      %p194 = scmp.eq.s32.totalorder %s30, 1
      %p195 = scmp.ne.s32.totalorder %s190, %s192
      %p196 = scmp.eq.s32.totalorder %s30, 0
      %p197 = por %p195, %p196
      %p198 = scmp.ne.s32.totalorder %s190, %s192
      %p199 = scmp.eq.s32.totalorder %s35, 1
      %p200 = por %p198, %p199
      %p201 = scmp.ne.s32.totalorder %s192, %s193
      %p202 = scmp.eq.s32.totalorder %s35, 0
      %p203 = por %p201, %p202
      %p204 = scmp.ne.s32.totalorder %s192, %s193
      %p205 = scmp.eq.s32.totalorder %s36, 1
      %p206 = por %p204, %p205
      %p208 = scmp.ne.s32.totalorder %s193, %s207
      %p209 = scmp.eq.s32.totalorder %s36, 0
      %p210 = por %p208, %p209
      %s212 = sadd.s32 %s211, 1
      %p215 = scmp.eq.s32.totalorder %s30, 1
      %p216 = scmp.ne.s32.totalorder %s211, %s213
      %p217 = scmp.eq.s32.totalorder %s30, 0
      %p218 = por %p216, %p217
      %p219 = scmp.ne.s32.totalorder %s211, %s213
      %p220 = scmp.eq.s32.totalorder %s35, 1
      %p221 = por %p219, %p220
      %p222 = scmp.ne.s32.totalorder %s213, %s214
      %p223 = scmp.eq.s32.totalorder %s35, 0
      %p224 = por %p222, %p223
      %p225 = scmp.ne.s32.totalorder %s213, %s214
      %p226 = scmp.eq.s32.totalorder %s36, 1
      %p227 = por %p225, %p226
      %p229 = scmp.ne.s32.totalorder %s214, %s228
      %p230 = scmp.eq.s32.totalorder %s36, 0
      %p231 = por %p229, %p230
      %s233 = sadd.s32 %s232, 1
      %p236 = scmp.eq.s32.totalorder %s30, 1
      %p237 = scmp.ne.s32.totalorder %s232, %s234
      %p238 = scmp.eq.s32.totalorder %s30, 0
      %p239 = por %p237, %p238
      %p240 = scmp.ne.s32.totalorder %s232, %s234
      %p241 = scmp.eq.s32.totalorder %s35, 1
      %p242 = por %p240, %p241
      %p243 = scmp.ne.s32.totalorder %s234, %s235
      %p244 = scmp.eq.s32.totalorder %s35, 0
      %p245 = por %p243, %p244
      %p246 = scmp.ne.s32.totalorder %s234, %s235
      %p247 = scmp.eq.s32.totalorder %s36, 1
      %p248 = por %p246, %p247
      %p250 = scmp.ne.s32.totalorder %s235, %s249
      %p251 = scmp.eq.s32.totalorder %s36, 0
      %p252 = por %p250, %p251
      %s254 = sadd.s32 %s253, 1
      %p257 = scmp.eq.s32.totalorder %s30, 1
      %p258 = scmp.ne.s32.totalorder %s253, %s255
      %p259 = scmp.eq.s32.totalorder %s30, 0
      %p260 = por %p258, %p259
      %p261 = scmp.ne.s32.totalorder %s253, %s255
      %p262 = scmp.eq.s32.totalorder %s35, 1
      %p263 = por %p261, %p262
      %p264 = scmp.ne.s32.totalorder %s255, %s256
      %p265 = scmp.eq.s32.totalorder %s35, 0
      %p266 = por %p264, %p265
      %p267 = scmp.ne.s32.totalorder %s255, %s256
      %p268 = scmp.eq.s32.totalorder %s36, 1
      %p269 = por %p267, %p268
      %p271 = scmp.ne.s32.totalorder %s256, %s270
      %p272 = scmp.eq.s32.totalorder %s36, 0
      %p273 = por %p271, %p272
      %s275 = sadd.s32 %s274, 1
      %p278 = scmp.eq.s32.totalorder %s30, 1
      %p279 = scmp.ne.s32.totalorder %s274, %s276
      %p280 = scmp.eq.s32.totalorder %s30, 0
      %p281 = por %p279, %p280
      %p282 = scmp.ne.s32.totalorder %s274, %s276
      %p283 = scmp.eq.s32.totalorder %s35, 1
      %p284 = por %p282, %p283
      %p285 = scmp.ne.s32.totalorder %s276, %s277
      %p286 = scmp.eq.s32.totalorder %s35, 0
      %p287 = por %p285, %p286
      %p288 = scmp.ne.s32.totalorder %s276, %s277
      %p289 = scmp.eq.s32.totalorder %s36, 1
      %p290 = por %p288, %p289
      %p292 = scmp.ne.s32.totalorder %s277, %s291
      %p293 = scmp.eq.s32.totalorder %s36, 0
      %p294 = por %p292, %p293
      %s296 = sadd.s32 %s295, 1
      %p299 = scmp.eq.s32.totalorder %s30, 1
      %p300 = scmp.ne.s32.totalorder %s295, %s297
      %p301 = scmp.eq.s32.totalorder %s30, 0
      %p302 = por %p300, %p301
      %p303 = scmp.ne.s32.totalorder %s295, %s297
      %p304 = scmp.eq.s32.totalorder %s35, 1
      %p305 = por %p303, %p304
      %p306 = scmp.ne.s32.totalorder %s297, %s298
      %p307 = scmp.eq.s32.totalorder %s35, 0
      %p308 = por %p306, %p307
      %p309 = scmp.ne.s32.totalorder %s297, %s298
      %p310 = scmp.eq.s32.totalorder %s36, 1
      %p311 = por %p309, %p310
      %p313 = scmp.ne.s32.totalorder %s298, %s312
      %p314 = scmp.eq.s32.totalorder %s36, 0
      %p315 = por %p313, %p314
      %s317 = sadd.s32 %s316, 1
      %p320 = scmp.eq.s32.totalorder %s30, 1
      %p321 = scmp.ne.s32.totalorder %s316, %s318
      %p322 = scmp.eq.s32.totalorder %s30, 0
      %p323 = por %p321, %p322
      %p324 = scmp.ne.s32.totalorder %s316, %s318
      %p325 = scmp.eq.s32.totalorder %s35, 1
      %p326 = por %p324, %p325
      %p327 = scmp.ne.s32.totalorder %s318, %s319
      %p328 = scmp.eq.s32.totalorder %s35, 0
      %p329 = por %p327, %p328
      %p330 = scmp.ne.s32.totalorder %s318, %s319
      %p331 = scmp.eq.s32.totalorder %s36, 1
      %p332 = por %p330, %p331
      %p334 = scmp.ne.s32.totalorder %s319, %s333
      %p335 = scmp.eq.s32.totalorder %s36, 0
      %p336 = por %p334, %p335
      %s338 = sadd.s32 %s337, 1
      %p341 = scmp.eq.s32.totalorder %s30, 1
      %p342 = scmp.ne.s32.totalorder %s337, %s339
      %p343 = scmp.eq.s32.totalorder %s30, 0
      %p344 = por %p342, %p343
      %p345 = scmp.ne.s32.totalorder %s337, %s339
      %p346 = scmp.eq.s32.totalorder %s35, 1
      %p347 = por %p345, %p346
      %p348 = scmp.ne.s32.totalorder %s339, %s340
      %p349 = scmp.eq.s32.totalorder %s35, 0
      %p350 = por %p348, %p349
      %p351 = scmp.ne.s32.totalorder %s339, %s340
      %p352 = scmp.eq.s32.totalorder %s36, 1
      %p353 = por %p351, %p352
      %p355 = scmp.ne.s32.totalorder %s340, %s354
      %p356 = scmp.eq.s32.totalorder %s36, 0
      %p357 = por %p355, %p356
      %s359 = sadd.s32 %s358, 1
      %p362 = scmp.eq.s32.totalorder %s30, 1
      %p363 = scmp.ne.s32.totalorder %s358, %s360
      %p364 = scmp.eq.s32.totalorder %s30, 0
      %p365 = por %p363, %p364
      %p366 = scmp.ne.s32.totalorder %s358, %s360
      %p367 = scmp.eq.s32.totalorder %s35, 1
      %p368 = por %p366, %p367
      %p369 = scmp.ne.s32.totalorder %s360, %s361
      %p370 = scmp.eq.s32.totalorder %s35, 0
      %p371 = por %p369, %p370
      %p372 = scmp.ne.s32.totalorder %s360, %s361
      %p373 = scmp.eq.s32.totalorder %s36, 1
      %p374 = por %p372, %p373
      %p376 = scmp.ne.s32.totalorder %s361, %s375
      %p377 = scmp.eq.s32.totalorder %s36, 0
      %p378 = por %p376, %p377
      %s380 = sadd.s32 %s379, 1
      %p383 = scmp.eq.s32.totalorder %s30, 1
      %p384 = scmp.ne.s32.totalorder %s379, %s381
      %p385 = scmp.eq.s32.totalorder %s30, 0
      %p386 = por %p384, %p385
      %p387 = scmp.ne.s32.totalorder %s379, %s381
      %p388 = scmp.eq.s32.totalorder %s35, 1
      %p389 = por %p387, %p388
      %p390 = scmp.ne.s32.totalorder %s381, %s382
      %p391 = scmp.eq.s32.totalorder %s35, 0
      %p392 = por %p390, %p391
      %p393 = scmp.ne.s32.totalorder %s381, %s382
      %p394 = scmp.eq.s32.totalorder %s36, 1
      %p395 = por %p393, %p394
      %p397 = scmp.ne.s32.totalorder %s382, %s396
      %p398 = scmp.eq.s32.totalorder %s36, 0
      %p399 = por %p397, %p398
      %s401 = sadd.s32 %s400, 1
      %p404 = scmp.eq.s32.totalorder %s30, 1
      %p405 = scmp.ne.s32.totalorder %s400, %s402
      %p406 = scmp.eq.s32.totalorder %s30, 0
      %p407 = por %p405, %p406
      %p408 = scmp.ne.s32.totalorder %s400, %s402
      %p409 = scmp.eq.s32.totalorder %s35, 1
      %p410 = por %p408, %p409
      %p411 = scmp.ne.s32.totalorder %s402, %s403
      %p412 = scmp.eq.s32.totalorder %s35, 0
      %p413 = por %p411, %p412
      %p414 = scmp.ne.s32.totalorder %s402, %s403
      %p415 = scmp.eq.s32.totalorder %s36, 1
      %p416 = por %p414, %p415
      %p418 = scmp.ne.s32.totalorder %s403, %s417
      %p419 = scmp.eq.s32.totalorder %s36, 0
      %p420 = por %p418, %p419
      %s422 = sadd.s32 %s421, 1
      %p425 = scmp.eq.s32.totalorder %s30, 1
      %p426 = scmp.ne.s32.totalorder %s421, %s423
      %p427 = scmp.eq.s32.totalorder %s30, 0
      %p428 = por %p426, %p427
      %p429 = scmp.ne.s32.totalorder %s421, %s423
      %p430 = scmp.eq.s32.totalorder %s35, 1
      %p431 = por %p429, %p430
      %p432 = scmp.ne.s32.totalorder %s423, %s424
      %p433 = scmp.eq.s32.totalorder %s35, 0
      %p434 = por %p432, %p433
      %p435 = scmp.ne.s32.totalorder %s423, %s424
      %p436 = scmp.eq.s32.totalorder %s36, 1
      %p437 = por %p435, %p436
      %p439 = scmp.ne.s32.totalorder %s424, %s438
      %p440 = scmp.eq.s32.totalorder %s36, 0
      %p441 = por %p439, %p440
      %s443 = sadd.s32 %s442, 1
      %p446 = scmp.eq.s32.totalorder %s30, 1
      %p447 = scmp.ne.s32.totalorder %s442, %s444
      %p448 = scmp.eq.s32.totalorder %s30, 0
      %p449 = por %p447, %p448
      %p450 = scmp.ne.s32.totalorder %s442, %s444
      %p451 = scmp.eq.s32.totalorder %s35, 1
      %p452 = por %p450, %p451
      %p453 = scmp.ne.s32.totalorder %s444, %s445
      %p454 = scmp.eq.s32.totalorder %s35, 0
      %p455 = por %p453, %p454
      %p456 = scmp.ne.s32.totalorder %s444, %s445
      %p457 = scmp.eq.s32.totalorder %s36, 1
      %p458 = por %p456, %p457
      %p460 = scmp.ne.s32.totalorder %s445, %s459
      %p461 = scmp.eq.s32.totalorder %s36, 0
      %p462 = por %p460, %p461
      %s464 = sadd.s32 %s463, 1
      %p467 = scmp.eq.s32.totalorder %s30, 1
      %p468 = scmp.ne.s32.totalorder %s463, %s465
      %p469 = scmp.eq.s32.totalorder %s30, 0
      %p470 = por %p468, %p469
      %p471 = scmp.ne.s32.totalorder %s463, %s465
      %p472 = scmp.eq.s32.totalorder %s35, 1
      %p473 = por %p471, %p472
      %p474 = scmp.ne.s32.totalorder %s465, %s466
      %p475 = scmp.eq.s32.totalorder %s35, 0
      %p476 = por %p474, %p475
      %p477 = scmp.ne.s32.totalorder %s465, %s466
      %p478 = scmp.eq.s32.totalorder %s36, 1
      %p479 = por %p477, %p478
      %p481 = scmp.ne.s32.totalorder %s466, %s480
      %p482 = scmp.eq.s32.totalorder %s36, 0
      %p483 = por %p481, %p482
      %s484 = ssub.s32 %s30, %s37
      %p485 = scmp.eq.s32.totalorder %s484, 0
      %s487 = sadd.s32 %s486, 1
      %s488 = scalar_select %p485, %s486, %s487
      %p491 = pneg %p485
      %p492 = scmp.eq.s32.totalorder %s30, 1
      %p493 = por %p491, %p492
      %p494 = scmp.ne.s32.totalorder %s486, %s489
      %p495 = scmp.eq.s32.totalorder %s30, 0
      %p496 = por %p494, %p495
      %p497 = scmp.ne.s32.totalorder %s486, %s489
      %p498 = scmp.eq.s32.totalorder %s35, 1
      %p499 = por %p497, %p498
      %p500 = scmp.ne.s32.totalorder %s489, %s490
      %p501 = scmp.eq.s32.totalorder %s35, 0
      %p502 = por %p500, %p501
      %p503 = scmp.ne.s32.totalorder %s489, %s490
      %p504 = scmp.eq.s32.totalorder %s36, 1
      %p505 = por %p503, %p504
      %p507 = scmp.ne.s32.totalorder %s490, %s506
      %p508 = scmp.eq.s32.totalorder %s36, 0
      %p509 = por %p507, %p508
      %p510 = scmp.le.s32.totalorder 1, %s30
      %p511 = scmp.lt.s32.totalorder %s30, 3
      %p512 = pnand %p510, %p511
      %p513 = pneg %p512
      // Predicated region
      $region9: #{c2psa_forward_pallas.1} parent=5 // pred_check
        _
      $region10: #{c2psa_forward_pallas.1} parent=5 // pred_check_branch
        %515 = sbr.rel (%p512) target = $region12
      $region11: #{c2psa_forward_pallas.1} parent=5 // pred_region
        %s516 = ssub.s32 %s30, 1
        // Predicated region
        $region13: #{c2psa_forward_pallas.1} parent=11 // pred_check
          %p517 = pneg %p77
        $region14: #{c2psa_forward_pallas.1} parent=11 // pred_check_branch
          %519 = sbr.rel (%p517) target = $region16
        $region15: #{c2psa_forward_pallas.1} parent=11 // pred_region
          _
        $region16: #{c2psa_forward_pallas.1} parent=11 // pred_fallthru
          _
        // Predicated region
        $region17: #{c2psa_forward_pallas.1} parent=11 // pred_check
          %p520 = pneg %p98
        $region18: #{c2psa_forward_pallas.1} parent=11 // pred_check_branch
          %522 = sbr.rel (%p520) target = $region20
        $region19: #{c2psa_forward_pallas.1} parent=11 // pred_region
          _
        $region20: #{c2psa_forward_pallas.1} parent=11 // pred_fallthru
          _
        // Predicated region
        $region21: #{c2psa_forward_pallas.1} parent=11 // pred_check
          %p523 = pneg %p119
        $region22: #{c2psa_forward_pallas.1} parent=11 // pred_check_branch
          %525 = sbr.rel (%p523) target = $region24
        $region23: #{c2psa_forward_pallas.1} parent=11 // pred_region
          _
        $region24: #{c2psa_forward_pallas.1} parent=11 // pred_fallthru
          _
        // Predicated region
        $region25: #{c2psa_forward_pallas.1} parent=11 // pred_check
          %p526 = pneg %p140
        $region26: #{c2psa_forward_pallas.1} parent=11 // pred_check_branch
          %528 = sbr.rel (%p526) target = $region28
        $region27: #{c2psa_forward_pallas.1} parent=11 // pred_region
          _
        $region28: #{c2psa_forward_pallas.1} parent=11 // pred_fallthru
          _
        // Predicated region
        $region29: #{c2psa_forward_pallas.1} parent=11 // pred_check
          %p529 = pneg %p161
        $region30: #{c2psa_forward_pallas.1} parent=11 // pred_check_branch
          %531 = sbr.rel (%p529) target = $region32
        $region31: #{c2psa_forward_pallas.1} parent=11 // pred_region
          _
        $region32: #{c2psa_forward_pallas.1} parent=11 // pred_fallthru
          _
        // Predicated region
        $region33: #{c2psa_forward_pallas.1} parent=11 // pred_check
          %p532 = pneg %p182
        $region34: #{c2psa_forward_pallas.1} parent=11 // pred_check_branch
          %534 = sbr.rel (%p532) target = $region36
        $region35: #{c2psa_forward_pallas.1} parent=11 // pred_region
          _
        $region36: #{c2psa_forward_pallas.1} parent=11 // pred_fallthru
          _
        // Predicated region
        $region37: #{c2psa_forward_pallas.1} parent=11 // pred_check
          %p535 = pneg %p203
        $region38: #{c2psa_forward_pallas.1} parent=11 // pred_check_branch
          %537 = sbr.rel (%p535) target = $region40
        $region39: #{c2psa_forward_pallas.1} parent=11 // pred_region
          _
        $region40: #{c2psa_forward_pallas.1} parent=11 // pred_fallthru
          _
        // Predicated region
        $region41: #{c2psa_forward_pallas.1} parent=11 // pred_check
          %p538 = pneg %p224
        $region42: #{c2psa_forward_pallas.1} parent=11 // pred_check_branch
          %540 = sbr.rel (%p538) target = $region44
        $region43: #{c2psa_forward_pallas.1} parent=11 // pred_region
          _
        $region44: #{c2psa_forward_pallas.1} parent=11 // pred_fallthru
          _
        // Predicated region
        $region45: #{c2psa_forward_pallas.1} parent=11 // pred_check
          %p541 = pneg %p245
        $region46: #{c2psa_forward_pallas.1} parent=11 // pred_check_branch
          %543 = sbr.rel (%p541) target = $region48
        $region47: #{c2psa_forward_pallas.1} parent=11 // pred_region
          _
        $region48: #{c2psa_forward_pallas.1} parent=11 // pred_fallthru
          _
        // Predicated region
        $region49: #{c2psa_forward_pallas.1} parent=11 // pred_check
          %p544 = pneg %p266
        $region50: #{c2psa_forward_pallas.1} parent=11 // pred_check_branch
          %546 = sbr.rel (%p544) target = $region52
        $region51: #{c2psa_forward_pallas.1} parent=11 // pred_region
          _
        $region52: #{c2psa_forward_pallas.1} parent=11 // pred_fallthru
          _
        // Predicated region
        $region53: #{c2psa_forward_pallas.1} parent=11 // pred_check
          %p547 = pneg %p287
        $region54: #{c2psa_forward_pallas.1} parent=11 // pred_check_branch
          %549 = sbr.rel (%p547) target = $region56
        $region55: #{c2psa_forward_pallas.1} parent=11 // pred_region
          _
        $region56: #{c2psa_forward_pallas.1} parent=11 // pred_fallthru
          _
        // Predicated region
        $region57: #{c2psa_forward_pallas.1} parent=11 // pred_check
          %p550 = pneg %p308
        $region58: #{c2psa_forward_pallas.1} parent=11 // pred_check_branch
          %552 = sbr.rel (%p550) target = $region60
        $region59: #{c2psa_forward_pallas.1} parent=11 // pred_region
          _
        $region60: #{c2psa_forward_pallas.1} parent=11 // pred_fallthru
          _
        // Predicated region
        $region61: #{c2psa_forward_pallas.1} parent=11 // pred_check
          %p553 = pneg %p329
        $region62: #{c2psa_forward_pallas.1} parent=11 // pred_check_branch
          %555 = sbr.rel (%p553) target = $region64
        $region63: #{c2psa_forward_pallas.1} parent=11 // pred_region
          _
        $region64: #{c2psa_forward_pallas.1} parent=11 // pred_fallthru
          _
        // Predicated region
        $region65: #{c2psa_forward_pallas.1} parent=11 // pred_check
          %p556 = pneg %p350
        $region66: #{c2psa_forward_pallas.1} parent=11 // pred_check_branch
          %558 = sbr.rel (%p556) target = $region68
        $region67: #{c2psa_forward_pallas.1} parent=11 // pred_region
          _
        $region68: #{c2psa_forward_pallas.1} parent=11 // pred_fallthru
          _
        // Predicated region
        $region69: #{c2psa_forward_pallas.1} parent=11 // pred_check
          %p559 = pneg %p371
        $region70: #{c2psa_forward_pallas.1} parent=11 // pred_check_branch
          %561 = sbr.rel (%p559) target = $region72
        $region71: #{c2psa_forward_pallas.1} parent=11 // pred_region
          _
        $region72: #{c2psa_forward_pallas.1} parent=11 // pred_fallthru
          _
        // Predicated region
        $region73: #{c2psa_forward_pallas.1} parent=11 // pred_check
          %p562 = pneg %p392
        $region74: #{c2psa_forward_pallas.1} parent=11 // pred_check_branch
          %564 = sbr.rel (%p562) target = $region76
        $region75: #{c2psa_forward_pallas.1} parent=11 // pred_region
          _
        $region76: #{c2psa_forward_pallas.1} parent=11 // pred_fallthru
          _
        // Predicated region
        $region77: #{c2psa_forward_pallas.1} parent=11 // pred_check
          %p565 = pneg %p413
        $region78: #{c2psa_forward_pallas.1} parent=11 // pred_check_branch
          %567 = sbr.rel (%p565) target = $region80
        $region79: #{c2psa_forward_pallas.1} parent=11 // pred_region
          _
        $region80: #{c2psa_forward_pallas.1} parent=11 // pred_fallthru
          _
        // Predicated region
        $region81: #{c2psa_forward_pallas.1} parent=11 // pred_check
          %p568 = pneg %p434
        $region82: #{c2psa_forward_pallas.1} parent=11 // pred_check_branch
          %570 = sbr.rel (%p568) target = $region84
        $region83: #{c2psa_forward_pallas.1} parent=11 // pred_region
          _
        $region84: #{c2psa_forward_pallas.1} parent=11 // pred_fallthru
          _
        // Predicated region
        $region85: #{c2psa_forward_pallas.1} parent=11 // pred_check
          %p571 = pneg %p455
        $region86: #{c2psa_forward_pallas.1} parent=11 // pred_check_branch
          %573 = sbr.rel (%p571) target = $region88
        $region87: #{c2psa_forward_pallas.1} parent=11 // pred_region
          _
        $region88: #{c2psa_forward_pallas.1} parent=11 // pred_fallthru
          _
        // Predicated region
        $region89: #{c2psa_forward_pallas.1} parent=11 // pred_check
          %p574 = pneg %p476
        $region90: #{c2psa_forward_pallas.1} parent=11 // pred_check_branch
          %576 = sbr.rel (%p574) target = $region92
        $region91: #{c2psa_forward_pallas.1} parent=11 // pred_region
          _
        $region92: #{c2psa_forward_pallas.1} parent=11 // pred_fallthru
          _
      $region12: #{c2psa_forward_pallas.1} parent=5 // pred_fallthru
        _
      %p577 = scmp.lt.s32.totalorder %s30, 2
      // Predicated region
      $region93: #{c2psa_forward_pallas.1} parent=5 // pred_check
        %p578 = pneg %p577
      $region94: #{c2psa_forward_pallas.1} parent=5 // pred_check_branch
        %580 = sbr.rel (%p578) target = $region96
      $region95: #{c2psa_forward_pallas.1} parent=5 // pred_region
        // Predicated region
        $region97: #{c2psa_forward_pallas.1} parent=95 // pred_check
          %p581 = pneg %p50
        $region98: #{c2psa_forward_pallas.1} parent=95 // pred_check_branch
          %583 = sbr.rel (%p581) target = $region100
        $region99: #{c2psa_forward_pallas.1} parent=95 // pred_region
          %s584 = smul.u32 8, %s30
          %p585 = scmp.lt.s32.totalorder %s584, 15
          %s586 = scalar_select %p585, %s584, 15
          %s587 = smul.addr %s586, 8
          %s588 = scalar_lea.vmem %s0, %s587
          %s589 = smul.u32 8, %s30
        $region100: #{c2psa_forward_pallas.1} parent=95 // pred_fallthru
          _
      $region96: #{c2psa_forward_pallas.1} parent=5 // pred_fallthru
        _
      %p590 = scmp.le.s32.totalorder 1, %s30
      %p591 = scmp.lt.s32.totalorder %s30, 3
      %p592 = pnand %p590, %p591
      %p593 = pneg %p592
      // Predicated region
      $region101: #{c2psa_forward_pallas.1} parent=5 // pred_check
        _
      $region102: #{c2psa_forward_pallas.1} parent=5 // pred_check_branch
        %595 = sbr.rel (%p592) target = $region104
      $region103: #{c2psa_forward_pallas.1} parent=5 // pred_region
        %s596 = ssub.s32 %s30, 1
        %s597 = smul.u32 8, %s35
        %p598 = scmp.lt.s32.totalorder %s597, 15
        %s599 = scalar_select %p598, %s597, 15
        %s600 = smul.addr %s599, 8
        %s601 = scalar_lea.vmem %s0, %s600
        %p602 = pneg %p56
        %p603 = pneg %p53
        %p604 = pneg %p77
        %p605 = pneg %p74
        %p606 = pneg %p98
        %p607 = pneg %p95
        %p608 = pneg %p119
        %p609 = pneg %p116
        %p610 = pneg %p140
        %p611 = pneg %p137
        %p612 = pneg %p161
        %p613 = pneg %p158
        %p614 = pneg %p182
        %p615 = pneg %p179
        %p616 = pneg %p203
        %p617 = pneg %p200
        %p618 = pneg %p224
        %p619 = pneg %p221
        %p620 = pneg %p245
        %p621 = pneg %p242
        %p622 = pneg %p266
        %p623 = pneg %p263
        %p624 = pneg %p287
        %p625 = pneg %p284
        %p626 = pneg %p308
        %p627 = pneg %p305
        %p628 = pneg %p329
        %p629 = pneg %p326
        %p630 = pneg %p350
        %p631 = pneg %p347
        %p632 = pneg %p371
        %p633 = pneg %p368
        %p634 = pneg %p392
        %p635 = pneg %p389
        %p636 = pneg %p413
        %p637 = pneg %p410
        %p638 = pneg %p434
        %p639 = pneg %p431
        %p640 = pneg %p455
        %p641 = pneg %p452
        %p642 = pneg %p476
        %p643 = pneg %p473
        %p644 = pneg %p502
        %p645 = pneg %p499
        %s646 = sand.u32 %s489, 1
        %s647 = scalar_lea.sflag [#allocation3], %s646
        %s648 = sand.u32 %s489, 1
        %s649 = smul.addr %s648, 64
        %s650 = scalar_lea.vmem [#allocation2], %s649
        %s651 = smul.u32 8, %s35
        %p652 = scmp.lt.s32.totalorder %s651, 15
        %s653 = scalar_select %p652, %s651, 15
        %s654 = smul.addr %s653, 8
        %s655 = scalar_lea.vmem %s0, %s654
        %s656 = smul.u32 8, %s35
        %s657 = smul.u32 8, %s35
        %v659 = vld [vmem:[%s655] sm:$0xff]
        %v660 = vld [vmem:[%s655 + $0x8] sm:$0xff]
        %v661 = vld [vmem:[%s655 + $0x10] sm:$0xff]
        %v662 = vld [vmem:[%s655 + $0x18] sm:$0xff]
        %v663 = vld [vmem:[%s655 + $0x20] sm:$0xff]
        %v664 = vld [vmem:[%s655 + $0x28] sm:$0xff]
        %v665 = vld [vmem:[%s655 + $0x30] sm:$0xff]
        %v666 = vld [vmem:[%s655 + $0x38] sm:$0xff]
        %v667 = vpack.c.bf16 %v660, %v659
        %v668 = vpack.c.bf16 %v662, %v661
        %v669 = vpack.c.bf16 %v664, %v663
        %v670 = vpack.c.bf16 %v666, %v665
        %v671 = vld [vmem:[%s1] sm:$0xf]
        %v672 = vld [vmem:[%s1 + $0x4] sm:$0xf]
        %v673 = vld [vmem:[%s1 + $0x8] sm:$0xf]
        %v674 = vld [vmem:[%s1 + $0xc] sm:$0xf]
        %v675 = vld [vmem:[%s1 + $0x10] sm:$0xf]
        %v676 = vld [vmem:[%s1 + $0x14] sm:$0xf]
        %v677 = vld [vmem:[%s1 + $0x18] sm:$0xf]
        %v678 = vld [vmem:[%s1 + $0x1c] sm:$0xf]
        %v679 = vld [vmem:[%s1 + $0x20] sm:$0xf]
        %v680 = vld [vmem:[%s1 + $0x24] sm:$0xf]
        %v681 = vld [vmem:[%s1 + $0x28] sm:$0xf]
        %v682 = vld [vmem:[%s1 + $0x2c] sm:$0xf]
        %v683 = vld [vmem:[%s1 + $0x30] sm:$0xf]
        %v684 = vld [vmem:[%s1 + $0x34] sm:$0xf]
        %v685 = vld [vmem:[%s1 + $0x38] sm:$0xf]
        %v686 = vld [vmem:[%s1 + $0x3c] sm:$0xf]
        %v687 = vld [vmem:[%s2] sm:$0x1]
        %v689 = vlaneseq
        %v690 = vshrl.u32 %v689, 7
        %v691 = vsub.s32 0, %v690
        %v692 = vrot.slane %v687, %v691
        %v710 = vunpack.c.l.b16 %v671
        %v711 = vunpack.c.l.b16 %v672
        %v712 = vunpack.c.l.b16 %v673
        %v713 = vunpack.c.l.b16 %v674
        %v714 = vunpack.c.l.b16 %v675
        %v715 = vunpack.c.l.b16 %v676
        %v716 = vunpack.c.l.b16 %v677
        %v717 = vunpack.c.l.b16 %v678
        %v718 = vunpack.c.l.b16 %v679
        %v719 = vunpack.c.l.b16 %v680
        %v720 = vunpack.c.l.b16 %v681
        %v721 = vunpack.c.l.b16 %v682
        %v722 = vunpack.c.l.b16 %v683
        %v723 = vunpack.c.l.b16 %v684
        %v724 = vunpack.c.l.b16 %v685
        %v725 = vunpack.c.l.b16 %v686
        %v726 = vpack.c.b16 %v711, %v710
        %v727 = vpack.c.b16 %v713, %v712
        %v728 = vpack.c.b16 %v715, %v714
        %v729 = vpack.c.b16 %v717, %v716
        %v730 = vpack.c.b16 %v719, %v718
        %v731 = vpack.c.b16 %v721, %v720
        %v732 = vpack.c.b16 %v723, %v722
        %v733 = vpack.c.b16 %v725, %v724
        %742 = vmatprep.subr.bf16.mxu0 0
        %743 = vmatpush1.bf16.msra.mxu0 %v726
        %744 = vmatprep.subr.bf16.mxu0 0
        %745 = vmatpush1.bf16.msra.mxu0 %v727
        %746 = vmatprep.subr.bf16.mxu0 0
        %747 = vmatpush1.bf16.msra.mxu0 %v728
        %748 = vmatprep.subr.bf16.mxu0 0
        %749 = vmatpush1.bf16.msra.mxu0 %v729
        %750 = vmatprep.subr.bf16.mxu0 0
        %751 = vmatpush1.bf16.msra.mxu0 %v730
        %752 = vmatprep.subr.bf16.mxu0 0
        %753 = vmatpush1.bf16.msra.mxu0 %v731
        %754 = vmatprep.subr.bf16.mxu0 0
        %755 = vmatpush1.bf16.msra.mxu0 %v732
        %756 = vmatprep.subr.bf16.mxu0 0
        %757 = vmatpush1.bf16.msra.mxu0 %v733
        %758 = vmatprep.subr.bf16.mxu0 0
        %759 = vmatpush1.bf16.msra.mxu0 0
        %760 = vmatprep.subr.bf16.mxu0 0
        %761 = vmatpush1.bf16.msra.mxu0 0
        %762 = vmatprep.subr.bf16.mxu0 0
        %763 = vmatpush1.bf16.msra.mxu0 0
        %764 = vmatprep.subr.bf16.mxu0 0
        %765 = vmatpush1.bf16.msra.mxu0 0
        %766 = vmatprep.subr.bf16.mxu0 0
        %767 = vmatpush1.bf16.msra.mxu0 0
        %768 = vmatprep.subr.bf16.mxu0 0
        %769 = vmatpush1.bf16.msra.mxu0 0
        %770 = vmatprep.subr.bf16.mxu0 0
        %771 = vmatpush1.bf16.msra.mxu0 0
        %772 = vmatprep.subr.bf16.mxu0 0
        %773 = vmatpush1.bf16.msra.mxu0 0
        %774 = vmatprep.mubr.bf16.mxu0 0
        %775 = vmatmul.mubr.bf16.gmra.mrb[0].mxu0 %v667
        %v776 = vpop.f32.mrb[0].mxu0
        %v777 = vadd.f32 %v692, %v776
        %v778 = vpop.f32.mrb[0].mxu0
        %v779 = vpop.f32.mrb[0].mxu0
        %v780 = vadd.f32 %v692, %v779
        %v781 = vpop.f32.mrb[0].mxu0
        %782 = vmatprep.mubr.bf16.mxu0 0
        %783 = vmatmul.mubr.bf16.gmra.mrb[0].mxu0 %v668
        %v784 = vpop.f32.mrb[0].mxu0
        %v785 = vadd.f32 %v692, %v784
        %v786 = vpop.f32.mrb[0].mxu0
        %v787 = vpop.f32.mrb[0].mxu0
        %v788 = vadd.f32 %v692, %v787
        %v789 = vpop.f32.mrb[0].mxu0
        %790 = vmatprep.mubr.bf16.mxu0 0
        %791 = vmatmul.mubr.bf16.gmra.mrb[0].mxu0 %v669
        %v792 = vpop.f32.mrb[0].mxu0
        %v793 = vadd.f32 %v692, %v792
        %v794 = vpop.f32.mrb[0].mxu0
        %v795 = vpop.f32.mrb[0].mxu0
        %v796 = vadd.f32 %v692, %v795
        %v797 = vpop.f32.mrb[0].mxu0
        %798 = vmatprep.mubr.bf16.mxu0 0
        %799 = vmatmul.mubr.bf16.gmra.mrb[0].mxu0 %v670
        %v800 = vpop.f32.mrb[0].mxu0
        %v801 = vadd.f32 %v692, %v800
        %v802 = vpop.f32.mrb[0].mxu0
        %v803 = vpop.f32.mrb[0].mxu0
        %v804 = vadd.f32 %v692, %v803
        %v805 = vpop.f32.mrb[0].mxu0
        %806 = vdwg.mxu0
        %v807 = vxor.u32 %v777, 2147483648
        %v808 = vxor.u32 %v780, 2147483648
        %v809 = vxor.u32 %v785, 2147483648
        %v810 = vxor.u32 %v788, 2147483648
        %v811 = vxor.u32 %v793, 2147483648
        %v812 = vxor.u32 %v796, 2147483648
        %v813 = vxor.u32 %v801, 2147483648
        %v814 = vxor.u32 %v804, 2147483648
        %v815 = vmul.f32 %v807, 1.442695
        %v816 = vpow.pop %v815
        %v817 = vmul.f32 %v808, 1.442695
        %v818 = vpow.pop %v817
        %v819 = vmul.f32 %v809, 1.442695
        %v820 = vpow.pop %v819
        %v821 = vmul.f32 %v810, 1.442695
        %v822 = vpow.pop %v821
        %v823 = vmul.f32 %v811, 1.442695
        %v824 = vpow.pop %v823
        %v825 = vmul.f32 %v812, 1.442695
        %v826 = vpow.pop %v825
        %v827 = vmul.f32 %v813, 1.442695
        %v828 = vpow.pop %v827
        %v829 = vmul.f32 %v814, 1.442695
        %v830 = vpow.pop %v829
        %v831 = vadd.f32 %v816, 1.0
        %v832 = vadd.f32 %v818, 1.0
        %v833 = vadd.f32 %v820, 1.0
        %v834 = vadd.f32 %v822, 1.0
        %v835 = vadd.f32 %v824, 1.0
        %v836 = vadd.f32 %v826, 1.0
        %v837 = vadd.f32 %v828, 1.0
        %v838 = vadd.f32 %v830, 1.0
        %v839 = vrcp.pop %v831
        %v840 = vmul.f32 1.0, %v839
        %v841 = vrcp.pop %v832
        %v842 = vmul.f32 1.0, %v841
        %v843 = vrcp.pop %v833
        %v844 = vmul.f32 1.0, %v843
        %v845 = vrcp.pop %v834
        %v846 = vmul.f32 1.0, %v845
        %v847 = vrcp.pop %v835
        %v848 = vmul.f32 1.0, %v847
        %v849 = vrcp.pop %v836
        %v850 = vmul.f32 1.0, %v849
        %v851 = vrcp.pop %v837
        %v852 = vmul.f32 1.0, %v851
        %v853 = vrcp.pop %v838
        %v854 = vmul.f32 1.0, %v853
        %v855 = vmul.f32 %v777, %v840
        %v856 = vmul.f32 %v780, %v842
        %v857 = vmul.f32 %v785, %v844
        %v858 = vmul.f32 %v788, %v846
        %v859 = vmul.f32 %v793, %v848
        %v860 = vmul.f32 %v796, %v850
        %v861 = vmul.f32 %v801, %v852
        %v862 = vmul.f32 %v804, %v854
        %v863 = vpack.c.bf16 %v856, %v855
        %v864 = vpack.c.bf16 %v858, %v857
        %v865 = vpack.c.bf16 %v860, %v859
        %v866 = vpack.c.bf16 %v862, %v861
        %v867 = vld [vmem:[%s3] sm:$0xf]
        %v868 = vld [vmem:[%s3 + $0x4] sm:$0xf]
        %v869 = vld [vmem:[%s3 + $0x8] sm:$0xf]
        %v870 = vld [vmem:[%s3 + $0xc] sm:$0xf]
        %v871 = vld [vmem:[%s3 + $0x10] sm:$0xf]
        %v872 = vld [vmem:[%s3 + $0x14] sm:$0xf]
        %v873 = vld [vmem:[%s3 + $0x18] sm:$0xf]
        %v874 = vld [vmem:[%s3 + $0x1c] sm:$0xf]
        %v875 = vld [vmem:[%s3 + $0x20] sm:$0xf]
        %v876 = vld [vmem:[%s3 + $0x24] sm:$0xf]
        %v877 = vld [vmem:[%s3 + $0x28] sm:$0xf]
        %v878 = vld [vmem:[%s3 + $0x2c] sm:$0xf]
        %v879 = vld [vmem:[%s3 + $0x30] sm:$0xf]
        %v880 = vld [vmem:[%s3 + $0x34] sm:$0xf]
        %v881 = vld [vmem:[%s3 + $0x38] sm:$0xf]
        %v882 = vld [vmem:[%s3 + $0x3c] sm:$0xf]
        %v883 = vld [vmem:[%s4] sm:$0x1]
        %v885 = vlaneseq
        %v886 = vshrl.u32 %v885, 7
        %v887 = vsub.s32 0, %v886
        %v888 = vrot.slane %v883, %v887
        %v906 = vunpack.c.l.b16 %v867
        %v907 = vunpack.c.l.b16 %v868
        %v908 = vunpack.c.l.b16 %v869
        %v909 = vunpack.c.l.b16 %v870
        %v910 = vunpack.c.l.b16 %v871
        %v911 = vunpack.c.l.b16 %v872
        %v912 = vunpack.c.l.b16 %v873
        %v913 = vunpack.c.l.b16 %v874
        %v914 = vunpack.c.l.b16 %v875
        %v915 = vunpack.c.l.b16 %v876
        %v916 = vunpack.c.l.b16 %v877
        %v917 = vunpack.c.l.b16 %v878
        %v918 = vunpack.c.l.b16 %v879
        %v919 = vunpack.c.l.b16 %v880
        %v920 = vunpack.c.l.b16 %v881
        %v921 = vunpack.c.l.b16 %v882
        %v922 = vpack.c.b16 %v907, %v906
        %v923 = vpack.c.b16 %v909, %v908
        %v924 = vpack.c.b16 %v911, %v910
        %v925 = vpack.c.b16 %v913, %v912
        %v926 = vpack.c.b16 %v915, %v914
        %v927 = vpack.c.b16 %v917, %v916
        %v928 = vpack.c.b16 %v919, %v918
        %v929 = vpack.c.b16 %v921, %v920
        %938 = vmatprep.subr.bf16.mxu0 0
        %939 = vmatpush1.bf16.msra.mxu0 %v922
        %940 = vmatprep.subr.bf16.mxu0 0
        %941 = vmatpush1.bf16.msra.mxu0 %v923
        %942 = vmatprep.subr.bf16.mxu0 0
        %943 = vmatpush1.bf16.msra.mxu0 %v924
        %944 = vmatprep.subr.bf16.mxu0 0
        %945 = vmatpush1.bf16.msra.mxu0 %v925
        %946 = vmatprep.subr.bf16.mxu0 0
        %947 = vmatpush1.bf16.msra.mxu0 %v926
        %948 = vmatprep.subr.bf16.mxu0 0
        %949 = vmatpush1.bf16.msra.mxu0 %v927
        %950 = vmatprep.subr.bf16.mxu0 0
        %951 = vmatpush1.bf16.msra.mxu0 %v928
        %952 = vmatprep.subr.bf16.mxu0 0
        %953 = vmatpush1.bf16.msra.mxu0 %v929
        %954 = vmatprep.subr.bf16.mxu0 0
        %955 = vmatpush1.bf16.msra.mxu0 0
        %956 = vmatprep.subr.bf16.mxu0 0
        %957 = vmatpush1.bf16.msra.mxu0 0
        %958 = vmatprep.subr.bf16.mxu0 0
        %959 = vmatpush1.bf16.msra.mxu0 0
        %960 = vmatprep.subr.bf16.mxu0 0
        %961 = vmatpush1.bf16.msra.mxu0 0
        %962 = vmatprep.subr.bf16.mxu0 0
        %963 = vmatpush1.bf16.msra.mxu0 0
        %964 = vmatprep.subr.bf16.mxu0 0
        %965 = vmatpush1.bf16.msra.mxu0 0
        %966 = vmatprep.subr.bf16.mxu0 0
        %967 = vmatpush1.bf16.msra.mxu0 0
        %968 = vmatprep.subr.bf16.mxu0 0
        %969 = vmatpush1.bf16.msra.mxu0 0
        %970 = vmatprep.mubr.bf16.mxu0 0
        %971 = vmatmul.mubr.bf16.gmra.mrb[0].mxu0 %v667
        %v972 = vpop.f32.mrb[0].mxu0
        %v973 = vadd.f32 %v888, %v972
        %v974 = vpop.f32.mrb[0].mxu0
        %v975 = vpop.f32.mrb[0].mxu0
        %v976 = vadd.f32 %v888, %v975
        %v977 = vpop.f32.mrb[0].mxu0
        %978 = vmatprep.mubr.bf16.mxu0 0
        %979 = vmatmul.mubr.bf16.gmra.mrb[0].mxu0 %v668
        %v980 = vpop.f32.mrb[0].mxu0
        %v981 = vadd.f32 %v888, %v980
        %v982 = vpop.f32.mrb[0].mxu0
        %v983 = vpop.f32.mrb[0].mxu0
        %v984 = vadd.f32 %v888, %v983
        %v985 = vpop.f32.mrb[0].mxu0
        %986 = vmatprep.mubr.bf16.mxu0 0
        %987 = vmatmul.mubr.bf16.gmra.mrb[0].mxu0 %v669
        %v988 = vpop.f32.mrb[0].mxu0
        %v989 = vadd.f32 %v888, %v988
        %v990 = vpop.f32.mrb[0].mxu0
        %v991 = vpop.f32.mrb[0].mxu0
        %v992 = vadd.f32 %v888, %v991
        %v993 = vpop.f32.mrb[0].mxu0
        %994 = vmatprep.mubr.bf16.mxu0 0
        %995 = vmatmul.mubr.bf16.gmra.mrb[0].mxu0 %v670
        %v996 = vpop.f32.mrb[0].mxu0
        %v997 = vadd.f32 %v888, %v996
        %v998 = vpop.f32.mrb[0].mxu0
        %v999 = vpop.f32.mrb[0].mxu0
        %v1000 = vadd.f32 %v888, %v999
        %v1001 = vpop.f32.mrb[0].mxu0
        %1002 = vdwg.mxu0
        %v1003 = vxor.u32 %v973, 2147483648
        %v1004 = vxor.u32 %v976, 2147483648
        %v1005 = vxor.u32 %v981, 2147483648
        %v1006 = vxor.u32 %v984, 2147483648
        %v1007 = vxor.u32 %v989, 2147483648
        %v1008 = vxor.u32 %v992, 2147483648
        %v1009 = vxor.u32 %v997, 2147483648
        %v1010 = vxor.u32 %v1000, 2147483648
        %v1011 = vmul.f32 %v1003, 1.442695
        %v1012 = vpow.pop %v1011
        %v1013 = vmul.f32 %v1004, 1.442695
        %v1014 = vpow.pop %v1013
        %v1015 = vmul.f32 %v1005, 1.442695
        %v1016 = vpow.pop %v1015
        %v1017 = vmul.f32 %v1006, 1.442695
        %v1018 = vpow.pop %v1017
        %v1019 = vmul.f32 %v1007, 1.442695
        %v1020 = vpow.pop %v1019
        %v1021 = vmul.f32 %v1008, 1.442695
        %v1022 = vpow.pop %v1021
        %v1023 = vmul.f32 %v1009, 1.442695
        %v1024 = vpow.pop %v1023
        %v1025 = vmul.f32 %v1010, 1.442695
        %v1026 = vpow.pop %v1025
        %v1027 = vadd.f32 %v1012, 1.0
        %v1028 = vadd.f32 %v1014, 1.0
        %v1029 = vadd.f32 %v1016, 1.0
        %v1030 = vadd.f32 %v1018, 1.0
        %v1031 = vadd.f32 %v1020, 1.0
        %v1032 = vadd.f32 %v1022, 1.0
        %v1033 = vadd.f32 %v1024, 1.0
        %v1034 = vadd.f32 %v1026, 1.0
        %v1035 = vrcp.pop %v1027
        %v1036 = vmul.f32 1.0, %v1035
        %v1037 = vrcp.pop %v1028
        %v1038 = vmul.f32 1.0, %v1037
        %v1039 = vrcp.pop %v1029
        %v1040 = vmul.f32 1.0, %v1039
        %v1041 = vrcp.pop %v1030
        %v1042 = vmul.f32 1.0, %v1041
        %v1043 = vrcp.pop %v1031
        %v1044 = vmul.f32 1.0, %v1043
        %v1045 = vrcp.pop %v1032
        %v1046 = vmul.f32 1.0, %v1045
        %v1047 = vrcp.pop %v1033
        %v1048 = vmul.f32 1.0, %v1047
        %v1049 = vrcp.pop %v1034
        %v1050 = vmul.f32 1.0, %v1049
        %v1051 = vmul.f32 %v973, %v1036
        %v1052 = vmul.f32 %v976, %v1038
        %v1053 = vmul.f32 %v981, %v1040
        %v1054 = vmul.f32 %v984, %v1042
        %v1055 = vmul.f32 %v989, %v1044
        %v1056 = vmul.f32 %v992, %v1046
        %v1057 = vmul.f32 %v997, %v1048
        %v1058 = vmul.f32 %v1000, %v1050
        %v1059 = vpack.c.bf16 %v1052, %v1051
        %v1060 = vpack.c.bf16 %v1054, %v1053
        %v1061 = vpack.c.bf16 %v1056, %v1055
        %v1062 = vpack.c.bf16 %v1058, %v1057
        %v1063 = vld [vmem:[%s16] sm:$0x1]
        %v1065 = vlaneseq
        %v1066 = vshrl.u32 %v1065, 7
        %v1067 = vsub.s32 0, %v1066
        %v1068 = vrot.slane %v1063, %v1067
        %v1070 = vadd.f32 %v1068, 0.0
        %v1071 = vld [vmem:[%s8] sm:$0xf]
        %v1072 = vld [vmem:[%s8 + $0x4] sm:$0xf]
        %v1073 = vld [vmem:[%s8 + $0x8] sm:$0xf]
        %v1074 = vld [vmem:[%s8 + $0xc] sm:$0xf]
        %v1075 = vld [vmem:[%s8 + $0x10] sm:$0xf]
        %v1076 = vld [vmem:[%s8 + $0x14] sm:$0xf]
        %v1077 = vld [vmem:[%s8 + $0x18] sm:$0xf]
        %v1078 = vld [vmem:[%s8 + $0x1c] sm:$0xf]
        %v1079 = vld [vmem:[%s9] sm:$0x1]
        %v1081 = vlaneseq
        %v1082 = vshrl.u32 %v1081, 7
        %v1083 = vsub.s32 0, %v1082
        %v1084 = vrot.slane %v1079, %v1083
        %v1094 = vunpack.c.l.b16 %v1071
        %v1095 = vunpack.c.l.b16 %v1072
        %v1096 = vunpack.c.l.b16 %v1073
        %v1097 = vunpack.c.l.b16 %v1074
        %v1098 = vunpack.c.l.b16 %v1075
        %v1099 = vunpack.c.l.b16 %v1076
        %v1100 = vunpack.c.l.b16 %v1077
        %v1101 = vunpack.c.l.b16 %v1078
        %v1102 = vpack.c.b16 %v1095, %v1094
        %v1103 = vpack.c.b16 %v1097, %v1096
        %v1104 = vpack.c.b16 %v1099, %v1098
        %v1105 = vpack.c.b16 %v1101, %v1100
        %vm1110 = vcmask 523264
        %v1112 = vsel %vm1110, %v1059, 0
        %v1115 = vsel %vm1110, %v1060, 0
        %v1118 = vsel %vm1110, %v1061, 0
        %v1121 = vsel %vm1110, %v1062, 0
        %1123 = vmatprep.subr.bf16.mxu0 0
        %1124 = vmatpush1.bf16.msra.mxu0 %v1102
        %1125 = vmatprep.subr.bf16.mxu0 0
        %1126 = vmatpush1.bf16.msra.mxu0 %v1103
        %1127 = vmatprep.subr.bf16.mxu0 0
        %1128 = vmatpush1.bf16.msra.mxu0 %v1104
        %1129 = vmatprep.subr.bf16.mxu0 0
        %1130 = vmatpush1.bf16.msra.mxu0 %v1105
        %1131 = vmatprep.subr.bf16.mxu0 0
        %1132 = vmatpush1.bf16.msra.mxu0 0
        %1133 = vmatprep.subr.bf16.mxu0 0
        %1134 = vmatpush1.bf16.msra.mxu0 0
        %1135 = vmatprep.subr.bf16.mxu0 0
        %1136 = vmatpush1.bf16.msra.mxu0 0
        %1137 = vmatprep.subr.bf16.mxu0 0
        %1138 = vmatpush1.bf16.msra.mxu0 0
        %1139 = vmatprep.subr.bf16.mxu0 0
        %1140 = vmatpush1.bf16.msra.mxu0 0
        %1141 = vmatprep.subr.bf16.mxu0 0
        %1142 = vmatpush1.bf16.msra.mxu0 0
        %1143 = vmatprep.subr.bf16.mxu0 0
        %1144 = vmatpush1.bf16.msra.mxu0 0
        %1145 = vmatprep.subr.bf16.mxu0 0
        %1146 = vmatpush1.bf16.msra.mxu0 0
        %1147 = vmatprep.subr.bf16.mxu0 0
        %1148 = vmatpush1.bf16.msra.mxu0 0
        %1149 = vmatprep.subr.bf16.mxu0 0
        %1150 = vmatpush1.bf16.msra.mxu0 0
        %1151 = vmatprep.subr.bf16.mxu0 0
        %1152 = vmatpush1.bf16.msra.mxu0 0
        %1153 = vmatprep.subr.bf16.mxu0 0
        %1154 = vmatpush1.bf16.msra.mxu0 0
        %1155 = vmatprep.mubr.bf16.mxu0 0
        %1156 = vmatmul.mubr.bf16.gmra.mrb[0].mxu0 %v1112
        %v1157 = vpop.f32.mrb[0].mxu0
        %v1158 = vadd.f32 %v1084, %v1157
        %v1159 = vpop.f32.mrb[0].mxu0
        %v1160 = vpop.f32.mrb[0].mxu0
        %v1161 = vadd.f32 %v1084, %v1160
        %v1162 = vpop.f32.mrb[0].mxu0
        %1163 = vmatprep.mubr.bf16.mxu0 0
        %1164 = vmatmul.mubr.bf16.gmra.mrb[0].mxu0 %v1115
        %v1165 = vpop.f32.mrb[0].mxu0
        %v1166 = vadd.f32 %v1084, %v1165
        %v1167 = vpop.f32.mrb[0].mxu0
        %v1168 = vpop.f32.mrb[0].mxu0
        %v1169 = vadd.f32 %v1084, %v1168
        %v1170 = vpop.f32.mrb[0].mxu0
        %1171 = vmatprep.mubr.bf16.mxu0 0
        %1172 = vmatmul.mubr.bf16.gmra.mrb[0].mxu0 %v1118
        %v1173 = vpop.f32.mrb[0].mxu0
        %v1174 = vadd.f32 %v1084, %v1173
        %v1175 = vpop.f32.mrb[0].mxu0
        %v1176 = vpop.f32.mrb[0].mxu0
        %v1177 = vadd.f32 %v1084, %v1176
        %v1178 = vpop.f32.mrb[0].mxu0
        %1179 = vmatprep.mubr.bf16.mxu0 0
        %1180 = vmatmul.mubr.bf16.gmra.mrb[0].mxu0 %v1121
        %v1181 = vpop.f32.mrb[0].mxu0
        %v1182 = vadd.f32 %v1084, %v1181
        %v1183 = vpop.f32.mrb[0].mxu0
        %v1184 = vpop.f32.mrb[0].mxu0
        %v1185 = vadd.f32 %v1084, %v1184
        %v1186 = vpop.f32.mrb[0].mxu0
        %1187 = vdwg.mxu0
        %v1188 = vld [vmem:[%s10] sm:$0xf]
        %v1189 = vld [vmem:[%s10 + $0x4] sm:$0xf]
        %v1190 = vld [vmem:[%s10 + $0x8] sm:$0xf]
        %v1191 = vld [vmem:[%s10 + $0xc] sm:$0xf]
        %v1192 = vld [vmem:[%s10 + $0x10] sm:$0xf]
        %v1193 = vld [vmem:[%s10 + $0x14] sm:$0xf]
        %v1194 = vld [vmem:[%s10 + $0x18] sm:$0xf]
        %v1195 = vld [vmem:[%s10 + $0x1c] sm:$0xf]
        %v1196 = vld [vmem:[%s11] sm:$0x1]
        %v1198 = vlaneseq
        %v1199 = vshrl.u32 %v1198, 7
        %v1200 = vsub.s32 0, %v1199
        %v1201 = vrot.slane %v1196, %v1200
        %v1211 = vunpack.c.l.b16 %v1188
        %v1212 = vunpack.c.l.b16 %v1189
        %v1213 = vunpack.c.l.b16 %v1190
        %v1214 = vunpack.c.l.b16 %v1191
        %v1215 = vunpack.c.l.b16 %v1192
        %v1216 = vunpack.c.l.b16 %v1193
        %v1217 = vunpack.c.l.b16 %v1194
        %v1218 = vunpack.c.l.b16 %v1195
        %v1219 = vpack.c.b16 %v1212, %v1211
        %v1220 = vpack.c.b16 %v1214, %v1213
        %v1221 = vpack.c.b16 %v1216, %v1215
        %v1222 = vpack.c.b16 %v1218, %v1217
        %1227 = vmatprep.subr.bf16.mxu0 0
        %1228 = vmatpush1.bf16.msra.mxu0 %v1219
        %1229 = vmatprep.subr.bf16.mxu0 0
        %1230 = vmatpush1.bf16.msra.mxu0 %v1220
        %1231 = vmatprep.subr.bf16.mxu0 0
        %1232 = vmatpush1.bf16.msra.mxu0 %v1221
        %1233 = vmatprep.subr.bf16.mxu0 0
        %1234 = vmatpush1.bf16.msra.mxu0 %v1222
        %1235 = vmatprep.subr.bf16.mxu0 0
        %1236 = vmatpush1.bf16.msra.mxu0 0
        %1237 = vmatprep.subr.bf16.mxu0 0
        %1238 = vmatpush1.bf16.msra.mxu0 0
        %1239 = vmatprep.subr.bf16.mxu0 0
        %1240 = vmatpush1.bf16.msra.mxu0 0
        %1241 = vmatprep.subr.bf16.mxu0 0
        %1242 = vmatpush1.bf16.msra.mxu0 0
        %1243 = vmatprep.subr.bf16.mxu0 0
        %1244 = vmatpush1.bf16.msra.mxu0 0
        %1245 = vmatprep.subr.bf16.mxu0 0
        %1246 = vmatpush1.bf16.msra.mxu0 0
        %1247 = vmatprep.subr.bf16.mxu0 0
        %1248 = vmatpush1.bf16.msra.mxu0 0
        %1249 = vmatprep.subr.bf16.mxu0 0
        %1250 = vmatpush1.bf16.msra.mxu0 0
        %1251 = vmatprep.subr.bf16.mxu0 0
        %1252 = vmatpush1.bf16.msra.mxu0 0
        %1253 = vmatprep.subr.bf16.mxu0 0
        %1254 = vmatpush1.bf16.msra.mxu0 0
        %1255 = vmatprep.subr.bf16.mxu0 0
        %1256 = vmatpush1.bf16.msra.mxu0 0
        %1257 = vmatprep.subr.bf16.mxu0 0
        %1258 = vmatpush1.bf16.msra.mxu0 0
        %1259 = vmatprep.mubr.bf16.mxu0 0
        %1260 = vmatmul.mubr.bf16.gmra.mrb[0].mxu0 %v1112
        %v1261 = vpop.f32.mrb[0].mxu0
        %v1262 = vadd.f32 %v1201, %v1261
        %v1263 = vpop.f32.mrb[0].mxu0
        %v1264 = vpop.f32.mrb[0].mxu0
        %v1265 = vadd.f32 %v1201, %v1264
        %v1266 = vpop.f32.mrb[0].mxu0
        %1267 = vmatprep.mubr.bf16.mxu0 0
        %1268 = vmatmul.mubr.bf16.gmra.mrb[0].mxu0 %v1115
        %v1269 = vpop.f32.mrb[0].mxu0
        %v1270 = vadd.f32 %v1201, %v1269
        %v1271 = vpop.f32.mrb[0].mxu0
        %v1272 = vpop.f32.mrb[0].mxu0
        %v1273 = vadd.f32 %v1201, %v1272
        %v1274 = vpop.f32.mrb[0].mxu0
        %1275 = vmatprep.mubr.bf16.mxu0 0
        %1276 = vmatmul.mubr.bf16.gmra.mrb[0].mxu0 %v1118
        %v1277 = vpop.f32.mrb[0].mxu0
        %v1278 = vadd.f32 %v1201, %v1277
        %v1279 = vpop.f32.mrb[0].mxu0
        %v1280 = vpop.f32.mrb[0].mxu0
        %v1281 = vadd.f32 %v1201, %v1280
        %v1282 = vpop.f32.mrb[0].mxu0
        %1283 = vmatprep.mubr.bf16.mxu0 0
        %1284 = vmatmul.mubr.bf16.gmra.mrb[0].mxu0 %v1121
        %v1285 = vpop.f32.mrb[0].mxu0
        %v1286 = vadd.f32 %v1201, %v1285
        %v1287 = vpop.f32.mrb[0].mxu0
        %v1288 = vpop.f32.mrb[0].mxu0
        %v1289 = vadd.f32 %v1201, %v1288
        %v1290 = vpop.f32.mrb[0].mxu0
        %1291 = vdwg.mxu0
        %v1292 = vld [vmem:[%s12] sm:$0xf]
        %v1293 = vld [vmem:[%s12 + $0x4] sm:$0xf]
        %v1294 = vld [vmem:[%s12 + $0x8] sm:$0xf]
        %v1295 = vld [vmem:[%s12 + $0xc] sm:$0xf]
        %v1296 = vld [vmem:[%s12 + $0x10] sm:$0xf]
        %v1297 = vld [vmem:[%s12 + $0x14] sm:$0xf]
        %v1298 = vld [vmem:[%s12 + $0x18] sm:$0xf]
        %v1299 = vld [vmem:[%s12 + $0x1c] sm:$0xf]
        %v1300 = vld [vmem:[%s13] sm:$0x1]
        %v1302 = vlaneseq
        %v1303 = vshrl.u32 %v1302, 7
        %v1304 = vsub.s32 0, %v1303
        %v1305 = vrot.slane %v1300, %v1304
        %v1315 = vunpack.c.l.b16 %v1292
        %v1316 = vunpack.c.l.b16 %v1293
        %v1317 = vunpack.c.l.b16 %v1294
        %v1318 = vunpack.c.l.b16 %v1295
        %v1319 = vunpack.c.l.b16 %v1296
        %v1320 = vunpack.c.l.b16 %v1297
        %v1321 = vunpack.c.l.b16 %v1298
        %v1322 = vunpack.c.l.b16 %v1299
        %v1323 = vpack.c.b16 %v1316, %v1315
        %v1324 = vpack.c.b16 %v1318, %v1317
        %v1325 = vpack.c.b16 %v1320, %v1319
        %v1326 = vpack.c.b16 %v1322, %v1321
        %1331 = vmatprep.subr.bf16.mxu0 0
        %1332 = vmatpush1.bf16.msra.mxu0 %v1323
        %1333 = vmatprep.subr.bf16.mxu0 0
        %1334 = vmatpush1.bf16.msra.mxu0 %v1324
        %1335 = vmatprep.subr.bf16.mxu0 0
        %1336 = vmatpush1.bf16.msra.mxu0 %v1325
        %1337 = vmatprep.subr.bf16.mxu0 0
        %1338 = vmatpush1.bf16.msra.mxu0 %v1326
        %1339 = vmatprep.subr.bf16.mxu0 0
        %1340 = vmatpush1.bf16.msra.mxu0 0
        %1341 = vmatprep.subr.bf16.mxu0 0
        %1342 = vmatpush1.bf16.msra.mxu0 0
        %1343 = vmatprep.subr.bf16.mxu0 0
        %1344 = vmatpush1.bf16.msra.mxu0 0
        %1345 = vmatprep.subr.bf16.mxu0 0
        %1346 = vmatpush1.bf16.msra.mxu0 0
        %1347 = vmatprep.subr.bf16.mxu0 0
        %1348 = vmatpush1.bf16.msra.mxu0 0
        %1349 = vmatprep.subr.bf16.mxu0 0
        %1350 = vmatpush1.bf16.msra.mxu0 0
        %1351 = vmatprep.subr.bf16.mxu0 0
        %1352 = vmatpush1.bf16.msra.mxu0 0
        %1353 = vmatprep.subr.bf16.mxu0 0
        %1354 = vmatpush1.bf16.msra.mxu0 0
        %1355 = vmatprep.subr.bf16.mxu0 0
        %1356 = vmatpush1.bf16.msra.mxu0 0
        %1357 = vmatprep.subr.bf16.mxu0 0
        %1358 = vmatpush1.bf16.msra.mxu0 0
        %1359 = vmatprep.subr.bf16.mxu0 0
        %1360 = vmatpush1.bf16.msra.mxu0 0
        %1361 = vmatprep.subr.bf16.mxu0 0
        %1362 = vmatpush1.bf16.msra.mxu0 0
        %1363 = vmatprep.mubr.bf16.mxu0 0
        %1364 = vmatmul.mubr.bf16.gmra.mrb[0].mxu0 %v1112
        %v1365 = vpop.f32.mrb[0].mxu0
        %v1366 = vadd.f32 %v1305, %v1365
        %v1367 = vpop.f32.mrb[0].mxu0
        %v1368 = vpop.f32.mrb[0].mxu0
        %v1369 = vadd.f32 %v1305, %v1368
        %v1370 = vpop.f32.mrb[0].mxu0
        %1371 = vmatprep.mubr.bf16.mxu0 0
        %1372 = vmatmul.mubr.bf16.gmra.mrb[0].mxu0 %v1115
        %v1373 = vpop.f32.mrb[0].mxu0
        %v1374 = vadd.f32 %v1305, %v1373
        %v1375 = vpop.f32.mrb[0].mxu0
        %v1376 = vpop.f32.mrb[0].mxu0
        %v1377 = vadd.f32 %v1305, %v1376
        %v1378 = vpop.f32.mrb[0].mxu0
        %1379 = vmatprep.mubr.bf16.mxu0 0
        %1380 = vmatmul.mubr.bf16.gmra.mrb[0].mxu0 %v1118
        %v1381 = vpop.f32.mrb[0].mxu0
        %v1382 = vadd.f32 %v1305, %v1381
        %v1383 = vpop.f32.mrb[0].mxu0
        %v1384 = vpop.f32.mrb[0].mxu0
        %v1385 = vadd.f32 %v1305, %v1384
        %v1386 = vpop.f32.mrb[0].mxu0
        %1387 = vmatprep.mubr.bf16.mxu0 0
        %1388 = vmatmul.mubr.bf16.gmra.mrb[0].mxu0 %v1121
        %v1389 = vpop.f32.mrb[0].mxu0
        %v1390 = vadd.f32 %v1305, %v1389
        %v1391 = vpop.f32.mrb[0].mxu0
        %v1392 = vpop.f32.mrb[0].mxu0
        %v1393 = vadd.f32 %v1305, %v1392
        %v1394 = vpop.f32.mrb[0].mxu0
        %1395 = vdwg.mxu0
        %v1396 = vpack.c.bf16 %v1161, %v1158
        %v1397 = vpack.c.bf16 %v1169, %v1166
        %v1398 = vpack.c.bf16 %v1177, %v1174
        %v1399 = vpack.c.bf16 %v1185, %v1182
        %v1400 = vpack.c.bf16 %v1265, %v1262
        %v1401 = vpack.c.bf16 %v1273, %v1270
        %v1402 = vpack.c.bf16 %v1281, %v1278
        %v1403 = vpack.c.bf16 %v1289, %v1286
        %vm1404 = vcmask 261120
        %v1406 = vsel %vm1404, %v1396, 0
        %v1409 = vsel %vm1404, %v1397, 0
        %v1412 = vsel %vm1404, %v1398, 0
        %v1415 = vsel %vm1404, %v1399, 0
        %v1418 = vsel %vm1404, %v1400, 0
        %v1421 = vsel %vm1404, %v1401, 0
        %v1424 = vsel %vm1404, %v1402, 0
        %v1427 = vsel %vm1404, %v1403, 0
        %1429 = vmatprep.subr.bf16.mxu0 0
        %1430 = vmatpush1.bf16.xpose.msra.mxu0 %v1418
        %1431 = vmatprep.subr.bf16.mxu0 0
        %1432 = vmatpush1.bf16.xpose.msra.mxu0 %v1421
        %1433 = vmatprep.subr.bf16.mxu0 0
        %1434 = vmatpush1.bf16.xpose.msra.mxu0 %v1424
        %1435 = vmatprep.subr.bf16.mxu0 0
        %1436 = vmatpush1.bf16.xpose.msra.mxu0 %v1427
        %1437 = vmatprep.subr.bf16.mxu0 0
        %1438 = vmatpush1.bf16.xpose.msra.mxu0 0
        %1439 = vmatprep.subr.bf16.mxu0 0
        %1440 = vmatpush1.bf16.xpose.msra.mxu0 0
        %1441 = vmatprep.subr.bf16.mxu0 0
        %1442 = vmatpush1.bf16.xpose.msra.mxu0 0
        %1443 = vmatprep.subr.bf16.mxu0 0
        %1444 = vmatpush1.bf16.xpose.msra.mxu0 0
        %1445 = vmatprep.subr.bf16.mxu0 0
        %1446 = vmatpush1.bf16.xpose.msra.mxu0 0
        %1447 = vmatprep.subr.bf16.mxu0 0
        %1448 = vmatpush1.bf16.xpose.msra.mxu0 0
        %1449 = vmatprep.subr.bf16.mxu0 0
        %1450 = vmatpush1.bf16.xpose.msra.mxu0 0
        %1451 = vmatprep.subr.bf16.mxu0 0
        %1452 = vmatpush1.bf16.xpose.msra.mxu0 0
        %1453 = vmatprep.subr.bf16.mxu0 0
        %1454 = vmatpush1.bf16.xpose.msra.mxu0 0
        %1455 = vmatprep.subr.bf16.mxu0 0
        %1456 = vmatpush1.bf16.xpose.msra.mxu0 0
        %1457 = vmatprep.subr.bf16.mxu0 0
        %1458 = vmatpush1.bf16.xpose.msra.mxu0 0
        %1459 = vmatprep.subr.bf16.mxu0 0
        %1460 = vmatpush1.bf16.xpose.msra.mxu0 0
        %1461 = vmatprep.mubr.bf16.mxu0 0
        %1462 = vmatmul.mubr.bf16.gmra.mrb[0].mxu0 %v1406
        %v1463 = vpop.f32.mrb[0].mxu0
        %v1464 = vadd.f32 0.0, %v1463
        %v1465 = vpop.f32.mrb[0].mxu0
        %v1466 = vpop.f32.mrb[0].mxu0
        %v1467 = vadd.f32 0.0, %v1466
        %v1468 = vpop.f32.mrb[0].mxu0
        %1469 = vmatprep.mubr.bf16.mxu0 0
        %1470 = vmatmul.mubr.bf16.gmra.mrb[0].mxu0 %v1409
        %v1471 = vpop.f32.mrb[0].mxu0
        %v1472 = vadd.f32 0.0, %v1471
        %v1473 = vpop.f32.mrb[0].mxu0
        %v1474 = vpop.f32.mrb[0].mxu0
        %v1475 = vadd.f32 0.0, %v1474
        %v1476 = vpop.f32.mrb[0].mxu0
        %1477 = vmatprep.mubr.bf16.mxu0 0
        %1478 = vmatmul.mubr.bf16.gmra.mrb[0].mxu0 %v1412
        %v1479 = vpop.f32.mrb[0].mxu0
        %v1480 = vadd.f32 0.0, %v1479
        %v1481 = vpop.f32.mrb[0].mxu0
        %v1482 = vpop.f32.mrb[0].mxu0
        %v1483 = vadd.f32 0.0, %v1482
        %v1484 = vpop.f32.mrb[0].mxu0
        %1485 = vmatprep.mubr.bf16.mxu0 0
        %1486 = vmatmul.mubr.bf16.gmra.mrb[0].mxu0 %v1415
        %v1487 = vpop.f32.mrb[0].mxu0
        %v1488 = vadd.f32 0.0, %v1487
        %v1489 = vpop.f32.mrb[0].mxu0
        %v1490 = vpop.f32.mrb[0].mxu0
        %v1491 = vadd.f32 0.0, %v1490
        %v1492 = vpop.f32.mrb[0].mxu0
        %1493 = vdwg.mxu0
        %v1494 = vsel %vm1110, %v1464, -inf
        %1495 = vmax.xlane.f32.xlu0 %v1494
        %v1496 = vpop.xlane.xlu0 %1495
        %v1497 = vsel %vm1110, %v1467, -inf
        %1498 = vmax.xlane.f32.xlu0 %v1497
        %v1499 = vpop.xlane.xlu0 %1498
        %v1500 = vsel %vm1110, %v1472, -inf
        %1501 = vmax.xlane.f32.xlu0 %v1500
        %v1502 = vpop.xlane.xlu0 %1501
        %v1503 = vsel %vm1110, %v1475, -inf
        %1504 = vmax.xlane.f32.xlu0 %v1503
        %v1505 = vpop.xlane.xlu0 %1504
        %v1506 = vsel %vm1110, %v1480, -inf
        %1507 = vmax.xlane.f32.xlu0 %v1506
        %v1508 = vpop.xlane.xlu0 %1507
        %v1509 = vsel %vm1110, %v1483, -inf
        %1510 = vmax.xlane.f32.xlu0 %v1509
        %v1511 = vpop.xlane.xlu0 %1510
        %v1512 = vsel %vm1110, %v1488, -inf
        %1513 = vmax.xlane.f32.xlu0 %v1512
        %v1514 = vpop.xlane.xlu0 %1513
        %v1515 = vsel %vm1110, %v1491, -inf
        %1516 = vmax.xlane.f32.xlu0 %v1515
        %v1517 = vpop.xlane.xlu0 %1516
        %v1518 = vsub.f32 %v1464, %v1496
        %v1519 = vsub.f32 %v1467, %v1499
        %v1520 = vsub.f32 %v1472, %v1502
        %v1521 = vsub.f32 %v1475, %v1505
        %v1522 = vsub.f32 %v1480, %v1508
        %v1523 = vsub.f32 %v1483, %v1511
        %v1524 = vsub.f32 %v1488, %v1514
        %v1525 = vsub.f32 %v1491, %v1517
        %v1526 = vmul.f32 %v1518, 1.442695
        %v1527 = vpow.pop %v1526
        %v1528 = vmul.f32 %v1519, 1.442695
        %v1529 = vpow.pop %v1528
        %v1530 = vmul.f32 %v1520, 1.442695
        %v1531 = vpow.pop %v1530
        %v1532 = vmul.f32 %v1521, 1.442695
        %v1533 = vpow.pop %v1532
        %v1534 = vmul.f32 %v1522, 1.442695
        %v1535 = vpow.pop %v1534
        %v1536 = vmul.f32 %v1523, 1.442695
        %v1537 = vpow.pop %v1536
        %v1538 = vmul.f32 %v1524, 1.442695
        %v1539 = vpow.pop %v1538
        %v1540 = vmul.f32 %v1525, 1.442695
        %v1541 = vpow.pop %v1540
        %v1542 = vsel %vm1110, %v1527, 0.0
        %1543 = vadd.xlane.f32.xlu0 %v1542
        %v1544 = vpop.xlane.xlu0 %1543
        %v1545 = vsel %vm1110, %v1529, 0.0
        %1546 = vadd.xlane.f32.xlu0 %v1545
        %v1547 = vpop.xlane.xlu0 %1546
        %v1548 = vsel %vm1110, %v1531, 0.0
        %1549 = vadd.xlane.f32.xlu0 %v1548
        %v1550 = vpop.xlane.xlu0 %1549
        %v1551 = vsel %vm1110, %v1533, 0.0
        %1552 = vadd.xlane.f32.xlu0 %v1551
        %v1553 = vpop.xlane.xlu0 %1552
        %v1554 = vsel %vm1110, %v1535, 0.0
        %1555 = vadd.xlane.f32.xlu0 %v1554
        %v1556 = vpop.xlane.xlu0 %1555
        %v1557 = vsel %vm1110, %v1537, 0.0
        %1558 = vadd.xlane.f32.xlu0 %v1557
        %v1559 = vpop.xlane.xlu0 %1558
        %v1560 = vsel %vm1110, %v1539, 0.0
        %1561 = vadd.xlane.f32.xlu0 %v1560
        %v1562 = vpop.xlane.xlu0 %1561
        %v1563 = vsel %vm1110, %v1541, 0.0
        %1564 = vadd.xlane.f32.xlu0 %v1563
        %v1565 = vpop.xlane.xlu0 %1564
        %v1566 = vrcp.pop %v1544
        %v1567 = vrcp.pop %v1547
        %v1568 = vrcp.pop %v1550
        %v1569 = vrcp.pop %v1553
        %v1570 = vrcp.pop %v1556
        %v1571 = vrcp.pop %v1559
        %v1572 = vrcp.pop %v1562
        %v1573 = vrcp.pop %v1565
        %v1574 = vmul.f32 %v1527, %v1566
        %v1575 = vmul.f32 %v1529, %v1567
        %v1576 = vmul.f32 %v1531, %v1568
        %v1577 = vmul.f32 %v1533, %v1569
        %v1578 = vmul.f32 %v1535, %v1570
        %v1579 = vmul.f32 %v1537, %v1571
        %v1580 = vmul.f32 %v1539, %v1572
        %v1581 = vmul.f32 %v1541, %v1573
        %v1582 = vpack.c.bf16 %v1575, %v1574
        %v1583 = vpack.c.bf16 %v1577, %v1576
        %v1584 = vpack.c.bf16 %v1579, %v1578
        %v1585 = vpack.c.bf16 %v1581, %v1580
        %v1586 = vpack.c.bf16 %v1369, %v1366
        %v1587 = vpack.c.bf16 %v1377, %v1374
        %v1588 = vpack.c.bf16 %v1385, %v1382
        %v1589 = vpack.c.bf16 %v1393, %v1390
        %vm1592 = vcmask 1040384
        %v1593 = vrot.slane %v1390, 7
        %v1594 = vrot.slane %v1393, 7
        %v1595 = vsel %vm1592, %v1593, %v1594
        %v1604 = vrot.slane %v1366, 7
        %v1605 = vrot.slane %v1369, 7
        %v1606 = vsel %vm1592, %v1604, %v1605
        %v1607 = vrot.slane %v1374, 7
        %v1608 = vsel %vm1592, %v1605, %v1607
        %v1609 = vrot.slane %v1377, 7
        %v1610 = vsel %vm1592, %v1607, %v1609
        %v1611 = vrot.slane %v1382, 7
        %v1612 = vsel %vm1592, %v1609, %v1611
        %v1613 = vrot.slane %v1385, 7
        %v1614 = vsel %vm1592, %v1611, %v1613
        %v1615 = vsel %vm1592, %v1613, %v1593
        %v1623 = vsel %vm1592, %v1594, %v1604
        %v1624 = vld [vmem:[%s15] sm:$0xff]
        %v1625 = vld [vmem:[%s15 + $0x8] sm:$0xff]
        %v1626 = vld [vmem:[%s15 + $0x10] sm:$0xff]
        %v1627 = vld [vmem:[%s15 + $0x18] sm:$0xff]
        %v1628 = vld [vmem:[%s15 + $0x20] sm:$0xff]
        %v1629 = vld [vmem:[%s15 + $0x28] sm:$0xff]
        %v1630 = vld [vmem:[%s15 + $0x30] sm:$0xff]
        %v1631 = vld [vmem:[%s15 + $0x38] sm:$0xff]
        %v1632 = vmul.f32 %v1595, %v1624
        %v1633 = vmul.f32 %v1623, %v1625
        %v1634 = vmul.f32 %v1606, %v1626
        %v1635 = vmul.f32 %v1608, %v1627
        %v1636 = vmul.f32 %v1610, %v1628
        %v1637 = vmul.f32 %v1612, %v1629
        %v1638 = vmul.f32 %v1614, %v1630
        %v1639 = vmul.f32 %v1615, %v1631
        %v1641 = vsel %vm1110, %v1582, 0
        %v1644 = vsel %vm1110, %v1583, 0
        %v1647 = vsel %vm1110, %v1584, 0
        %v1650 = vsel %vm1110, %v1585, 0
        %1652 = vmatprep.subr.bf16.mxu0 0
        %1653 = vmatpush1.bf16.msra.mxu0 %v1586
        %1654 = vmatprep.subr.bf16.mxu0 0
        %1655 = vmatpush1.bf16.msra.mxu0 %v1587
        %1656 = vmatprep.subr.bf16.mxu0 0
        %1657 = vmatpush1.bf16.msra.mxu0 %v1588
        %1658 = vmatprep.subr.bf16.mxu0 0
        %1659 = vmatpush1.bf16.msra.mxu0 %v1589
        %1660 = vmatprep.subr.bf16.mxu0 0
        %1661 = vmatpush1.bf16.msra.mxu0 0
        %1662 = vmatprep.subr.bf16.mxu0 0
        %1663 = vmatpush1.bf16.msra.mxu0 0
        %1664 = vmatprep.subr.bf16.mxu0 0
        %1665 = vmatpush1.bf16.msra.mxu0 0
        %1666 = vmatprep.subr.bf16.mxu0 0
        %1667 = vmatpush1.bf16.msra.mxu0 0
        %1668 = vmatprep.subr.bf16.mxu0 0
        %1669 = vmatpush1.bf16.msra.mxu0 0
        %1670 = vmatprep.subr.bf16.mxu0 0
        %1671 = vmatpush1.bf16.msra.mxu0 0
        %1672 = vmatprep.subr.bf16.mxu0 0
        %1673 = vmatpush1.bf16.msra.mxu0 0
        %1674 = vmatprep.subr.bf16.mxu0 0
        %1675 = vmatpush1.bf16.msra.mxu0 0
        %1676 = vmatprep.subr.bf16.mxu0 0
        %1677 = vmatpush1.bf16.msra.mxu0 0
        %1678 = vmatprep.subr.bf16.mxu0 0
        %1679 = vmatpush1.bf16.msra.mxu0 0
        %1680 = vmatprep.subr.bf16.mxu0 0
        %1681 = vmatpush1.bf16.msra.mxu0 0
        %1682 = vmatprep.subr.bf16.mxu0 0
        %1683 = vmatpush1.bf16.msra.mxu0 0
        %1684 = vmatprep.mubr.bf16.mxu0 0
        %1685 = vmatmul.mubr.bf16.gmra.mrb[0].mxu0 %v1641
        %v1686 = vpop.f32.mrb[0].mxu0
        %v1687 = vadd.f32 %v1632, %v1686
        %v1688 = vpop.f32.mrb[0].mxu0
        %v1689 = vpop.f32.mrb[0].mxu0
        %v1690 = vadd.f32 %v1633, %v1689
        %v1691 = vpop.f32.mrb[0].mxu0
        %1692 = vmatprep.mubr.bf16.mxu0 0
        %1693 = vmatmul.mubr.bf16.gmra.mrb[0].mxu0 %v1644
        %v1694 = vpop.f32.mrb[0].mxu0
        %v1695 = vadd.f32 %v1634, %v1694
        %v1696 = vpop.f32.mrb[0].mxu0
        %v1697 = vpop.f32.mrb[0].mxu0
        %v1698 = vadd.f32 %v1635, %v1697
        %v1699 = vpop.f32.mrb[0].mxu0
        %1700 = vmatprep.mubr.bf16.mxu0 0
        %1701 = vmatmul.mubr.bf16.gmra.mrb[0].mxu0 %v1647
        %v1702 = vpop.f32.mrb[0].mxu0
        %v1703 = vadd.f32 %v1636, %v1702
        %v1704 = vpop.f32.mrb[0].mxu0
        %v1705 = vpop.f32.mrb[0].mxu0
        %v1706 = vadd.f32 %v1637, %v1705
        %v1707 = vpop.f32.mrb[0].mxu0
        %1708 = vmatprep.mubr.bf16.mxu0 0
        %1709 = vmatmul.mubr.bf16.gmra.mrb[0].mxu0 %v1650
        %v1710 = vpop.f32.mrb[0].mxu0
        %v1711 = vadd.f32 %v1638, %v1710
        %v1712 = vpop.f32.mrb[0].mxu0
        %v1713 = vpop.f32.mrb[0].mxu0
        %v1714 = vadd.f32 %v1639, %v1713
        %v1715 = vpop.f32.mrb[0].mxu0
        %1716 = vdwg.mxu0
        %s1717 = scalar_lea.vmem %s15, 64
        %v1718 = vld [vmem:[%s1717] sm:$0xff]
        %v1719 = vld [vmem:[%s1717 + $0x8] sm:$0xff]
        %v1720 = vld [vmem:[%s1717 + $0x10] sm:$0xff]
        %v1721 = vld [vmem:[%s1717 + $0x18] sm:$0xff]
        %v1722 = vld [vmem:[%s1717 + $0x20] sm:$0xff]
        %v1723 = vld [vmem:[%s1717 + $0x28] sm:$0xff]
        %v1724 = vld [vmem:[%s1717 + $0x30] sm:$0xff]
        %v1725 = vld [vmem:[%s1717 + $0x38] sm:$0xff]
        %v1726 = vmul.f32 %v1393, %v1718
        %v1727 = vmul.f32 %v1366, %v1719
        %v1728 = vmul.f32 %v1369, %v1720
        %v1729 = vmul.f32 %v1374, %v1721
        %v1730 = vmul.f32 %v1377, %v1722
        %v1731 = vmul.f32 %v1382, %v1723
        %v1732 = vmul.f32 %v1385, %v1724
        %v1733 = vmul.f32 %v1390, %v1725
        %v1734 = vadd.f32 %v1687, %v1726
        %v1735 = vadd.f32 %v1690, %v1727
        %v1736 = vadd.f32 %v1695, %v1728
        %v1737 = vadd.f32 %v1698, %v1729
        %v1738 = vadd.f32 %v1703, %v1730
        %v1739 = vadd.f32 %v1706, %v1731
        %v1740 = vadd.f32 %v1711, %v1732
        %v1741 = vadd.f32 %v1714, %v1733
        %v1742 = vrot.slane %v1393, 1
        %vm1744 = vcmask 1046528
        %v1745 = vrot.slane %v1366, 1
        %v1746 = vrot.slane %v1369, 1
        %v1747 = vsel %vm1744, %v1745, %v1746
        %v1748 = vrot.slane %v1374, 1
        %v1749 = vsel %vm1744, %v1746, %v1748
        %v1750 = vrot.slane %v1377, 1
        %v1751 = vsel %vm1744, %v1748, %v1750
        %v1752 = vrot.slane %v1382, 1
        %v1753 = vsel %vm1744, %v1750, %v1752
        %v1754 = vrot.slane %v1385, 1
        %v1755 = vsel %vm1744, %v1752, %v1754
        %v1756 = vrot.slane %v1390, 1
        %v1757 = vsel %vm1744, %v1754, %v1756
        %v1758 = vsel %vm1744, %v1756, %v1742
        %v1767 = vsel %vm1744, %v1742, %v1745
        %s1768 = scalar_lea.vmem %s15, 128
        %v1769 = vld [vmem:[%s1768] sm:$0xff]
        %v1770 = vld [vmem:[%s1768 + $0x8] sm:$0xff]
        %v1771 = vld [vmem:[%s1768 + $0x10] sm:$0xff]
        %v1772 = vld [vmem:[%s1768 + $0x18] sm:$0xff]
        %v1773 = vld [vmem:[%s1768 + $0x20] sm:$0xff]
        %v1774 = vld [vmem:[%s1768 + $0x28] sm:$0xff]
        %v1775 = vld [vmem:[%s1768 + $0x30] sm:$0xff]
        %v1776 = vld [vmem:[%s1768 + $0x38] sm:$0xff]
        %v1777 = vmul.f32 %v1767, %v1769
        %v1778 = vmul.f32 %v1747, %v1770
        %v1779 = vmul.f32 %v1749, %v1771
        %v1780 = vmul.f32 %v1751, %v1772
        %v1781 = vmul.f32 %v1753, %v1773
        %v1782 = vmul.f32 %v1755, %v1774
        %v1783 = vmul.f32 %v1757, %v1775
        %v1784 = vmul.f32 %v1758, %v1776
        %v1785 = vadd.f32 %v1734, %v1777
        %v1786 = vadd.f32 %v1735, %v1778
        %v1787 = vadd.f32 %v1736, %v1779
        %v1788 = vadd.f32 %v1737, %v1780
        %v1789 = vadd.f32 %v1738, %v1781
        %v1790 = vadd.f32 %v1739, %v1782
        %v1791 = vadd.f32 %v1740, %v1783
        %v1792 = vadd.f32 %v1741, %v1784
        %s1793 = scalar_lea.vmem %s15, 192
        %v1794 = vld [vmem:[%s1793] sm:$0xff]
        %v1795 = vld [vmem:[%s1793 + $0x8] sm:$0xff]
        %v1796 = vld [vmem:[%s1793 + $0x10] sm:$0xff]
        %v1797 = vld [vmem:[%s1793 + $0x18] sm:$0xff]
        %v1798 = vld [vmem:[%s1793 + $0x20] sm:$0xff]
        %v1799 = vld [vmem:[%s1793 + $0x28] sm:$0xff]
        %v1800 = vld [vmem:[%s1793 + $0x30] sm:$0xff]
        %v1801 = vld [vmem:[%s1793 + $0x38] sm:$0xff]
        %v1802 = vmul.f32 %v1623, %v1794
        %v1803 = vmul.f32 %v1606, %v1795
        %v1804 = vmul.f32 %v1608, %v1796
        %v1805 = vmul.f32 %v1610, %v1797
        %v1806 = vmul.f32 %v1612, %v1798
        %v1807 = vmul.f32 %v1614, %v1799
        %v1808 = vmul.f32 %v1615, %v1800
        %v1809 = vmul.f32 %v1595, %v1801
        %v1810 = vadd.f32 %v1785, %v1802
        %v1811 = vadd.f32 %v1786, %v1803
        %v1812 = vadd.f32 %v1787, %v1804
        %v1813 = vadd.f32 %v1788, %v1805
        %v1814 = vadd.f32 %v1789, %v1806
        %v1815 = vadd.f32 %v1790, %v1807
        %v1816 = vadd.f32 %v1791, %v1808
        %v1817 = vadd.f32 %v1792, %v1809
        %s1818 = scalar_lea.vmem %s15, 256
        %v1819 = vld [vmem:[%s1818] sm:$0xff]
        %v1820 = vld [vmem:[%s1818 + $0x8] sm:$0xff]
        %v1821 = vld [vmem:[%s1818 + $0x10] sm:$0xff]
        %v1822 = vld [vmem:[%s1818 + $0x18] sm:$0xff]
        %v1823 = vld [vmem:[%s1818 + $0x20] sm:$0xff]
        %v1824 = vld [vmem:[%s1818 + $0x28] sm:$0xff]
        %v1825 = vld [vmem:[%s1818 + $0x30] sm:$0xff]
        %v1826 = vld [vmem:[%s1818 + $0x38] sm:$0xff]
        %v1827 = vmul.f32 %v1366, %v1819
        %v1828 = vmul.f32 %v1369, %v1820
        %v1829 = vmul.f32 %v1374, %v1821
        %v1830 = vmul.f32 %v1377, %v1822
        %v1831 = vmul.f32 %v1382, %v1823
        %v1832 = vmul.f32 %v1385, %v1824
        %v1833 = vmul.f32 %v1390, %v1825
        %v1834 = vmul.f32 %v1393, %v1826
        %v1835 = vadd.f32 %v1810, %v1827
        %v1836 = vadd.f32 %v1811, %v1828
        %v1837 = vadd.f32 %v1812, %v1829
        %v1838 = vadd.f32 %v1813, %v1830
        %v1839 = vadd.f32 %v1814, %v1831
        %v1840 = vadd.f32 %v1815, %v1832
        %v1841 = vadd.f32 %v1816, %v1833
        %v1842 = vadd.f32 %v1817, %v1834
        %s1843 = scalar_lea.vmem %s15, 320
        %v1844 = vld [vmem:[%s1843] sm:$0xff]
        %v1845 = vld [vmem:[%s1843 + $0x8] sm:$0xff]
        %v1846 = vld [vmem:[%s1843 + $0x10] sm:$0xff]
        %v1847 = vld [vmem:[%s1843 + $0x18] sm:$0xff]
        %v1848 = vld [vmem:[%s1843 + $0x20] sm:$0xff]
        %v1849 = vld [vmem:[%s1843 + $0x28] sm:$0xff]
        %v1850 = vld [vmem:[%s1843 + $0x30] sm:$0xff]
        %v1851 = vld [vmem:[%s1843 + $0x38] sm:$0xff]
        %v1852 = vmul.f32 %v1747, %v1844
        %v1853 = vmul.f32 %v1749, %v1845
        %v1854 = vmul.f32 %v1751, %v1846
        %v1855 = vmul.f32 %v1753, %v1847
        %v1856 = vmul.f32 %v1755, %v1848
        %v1857 = vmul.f32 %v1757, %v1849
        %v1858 = vmul.f32 %v1758, %v1850
        %v1859 = vmul.f32 %v1767, %v1851
        %v1860 = vadd.f32 %v1835, %v1852
        %v1861 = vadd.f32 %v1836, %v1853
        %v1862 = vadd.f32 %v1837, %v1854
        %v1863 = vadd.f32 %v1838, %v1855
        %v1864 = vadd.f32 %v1839, %v1856
        %v1865 = vadd.f32 %v1840, %v1857
        %v1866 = vadd.f32 %v1841, %v1858
        %v1867 = vadd.f32 %v1842, %v1859
        %s1868 = scalar_lea.vmem %s15, 384
        %v1869 = vld [vmem:[%s1868] sm:$0xff]
        %v1870 = vld [vmem:[%s1868 + $0x8] sm:$0xff]
        %v1871 = vld [vmem:[%s1868 + $0x10] sm:$0xff]
        %v1872 = vld [vmem:[%s1868 + $0x18] sm:$0xff]
        %v1873 = vld [vmem:[%s1868 + $0x20] sm:$0xff]
        %v1874 = vld [vmem:[%s1868 + $0x28] sm:$0xff]
        %v1875 = vld [vmem:[%s1868 + $0x30] sm:$0xff]
        %v1876 = vld [vmem:[%s1868 + $0x38] sm:$0xff]
        %v1877 = vmul.f32 %v1606, %v1869
        %v1878 = vmul.f32 %v1608, %v1870
        %v1879 = vmul.f32 %v1610, %v1871
        %v1880 = vmul.f32 %v1612, %v1872
        %v1881 = vmul.f32 %v1614, %v1873
        %v1882 = vmul.f32 %v1615, %v1874
        %v1883 = vmul.f32 %v1595, %v1875
        %v1884 = vmul.f32 %v1623, %v1876
        %v1885 = vadd.f32 %v1860, %v1877
        %v1886 = vadd.f32 %v1861, %v1878
        %v1887 = vadd.f32 %v1862, %v1879
        %v1888 = vadd.f32 %v1863, %v1880
        %v1889 = vadd.f32 %v1864, %v1881
        %v1890 = vadd.f32 %v1865, %v1882
        %v1891 = vadd.f32 %v1866, %v1883
        %v1892 = vadd.f32 %v1867, %v1884
        %s1893 = scalar_lea.vmem %s15, 448
        %v1894 = vld [vmem:[%s1893] sm:$0xff]
        %v1895 = vld [vmem:[%s1893 + $0x8] sm:$0xff]
        %v1896 = vld [vmem:[%s1893 + $0x10] sm:$0xff]
        %v1897 = vld [vmem:[%s1893 + $0x18] sm:$0xff]
        %v1898 = vld [vmem:[%s1893 + $0x20] sm:$0xff]
        %v1899 = vld [vmem:[%s1893 + $0x28] sm:$0xff]
        %v1900 = vld [vmem:[%s1893 + $0x30] sm:$0xff]
        %v1901 = vld [vmem:[%s1893 + $0x38] sm:$0xff]
        %v1902 = vmul.f32 %v1369, %v1894
        %v1903 = vmul.f32 %v1374, %v1895
        %v1904 = vmul.f32 %v1377, %v1896
        %v1905 = vmul.f32 %v1382, %v1897
        %v1906 = vmul.f32 %v1385, %v1898
        %v1907 = vmul.f32 %v1390, %v1899
        %v1908 = vmul.f32 %v1393, %v1900
        %v1909 = vmul.f32 %v1366, %v1901
        %v1910 = vadd.f32 %v1885, %v1902
        %v1911 = vadd.f32 %v1886, %v1903
        %v1912 = vadd.f32 %v1887, %v1904
        %v1913 = vadd.f32 %v1888, %v1905
        %v1914 = vadd.f32 %v1889, %v1906
        %v1915 = vadd.f32 %v1890, %v1907
        %v1916 = vadd.f32 %v1891, %v1908
        %v1917 = vadd.f32 %v1892, %v1909
        %s1918 = scalar_lea.vmem %s15, 512
        %v1919 = vld [vmem:[%s1918] sm:$0xff]
        %v1920 = vld [vmem:[%s1918 + $0x8] sm:$0xff]
        %v1921 = vld [vmem:[%s1918 + $0x10] sm:$0xff]
        %v1922 = vld [vmem:[%s1918 + $0x18] sm:$0xff]
        %v1923 = vld [vmem:[%s1918 + $0x20] sm:$0xff]
        %v1924 = vld [vmem:[%s1918 + $0x28] sm:$0xff]
        %v1925 = vld [vmem:[%s1918 + $0x30] sm:$0xff]
        %v1926 = vld [vmem:[%s1918 + $0x38] sm:$0xff]
        %v1927 = vmul.f32 %v1749, %v1919
        %v1928 = vmul.f32 %v1751, %v1920
        %v1929 = vmul.f32 %v1753, %v1921
        %v1930 = vmul.f32 %v1755, %v1922
        %v1931 = vmul.f32 %v1757, %v1923
        %v1932 = vmul.f32 %v1758, %v1924
        %v1933 = vmul.f32 %v1767, %v1925
        %v1934 = vmul.f32 %v1747, %v1926
        %v1935 = vadd.f32 %v1910, %v1927
        %v1936 = vadd.f32 %v1911, %v1928
        %v1937 = vadd.f32 %v1912, %v1929
        %v1938 = vadd.f32 %v1913, %v1930
        %v1939 = vadd.f32 %v1914, %v1931
        %v1940 = vadd.f32 %v1915, %v1932
        %v1941 = vadd.f32 %v1916, %v1933
        %v1942 = vadd.f32 %v1917, %v1934
        %v1943 = vpack.c.bf16 %v1936, %v1935
        %v1944 = vpack.c.bf16 %v1938, %v1937
        %v1945 = vpack.c.bf16 %v1940, %v1939
        %v1946 = vpack.c.bf16 %v1942, %v1941
        %v1947 = vld [vmem:[%s14] sm:$0xf]
        %v1948 = vld [vmem:[%s14 + $0x4] sm:$0xf]
        %v1949 = vld [vmem:[%s14 + $0x8] sm:$0xf]
        %v1950 = vld [vmem:[%s14 + $0xc] sm:$0xf]
        %v1951 = vld [vmem:[%s14 + $0x10] sm:$0xf]
        %v1952 = vld [vmem:[%s14 + $0x14] sm:$0xf]
        %v1953 = vld [vmem:[%s14 + $0x18] sm:$0xf]
        %v1954 = vld [vmem:[%s14 + $0x1c] sm:$0xf]
        %v1963 = vunpack.c.l.b16 %v1947
        %v1964 = vunpack.c.l.b16 %v1948
        %v1965 = vunpack.c.l.b16 %v1949
        %v1966 = vunpack.c.l.b16 %v1950
        %v1967 = vunpack.c.l.b16 %v1951
        %v1968 = vunpack.c.l.b16 %v1952
        %v1969 = vunpack.c.l.b16 %v1953
        %v1970 = vunpack.c.l.b16 %v1954
        %v1971 = vpack.c.b16 %v1964, %v1963
        %v1972 = vpack.c.b16 %v1966, %v1965
        %v1973 = vpack.c.b16 %v1968, %v1967
        %v1974 = vpack.c.b16 %v1970, %v1969
        %v1980 = vsel %vm1110, %v1943, 0
        %v1983 = vsel %vm1110, %v1944, 0
        %v1986 = vsel %vm1110, %v1945, 0
        %v1989 = vsel %vm1110, %v1946, 0
        %1991 = vmatprep.subr.bf16.mxu0 0
        %1992 = vmatpush1.bf16.msra.mxu0 %v1971
        %1993 = vmatprep.subr.bf16.mxu0 0
        %1994 = vmatpush1.bf16.msra.mxu0 %v1972
        %1995 = vmatprep.subr.bf16.mxu0 0
        %1996 = vmatpush1.bf16.msra.mxu0 %v1973
        %1997 = vmatprep.subr.bf16.mxu0 0
        %1998 = vmatpush1.bf16.msra.mxu0 %v1974
        %1999 = vmatprep.subr.bf16.mxu0 0
        %2000 = vmatpush1.bf16.msra.mxu0 0
        %2001 = vmatprep.subr.bf16.mxu0 0
        %2002 = vmatpush1.bf16.msra.mxu0 0
        %2003 = vmatprep.subr.bf16.mxu0 0
        %2004 = vmatpush1.bf16.msra.mxu0 0
        %2005 = vmatprep.subr.bf16.mxu0 0
        %2006 = vmatpush1.bf16.msra.mxu0 0
        %2007 = vmatprep.subr.bf16.mxu0 0
        %2008 = vmatpush1.bf16.msra.mxu0 0
        %2009 = vmatprep.subr.bf16.mxu0 0
        %2010 = vmatpush1.bf16.msra.mxu0 0
        %2011 = vmatprep.subr.bf16.mxu0 0
        %2012 = vmatpush1.bf16.msra.mxu0 0
        %2013 = vmatprep.subr.bf16.mxu0 0
        %2014 = vmatpush1.bf16.msra.mxu0 0
        %2015 = vmatprep.subr.bf16.mxu0 0
        %2016 = vmatpush1.bf16.msra.mxu0 0
        %2017 = vmatprep.subr.bf16.mxu0 0
        %2018 = vmatpush1.bf16.msra.mxu0 0
        %2019 = vmatprep.subr.bf16.mxu0 0
        %2020 = vmatpush1.bf16.msra.mxu0 0
        %2021 = vmatprep.subr.bf16.mxu0 0
        %2022 = vmatpush1.bf16.msra.mxu0 0
        %2023 = vmatprep.mubr.bf16.mxu0 0
        %2024 = vmatmul.mubr.bf16.gmra.mrb[0].mxu0 %v1980
        %v2025 = vpop.f32.mrb[0].mxu0
        %v2026 = vadd.f32 0.0, %v2025
        %v2027 = vpop.f32.mrb[0].mxu0
        %v2028 = vpop.f32.mrb[0].mxu0
        %v2029 = vadd.f32 0.0, %v2028
        %v2030 = vpop.f32.mrb[0].mxu0
        %2031 = vmatprep.mubr.bf16.mxu0 0
        %2032 = vmatmul.mubr.bf16.gmra.mrb[0].mxu0 %v1983
        %v2033 = vpop.f32.mrb[0].mxu0
        %v2034 = vadd.f32 0.0, %v2033
        %v2035 = vpop.f32.mrb[0].mxu0
        %v2036 = vpop.f32.mrb[0].mxu0
        %v2037 = vadd.f32 0.0, %v2036
        %v2038 = vpop.f32.mrb[0].mxu0
        %2039 = vmatprep.mubr.bf16.mxu0 0
        %2040 = vmatmul.mubr.bf16.gmra.mrb[0].mxu0 %v1986
        %v2041 = vpop.f32.mrb[0].mxu0
        %v2042 = vadd.f32 0.0, %v2041
        %v2043 = vpop.f32.mrb[0].mxu0
        %v2044 = vpop.f32.mrb[0].mxu0
        %v2045 = vadd.f32 0.0, %v2044
        %v2046 = vpop.f32.mrb[0].mxu0
        %2047 = vmatprep.mubr.bf16.mxu0 0
        %2048 = vmatmul.mubr.bf16.gmra.mrb[0].mxu0 %v1989
        %v2049 = vpop.f32.mrb[0].mxu0
        %v2050 = vadd.f32 0.0, %v2049
        %v2051 = vpop.f32.mrb[0].mxu0
        %v2052 = vpop.f32.mrb[0].mxu0
        %v2053 = vadd.f32 0.0, %v2052
        %v2054 = vpop.f32.mrb[0].mxu0
        %2055 = vdwg.mxu0
        %v2056 = vadd.f32 %v1070, %v2026
        %v2057 = vadd.f32 %v1070, %v2029
        %v2058 = vadd.f32 %v1070, %v2034
        %v2059 = vadd.f32 %v1070, %v2037
        %v2060 = vadd.f32 %v1070, %v2042
        %v2061 = vadd.f32 %v1070, %v2045
        %v2062 = vadd.f32 %v1070, %v2050
        %v2063 = vadd.f32 %v1070, %v2053
        %v2064 = vadd.f32 %v1051, %v2056
        %v2065 = vadd.f32 %v1052, %v2057
        %v2066 = vadd.f32 %v1053, %v2058
        %v2067 = vadd.f32 %v1054, %v2059
        %v2068 = vadd.f32 %v1055, %v2060
        %v2069 = vadd.f32 %v1056, %v2061
        %v2070 = vadd.f32 %v1057, %v2062
        %v2071 = vadd.f32 %v1058, %v2063
        %v2072 = vpack.c.bf16 %v2065, %v2064
        %v2073 = vpack.c.bf16 %v2067, %v2066
        %v2074 = vpack.c.bf16 %v2069, %v2068
        %v2075 = vpack.c.bf16 %v2071, %v2070
        %v2076 = vld [vmem:[%s17] sm:$0xf]
        %v2077 = vld [vmem:[%s17 + $0x4] sm:$0xf]
        %v2078 = vld [vmem:[%s17 + $0x8] sm:$0xf]
        %v2079 = vld [vmem:[%s17 + $0xc] sm:$0xf]
        %v2080 = vld [vmem:[%s17 + $0x10] sm:$0xf]
        %v2081 = vld [vmem:[%s17 + $0x14] sm:$0xf]
        %v2082 = vld [vmem:[%s17 + $0x18] sm:$0xf]
        %v2083 = vld [vmem:[%s17 + $0x1c] sm:$0xf]
        %v2084 = vld [vmem:[%s18] sm:$0x1]
        %v2086 = vlaneseq
        %v2087 = vshrl.u32 %v2086, 7
        %v2088 = vsub.s32 0, %v2087
        %v2089 = vrot.slane %v2084, %v2088
        %v2099 = vunpack.c.l.b16 %v2076
        %v2100 = vunpack.c.l.b16 %v2077
        %v2101 = vunpack.c.l.b16 %v2078
        %v2102 = vunpack.c.l.b16 %v2079
        %v2103 = vunpack.c.l.b16 %v2080
        %v2104 = vunpack.c.l.b16 %v2081
        %v2105 = vunpack.c.l.b16 %v2082
        %v2106 = vunpack.c.l.b16 %v2083
        %v2107 = vpack.c.b16 %v2100, %v2099
        %v2108 = vpack.c.b16 %v2102, %v2101
        %v2109 = vpack.c.b16 %v2104, %v2103
        %v2110 = vpack.c.b16 %v2106, %v2105
        %v2116 = vsel %vm1110, %v2072, 0
        %v2119 = vsel %vm1110, %v2073, 0
        %v2122 = vsel %vm1110, %v2074, 0
        %v2125 = vsel %vm1110, %v2075, 0
        %2127 = vmatprep.subr.bf16.mxu0 0
        %2128 = vmatpush1.bf16.msra.mxu0 %v2107
        %2129 = vmatprep.subr.bf16.mxu0 0
        %2130 = vmatpush1.bf16.msra.mxu0 %v2108
        %2131 = vmatprep.subr.bf16.mxu0 0
        %2132 = vmatpush1.bf16.msra.mxu0 %v2109
        %2133 = vmatprep.subr.bf16.mxu0 0
        %2134 = vmatpush1.bf16.msra.mxu0 %v2110
        %2135 = vmatprep.subr.bf16.mxu0 0
        %2136 = vmatpush1.bf16.msra.mxu0 0
        %2137 = vmatprep.subr.bf16.mxu0 0
        %2138 = vmatpush1.bf16.msra.mxu0 0
        %2139 = vmatprep.subr.bf16.mxu0 0
        %2140 = vmatpush1.bf16.msra.mxu0 0
        %2141 = vmatprep.subr.bf16.mxu0 0
        %2142 = vmatpush1.bf16.msra.mxu0 0
        %2143 = vmatprep.subr.bf16.mxu0 0
        %2144 = vmatpush1.bf16.msra.mxu0 0
        %2145 = vmatprep.subr.bf16.mxu0 0
        %2146 = vmatpush1.bf16.msra.mxu0 0
        %2147 = vmatprep.subr.bf16.mxu0 0
        %2148 = vmatpush1.bf16.msra.mxu0 0
        %2149 = vmatprep.subr.bf16.mxu0 0
        %2150 = vmatpush1.bf16.msra.mxu0 0
        %2151 = vmatprep.subr.bf16.mxu0 0
        %2152 = vmatpush1.bf16.msra.mxu0 0
        %2153 = vmatprep.subr.bf16.mxu0 0
        %2154 = vmatpush1.bf16.msra.mxu0 0
        %2155 = vmatprep.subr.bf16.mxu0 0
        %2156 = vmatpush1.bf16.msra.mxu0 0
        %2157 = vmatprep.subr.bf16.mxu0 0
        %2158 = vmatpush1.bf16.msra.mxu0 0
        %2159 = vmatprep.mubr.bf16.mxu0 0
        %2160 = vmatmul.mubr.bf16.gmra.mrb[0].mxu0 %v2116
        %v2161 = vpop.f32.mrb[0].mxu0
        %v2162 = vadd.f32 %v2089, %v2161
        %v2163 = vpop.f32.mrb[0].mxu0
        %v2164 = vpop.f32.mrb[0].mxu0
        %v2165 = vadd.f32 %v2089, %v2164
        %v2166 = vpop.f32.mrb[0].mxu0
        %2167 = vmatprep.mubr.bf16.mxu0 0
        %2168 = vmatmul.mubr.bf16.gmra.mrb[0].mxu0 %v2119
        %v2169 = vpop.f32.mrb[0].mxu0
        %v2170 = vadd.f32 %v2089, %v2169
        %v2171 = vpop.f32.mrb[0].mxu0
        %v2172 = vpop.f32.mrb[0].mxu0
        %v2173 = vadd.f32 %v2089, %v2172
        %v2174 = vpop.f32.mrb[0].mxu0
        %2175 = vmatprep.mubr.bf16.mxu0 0
        %2176 = vmatmul.mubr.bf16.gmra.mrb[0].mxu0 %v2122
        %v2177 = vpop.f32.mrb[0].mxu0
        %v2178 = vadd.f32 %v2089, %v2177
        %v2179 = vpop.f32.mrb[0].mxu0
        %v2180 = vpop.f32.mrb[0].mxu0
        %v2181 = vadd.f32 %v2089, %v2180
        %v2182 = vpop.f32.mrb[0].mxu0
        %2183 = vmatprep.mubr.bf16.mxu0 0
        %2184 = vmatmul.mubr.bf16.gmra.mrb[0].mxu0 %v2125
        %v2185 = vpop.f32.mrb[0].mxu0
        %v2186 = vadd.f32 %v2089, %v2185
        %v2187 = vpop.f32.mrb[0].mxu0
        %v2188 = vpop.f32.mrb[0].mxu0
        %v2189 = vadd.f32 %v2089, %v2188
        %v2190 = vpop.f32.mrb[0].mxu0
        %2191 = vdwg.mxu0
        %v2192 = vxor.u32 %v2162, 2147483648
        %v2193 = vxor.u32 %v2165, 2147483648
        %v2194 = vxor.u32 %v2170, 2147483648
        %v2195 = vxor.u32 %v2173, 2147483648
        %v2196 = vxor.u32 %v2178, 2147483648
        %v2197 = vxor.u32 %v2181, 2147483648
        %v2198 = vxor.u32 %v2186, 2147483648
        %v2199 = vxor.u32 %v2189, 2147483648
        %v2200 = vmul.f32 %v2192, 1.442695
        %v2201 = vpow.pop %v2200
        %v2202 = vmul.f32 %v2193, 1.442695
        %v2203 = vpow.pop %v2202
        %v2204 = vmul.f32 %v2194, 1.442695
        %v2205 = vpow.pop %v2204
        %v2206 = vmul.f32 %v2195, 1.442695
        %v2207 = vpow.pop %v2206
        %v2208 = vmul.f32 %v2196, 1.442695
        %v2209 = vpow.pop %v2208
        %v2210 = vmul.f32 %v2197, 1.442695
        %v2211 = vpow.pop %v2210
        %v2212 = vmul.f32 %v2198, 1.442695
        %v2213 = vpow.pop %v2212
        %v2214 = vmul.f32 %v2199, 1.442695
        %v2215 = vpow.pop %v2214
        %v2216 = vadd.f32 %v2201, 1.0
        %v2217 = vadd.f32 %v2203, 1.0
        %v2218 = vadd.f32 %v2205, 1.0
        %v2219 = vadd.f32 %v2207, 1.0
        %v2220 = vadd.f32 %v2209, 1.0
        %v2221 = vadd.f32 %v2211, 1.0
        %v2222 = vadd.f32 %v2213, 1.0
        %v2223 = vadd.f32 %v2215, 1.0
        %v2224 = vrcp.pop %v2216
        %v2225 = vmul.f32 1.0, %v2224
        %v2226 = vrcp.pop %v2217
        %v2227 = vmul.f32 1.0, %v2226
        %v2228 = vrcp.pop %v2218
        %v2229 = vmul.f32 1.0, %v2228
        %v2230 = vrcp.pop %v2219
        %v2231 = vmul.f32 1.0, %v2230
        %v2232 = vrcp.pop %v2220
        %v2233 = vmul.f32 1.0, %v2232
        %v2234 = vrcp.pop %v2221
        %v2235 = vmul.f32 1.0, %v2234
        %v2236 = vrcp.pop %v2222
        %v2237 = vmul.f32 1.0, %v2236
        %v2238 = vrcp.pop %v2223
        %v2239 = vmul.f32 1.0, %v2238
        %v2240 = vmul.f32 %v2162, %v2225
        %v2241 = vmul.f32 %v2165, %v2227
        %v2242 = vmul.f32 %v2170, %v2229
        %v2243 = vmul.f32 %v2173, %v2231
        %v2244 = vmul.f32 %v2178, %v2233
        %v2245 = vmul.f32 %v2181, %v2235
        %v2246 = vmul.f32 %v2186, %v2237
        %v2247 = vmul.f32 %v2189, %v2239
        %v2248 = vpack.c.bf16 %v2241, %v2240
        %v2249 = vpack.c.bf16 %v2243, %v2242
        %v2250 = vpack.c.bf16 %v2245, %v2244
        %v2251 = vpack.c.bf16 %v2247, %v2246
        %v2252 = vld [vmem:[%s19] sm:$0xf]
        %v2253 = vld [vmem:[%s19 + $0x4] sm:$0xf]
        %v2254 = vld [vmem:[%s19 + $0x8] sm:$0xf]
        %v2255 = vld [vmem:[%s19 + $0xc] sm:$0xf]
        %v2256 = vld [vmem:[%s19 + $0x10] sm:$0xf]
        %v2257 = vld [vmem:[%s19 + $0x14] sm:$0xf]
        %v2258 = vld [vmem:[%s19 + $0x18] sm:$0xf]
        %v2259 = vld [vmem:[%s19 + $0x1c] sm:$0xf]
        %v2260 = vld [vmem:[%s19 + $0x20] sm:$0xf]
        %v2261 = vld [vmem:[%s19 + $0x24] sm:$0xf]
        %v2262 = vld [vmem:[%s19 + $0x28] sm:$0xf]
        %v2263 = vld [vmem:[%s19 + $0x2c] sm:$0xf]
        %v2264 = vld [vmem:[%s20] sm:$0x1]
        %v2266 = vlaneseq
        %v2267 = vshrl.u32 %v2266, 7
        %v2268 = vsub.s32 0, %v2267
        %v2269 = vrot.slane %v2264, %v2268
        %v2283 = vunpack.c.l.b16 %v2252
        %v2284 = vunpack.c.l.b16 %v2253
        %v2285 = vunpack.c.l.b16 %v2254
        %v2286 = vunpack.c.l.b16 %v2255
        %v2287 = vunpack.c.l.b16 %v2256
        %v2288 = vunpack.c.l.b16 %v2257
        %v2289 = vunpack.c.l.b16 %v2258
        %v2290 = vunpack.c.l.b16 %v2259
        %v2291 = vunpack.c.l.b16 %v2260
        %v2292 = vunpack.c.l.b16 %v2261
        %v2293 = vunpack.c.l.b16 %v2262
        %v2294 = vunpack.c.l.b16 %v2263
        %v2295 = vpack.c.b16 %v2284, %v2283
        %v2296 = vpack.c.b16 %v2286, %v2285
        %v2297 = vpack.c.b16 %v2288, %v2287
        %v2298 = vpack.c.b16 %v2290, %v2289
        %v2299 = vpack.c.b16 %v2292, %v2291
        %v2300 = vpack.c.b16 %v2294, %v2293
        %vm2307 = vcmask 785408
        %v2309 = vsel %vm2307, %v2248, 0
        %v2312 = vsel %vm2307, %v2249, 0
        %v2315 = vsel %vm2307, %v2250, 0
        %v2318 = vsel %vm2307, %v2251, 0
        %2320 = vmatprep.subr.bf16.mxu0 0
        %2321 = vmatpush1.bf16.msra.mxu0 %v2295
        %2322 = vmatprep.subr.bf16.mxu0 0
        %2323 = vmatpush1.bf16.msra.mxu0 %v2296
        %2324 = vmatprep.subr.bf16.mxu0 0
        %2325 = vmatpush1.bf16.msra.mxu0 %v2297
        %2326 = vmatprep.subr.bf16.mxu0 0
        %2327 = vmatpush1.bf16.msra.mxu0 %v2298
        %2328 = vmatprep.subr.bf16.mxu0 0
        %2329 = vmatpush1.bf16.msra.mxu0 %v2299
        %2330 = vmatprep.subr.bf16.mxu0 0
        %2331 = vmatpush1.bf16.msra.mxu0 %v2300
        %2332 = vmatprep.subr.bf16.mxu0 0
        %2333 = vmatpush1.bf16.msra.mxu0 0
        %2334 = vmatprep.subr.bf16.mxu0 0
        %2335 = vmatpush1.bf16.msra.mxu0 0
        %2336 = vmatprep.subr.bf16.mxu0 0
        %2337 = vmatpush1.bf16.msra.mxu0 0
        %2338 = vmatprep.subr.bf16.mxu0 0
        %2339 = vmatpush1.bf16.msra.mxu0 0
        %2340 = vmatprep.subr.bf16.mxu0 0
        %2341 = vmatpush1.bf16.msra.mxu0 0
        %2342 = vmatprep.subr.bf16.mxu0 0
        %2343 = vmatpush1.bf16.msra.mxu0 0
        %2344 = vmatprep.subr.bf16.mxu0 0
        %2345 = vmatpush1.bf16.msra.mxu0 0
        %2346 = vmatprep.subr.bf16.mxu0 0
        %2347 = vmatpush1.bf16.msra.mxu0 0
        %2348 = vmatprep.subr.bf16.mxu0 0
        %2349 = vmatpush1.bf16.msra.mxu0 0
        %2350 = vmatprep.subr.bf16.mxu0 0
        %2351 = vmatpush1.bf16.msra.mxu0 0
        %2352 = vmatprep.mubr.bf16.mxu0 0
        %2353 = vmatmul.mubr.bf16.gmra.mrb[0].mxu0 %v2309
        %v2354 = vpop.f32.mrb[0].mxu0
        %v2355 = vadd.f32 %v2269, %v2354
        %v2356 = vpop.f32.mrb[0].mxu0
        %v2357 = vpop.f32.mrb[0].mxu0
        %v2358 = vadd.f32 %v2269, %v2357
        %v2359 = vpop.f32.mrb[0].mxu0
        %2360 = vmatprep.mubr.bf16.mxu0 0
        %2361 = vmatmul.mubr.bf16.gmra.mrb[0].mxu0 %v2312
        %v2362 = vpop.f32.mrb[0].mxu0
        %v2363 = vadd.f32 %v2269, %v2362
        %v2364 = vpop.f32.mrb[0].mxu0
        %v2365 = vpop.f32.mrb[0].mxu0
        %v2366 = vadd.f32 %v2269, %v2365
        %v2367 = vpop.f32.mrb[0].mxu0
        %2368 = vmatprep.mubr.bf16.mxu0 0
        %2369 = vmatmul.mubr.bf16.gmra.mrb[0].mxu0 %v2315
        %v2370 = vpop.f32.mrb[0].mxu0
        %v2371 = vadd.f32 %v2269, %v2370
        %v2372 = vpop.f32.mrb[0].mxu0
        %v2373 = vpop.f32.mrb[0].mxu0
        %v2374 = vadd.f32 %v2269, %v2373
        %v2375 = vpop.f32.mrb[0].mxu0
        %2376 = vmatprep.mubr.bf16.mxu0 0
        %2377 = vmatmul.mubr.bf16.gmra.mrb[0].mxu0 %v2318
        %v2378 = vpop.f32.mrb[0].mxu0
        %v2379 = vadd.f32 %v2269, %v2378
        %v2380 = vpop.f32.mrb[0].mxu0
        %v2381 = vpop.f32.mrb[0].mxu0
        %v2382 = vadd.f32 %v2269, %v2381
        %v2383 = vpop.f32.mrb[0].mxu0
        %2384 = vdwg.mxu0
        %v2385 = vadd.f32 %v2064, %v2355
        %v2386 = vadd.f32 %v2065, %v2358
        %v2387 = vadd.f32 %v2066, %v2363
        %v2388 = vadd.f32 %v2067, %v2366
        %v2389 = vadd.f32 %v2068, %v2371
        %v2390 = vadd.f32 %v2069, %v2374
        %v2391 = vadd.f32 %v2070, %v2379
        %v2392 = vadd.f32 %v2071, %v2382
        %v2393 = vld [vmem:[%s5] sm:$0xf]
        %v2394 = vld [vmem:[%s5 + $0x4] sm:$0xf]
        %v2395 = vld [vmem:[%s5 + $0x8] sm:$0xf]
        %v2396 = vld [vmem:[%s5 + $0xc] sm:$0xf]
        %v2397 = vld [vmem:[%s5 + $0x10] sm:$0xf]
        %v2398 = vld [vmem:[%s5 + $0x14] sm:$0xf]
        %v2399 = vld [vmem:[%s5 + $0x18] sm:$0xf]
        %v2400 = vld [vmem:[%s5 + $0x1c] sm:$0xf]
        %v2401 = vpack.c.bf16 %v2386, %v2385
        %v2402 = vpack.c.bf16 %v2388, %v2387
        %v2403 = vpack.c.bf16 %v2390, %v2389
        %v2404 = vpack.c.bf16 %v2392, %v2391
        %v2405 = vld [vmem:[%s6] sm:$0xf]
        %v2406 = vld [vmem:[%s6 + $0x4] sm:$0xf]
        %v2407 = vld [vmem:[%s6 + $0x8] sm:$0xf]
        %v2408 = vld [vmem:[%s6 + $0xc] sm:$0xf]
        %v2409 = vld [vmem:[%s6 + $0x10] sm:$0xf]
        %v2410 = vld [vmem:[%s6 + $0x14] sm:$0xf]
        %v2411 = vld [vmem:[%s6 + $0x18] sm:$0xf]
        %v2412 = vld [vmem:[%s6 + $0x1c] sm:$0xf]
        %v2421 = vunpack.c.l.b16 %v2405
        %v2422 = vunpack.c.l.b16 %v2406
        %v2423 = vunpack.c.l.b16 %v2407
        %v2424 = vunpack.c.l.b16 %v2408
        %v2425 = vunpack.c.l.b16 %v2409
        %v2426 = vunpack.c.l.b16 %v2410
        %v2427 = vunpack.c.l.b16 %v2411
        %v2428 = vunpack.c.l.b16 %v2412
        %v2429 = vpack.c.b16 %v2422, %v2421
        %v2430 = vpack.c.b16 %v2424, %v2423
        %v2431 = vpack.c.b16 %v2426, %v2425
        %v2432 = vpack.c.b16 %v2428, %v2427
        %v2438 = vsel %vm1110, %v2401, 0
        %v2441 = vsel %vm1110, %v2402, 0
        %v2444 = vsel %vm1110, %v2403, 0
        %v2447 = vsel %vm1110, %v2404, 0
        %2449 = vmatprep.subr.bf16.mxu0 0
        %2450 = vmatpush1.bf16.msra.mxu0 %v2429
        %2451 = vmatprep.subr.bf16.mxu0 0
        %2452 = vmatpush1.bf16.msra.mxu0 %v2430
        %2453 = vmatprep.subr.bf16.mxu0 0
        %2454 = vmatpush1.bf16.msra.mxu0 %v2431
        %2455 = vmatprep.subr.bf16.mxu0 0
        %2456 = vmatpush1.bf16.msra.mxu0 %v2432
        %2457 = vmatprep.subr.bf16.mxu0 0
        %2458 = vmatpush1.bf16.msra.mxu0 0
        %2459 = vmatprep.subr.bf16.mxu0 0
        %2460 = vmatpush1.bf16.msra.mxu0 0
        %2461 = vmatprep.subr.bf16.mxu0 0
        %2462 = vmatpush1.bf16.msra.mxu0 0
        %2463 = vmatprep.subr.bf16.mxu0 0
        %2464 = vmatpush1.bf16.msra.mxu0 0
        %2465 = vmatprep.subr.bf16.mxu0 0
        %2466 = vmatpush1.bf16.msra.mxu0 0
        %2467 = vmatprep.subr.bf16.mxu0 0
        %2468 = vmatpush1.bf16.msra.mxu0 0
        %2469 = vmatprep.subr.bf16.mxu0 0
        %2470 = vmatpush1.bf16.msra.mxu0 0
        %2471 = vmatprep.subr.bf16.mxu0 0
        %2472 = vmatpush1.bf16.msra.mxu0 0
        %2473 = vmatprep.subr.bf16.mxu0 0
        %2474 = vmatpush1.bf16.msra.mxu0 0
        %2475 = vmatprep.subr.bf16.mxu0 0
        %2476 = vmatpush1.bf16.msra.mxu0 0
        %2477 = vmatprep.subr.bf16.mxu0 0
        %2478 = vmatpush1.bf16.msra.mxu0 0
        %2479 = vmatprep.subr.bf16.mxu0 0
        %2480 = vmatpush1.bf16.msra.mxu0 0
        %2481 = vmatprep.mubr.bf16.mxu0 0
        %2482 = vmatmul.mubr.bf16.gmra.mrb[0].mxu0 %v2438
        %v2483 = vpop.f32.mrb[0].mxu0
        %v2484 = vadd.f32 0.0, %v2483
        %v2485 = vpop.f32.mrb[0].mxu0
        %v2486 = vpop.f32.mrb[0].mxu0
        %v2487 = vadd.f32 0.0, %v2486
        %v2488 = vpop.f32.mrb[0].mxu0
        %2489 = vmatprep.mubr.bf16.mxu0 0
        %2490 = vmatmul.mubr.bf16.gmra.mrb[0].mxu0 %v2441
        %v2491 = vpop.f32.mrb[0].mxu0
        %v2492 = vadd.f32 0.0, %v2491
        %v2493 = vpop.f32.mrb[0].mxu0
        %v2494 = vpop.f32.mrb[0].mxu0
        %v2495 = vadd.f32 0.0, %v2494
        %v2496 = vpop.f32.mrb[0].mxu0
        %2497 = vmatprep.mubr.bf16.mxu0 0
        %2498 = vmatmul.mubr.bf16.gmra.mrb[0].mxu0 %v2444
        %v2499 = vpop.f32.mrb[0].mxu0
        %v2500 = vadd.f32 0.0, %v2499
        %v2501 = vpop.f32.mrb[0].mxu0
        %v2502 = vpop.f32.mrb[0].mxu0
        %v2503 = vadd.f32 0.0, %v2502
        %v2504 = vpop.f32.mrb[0].mxu0
        %2505 = vmatprep.mubr.bf16.mxu0 0
        %2506 = vmatmul.mubr.bf16.gmra.mrb[0].mxu0 %v2447
        %v2507 = vpop.f32.mrb[0].mxu0
        %v2508 = vadd.f32 0.0, %v2507
        %v2509 = vpop.f32.mrb[0].mxu0
        %v2510 = vpop.f32.mrb[0].mxu0
        %v2511 = vadd.f32 0.0, %v2510
        %v2512 = vpop.f32.mrb[0].mxu0
        %2513 = vdwg.mxu0
        %v2522 = vunpack.c.l.b16 %v2393
        %v2523 = vunpack.c.l.b16 %v2394
        %v2524 = vunpack.c.l.b16 %v2395
        %v2525 = vunpack.c.l.b16 %v2396
        %v2526 = vunpack.c.l.b16 %v2397
        %v2527 = vunpack.c.l.b16 %v2398
        %v2528 = vunpack.c.l.b16 %v2399
        %v2529 = vunpack.c.l.b16 %v2400
        %v2530 = vpack.c.b16 %v2523, %v2522
        %v2531 = vpack.c.b16 %v2525, %v2524
        %v2532 = vpack.c.b16 %v2527, %v2526
        %v2533 = vpack.c.b16 %v2529, %v2528
        %v2539 = vsel %vm1110, %v863, 0
        %v2542 = vsel %vm1110, %v864, 0
        %v2545 = vsel %vm1110, %v865, 0
        %v2548 = vsel %vm1110, %v866, 0
        %2550 = vmatprep.subr.bf16.mxu0 0
        %2551 = vmatpush1.bf16.msra.mxu0 %v2530
        %2552 = vmatprep.subr.bf16.mxu0 0
        %2553 = vmatpush1.bf16.msra.mxu0 %v2531
        %2554 = vmatprep.subr.bf16.mxu0 0
        %2555 = vmatpush1.bf16.msra.mxu0 %v2532
        %2556 = vmatprep.subr.bf16.mxu0 0
        %2557 = vmatpush1.bf16.msra.mxu0 %v2533
        %2558 = vmatprep.subr.bf16.mxu0 0
        %2559 = vmatpush1.bf16.msra.mxu0 0
        %2560 = vmatprep.subr.bf16.mxu0 0
        %2561 = vmatpush1.bf16.msra.mxu0 0
        %2562 = vmatprep.subr.bf16.mxu0 0
        %2563 = vmatpush1.bf16.msra.mxu0 0
        %2564 = vmatprep.subr.bf16.mxu0 0
        %2565 = vmatpush1.bf16.msra.mxu0 0
        %2566 = vmatprep.subr.bf16.mxu0 0
        %2567 = vmatpush1.bf16.msra.mxu0 0
        %2568 = vmatprep.subr.bf16.mxu0 0
        %2569 = vmatpush1.bf16.msra.mxu0 0
        %2570 = vmatprep.subr.bf16.mxu0 0
        %2571 = vmatpush1.bf16.msra.mxu0 0
        %2572 = vmatprep.subr.bf16.mxu0 0
        %2573 = vmatpush1.bf16.msra.mxu0 0
        %2574 = vmatprep.subr.bf16.mxu0 0
        %2575 = vmatpush1.bf16.msra.mxu0 0
        %2576 = vmatprep.subr.bf16.mxu0 0
        %2577 = vmatpush1.bf16.msra.mxu0 0
        %2578 = vmatprep.subr.bf16.mxu0 0
        %2579 = vmatpush1.bf16.msra.mxu0 0
        %2580 = vmatprep.subr.bf16.mxu0 0
        %2581 = vmatpush1.bf16.msra.mxu0 0
        %2582 = vmatprep.mubr.bf16.mxu0 0
        %2583 = vmatmul.mubr.bf16.gmra.mrb[0].mxu0 %v2539
        %v2584 = vpop.f32.mrb[0].mxu0
        %v2585 = vadd.f32 %v2484, %v2584
        %v2586 = vpop.f32.mrb[0].mxu0
        %v2587 = vpop.f32.mrb[0].mxu0
        %v2588 = vadd.f32 %v2487, %v2587
        %v2589 = vpop.f32.mrb[0].mxu0
        %2590 = vmatprep.mubr.bf16.mxu0 0
        %2591 = vmatmul.mubr.bf16.gmra.mrb[0].mxu0 %v2542
        %v2592 = vpop.f32.mrb[0].mxu0
        %v2593 = vadd.f32 %v2492, %v2592
        %v2594 = vpop.f32.mrb[0].mxu0
        %v2595 = vpop.f32.mrb[0].mxu0
        %v2596 = vadd.f32 %v2495, %v2595
        %v2597 = vpop.f32.mrb[0].mxu0
        %2598 = vmatprep.mubr.bf16.mxu0 0
        %2599 = vmatmul.mubr.bf16.gmra.mrb[0].mxu0 %v2545
        %v2600 = vpop.f32.mrb[0].mxu0
        %v2601 = vadd.f32 %v2500, %v2600
        %v2602 = vpop.f32.mrb[0].mxu0
        %v2603 = vpop.f32.mrb[0].mxu0
        %v2604 = vadd.f32 %v2503, %v2603
        %v2605 = vpop.f32.mrb[0].mxu0
        %2606 = vmatprep.mubr.bf16.mxu0 0
        %2607 = vmatmul.mubr.bf16.gmra.mrb[0].mxu0 %v2548
        %v2608 = vpop.f32.mrb[0].mxu0
        %v2609 = vadd.f32 %v2508, %v2608
        %v2610 = vpop.f32.mrb[0].mxu0
        %v2611 = vpop.f32.mrb[0].mxu0
        %v2612 = vadd.f32 %v2511, %v2611
        %v2613 = vpop.f32.mrb[0].mxu0
        %2614 = vdwg.mxu0
        %v2615 = vld [vmem:[%s7] sm:$0x1]
        %v2617 = vlaneseq
        %v2618 = vshrl.u32 %v2617, 7
        %v2619 = vsub.s32 0, %v2618
        %v2620 = vrot.slane %v2615, %v2619
        %v2622 = vadd.f32 %v2585, %v2620
        %v2623 = vadd.f32 %v2588, %v2620
        %v2624 = vadd.f32 %v2593, %v2620
        %v2625 = vadd.f32 %v2596, %v2620
        %v2626 = vadd.f32 %v2601, %v2620
        %v2627 = vadd.f32 %v2604, %v2620
        %v2628 = vadd.f32 %v2609, %v2620
        %v2629 = vadd.f32 %v2612, %v2620
        %v2630 = vxor.u32 %v2622, 2147483648
        %v2631 = vxor.u32 %v2623, 2147483648
        %v2632 = vxor.u32 %v2624, 2147483648
        %v2633 = vxor.u32 %v2625, 2147483648
        %v2634 = vxor.u32 %v2626, 2147483648
        %v2635 = vxor.u32 %v2627, 2147483648
        %v2636 = vxor.u32 %v2628, 2147483648
        %v2637 = vxor.u32 %v2629, 2147483648
        %v2638 = vmul.f32 %v2630, 1.442695
        %v2639 = vpow.pop %v2638
        %v2640 = vmul.f32 %v2631, 1.442695
        %v2641 = vpow.pop %v2640
        %v2642 = vmul.f32 %v2632, 1.442695
        %v2643 = vpow.pop %v2642
        %v2644 = vmul.f32 %v2633, 1.442695
        %v2645 = vpow.pop %v2644
        %v2646 = vmul.f32 %v2634, 1.442695
        %v2647 = vpow.pop %v2646
        %v2648 = vmul.f32 %v2635, 1.442695
        %v2649 = vpow.pop %v2648
        %v2650 = vmul.f32 %v2636, 1.442695
        %v2651 = vpow.pop %v2650
        %v2652 = vmul.f32 %v2637, 1.442695
        %v2653 = vpow.pop %v2652
        %v2654 = vadd.f32 %v2639, 1.0
        %v2655 = vadd.f32 %v2641, 1.0
        %v2656 = vadd.f32 %v2643, 1.0
        %v2657 = vadd.f32 %v2645, 1.0
        %v2658 = vadd.f32 %v2647, 1.0
        %v2659 = vadd.f32 %v2649, 1.0
        %v2660 = vadd.f32 %v2651, 1.0
        %v2661 = vadd.f32 %v2653, 1.0
        %v2662 = vrcp.pop %v2654
        %v2663 = vmul.f32 1.0, %v2662
        %v2664 = vrcp.pop %v2655
        %v2665 = vmul.f32 1.0, %v2664
        %v2666 = vrcp.pop %v2656
        %v2667 = vmul.f32 1.0, %v2666
        %v2668 = vrcp.pop %v2657
        %v2669 = vmul.f32 1.0, %v2668
        %v2670 = vrcp.pop %v2658
        %v2671 = vmul.f32 1.0, %v2670
        %v2672 = vrcp.pop %v2659
        %v2673 = vmul.f32 1.0, %v2672
        %v2674 = vrcp.pop %v2660
        %v2675 = vmul.f32 1.0, %v2674
        %v2676 = vrcp.pop %v2661
        %v2677 = vmul.f32 1.0, %v2676
        %v2678 = vmul.f32 %v2622, %v2663
        %v2679 = vmul.f32 %v2623, %v2665
        %v2680 = vmul.f32 %v2624, %v2667
        %v2681 = vmul.f32 %v2625, %v2669
        %v2682 = vmul.f32 %v2626, %v2671
        %v2683 = vmul.f32 %v2627, %v2673
        %v2684 = vmul.f32 %v2628, %v2675
        %v2685 = vmul.f32 %v2629, %v2677
        %2686 = vst [vmem:[%s650] sm:$0xff] %v2678
        %2687 = vst [vmem:[%s650 + $0x8] sm:$0xff] %v2679
        %2688 = vst [vmem:[%s650 + $0x10] sm:$0xff] %v2680
        %2689 = vst [vmem:[%s650 + $0x18] sm:$0xff] %v2681
        %2690 = vst [vmem:[%s650 + $0x20] sm:$0xff] %v2682
        %2691 = vst [vmem:[%s650 + $0x28] sm:$0xff] %v2683
        %2692 = vst [vmem:[%s650 + $0x30] sm:$0xff] %v2684
        %2693 = vst [vmem:[%s650 + $0x38] sm:$0xff] %v2685
        %s2694 = sand.u32 %s489, 1
        %s2695 = scalar_lea.sflag [#allocation3], %s2694
        %s2696 = sand.u32 %s489, 1
        %s2697 = smul.addr %s2696, 64
        %s2698 = scalar_lea.vmem [#allocation2], %s2697
        // Predicated region
        $region105: #{c2psa_forward_pallas.1} parent=103 // pred_check
          %p2699 = pneg %p499
        $region106: #{c2psa_forward_pallas.1} parent=103 // pred_check_branch
          %2701 = sbr.rel (%p2699) target = $region108
        $region107: #{c2psa_forward_pallas.1} parent=103 // pred_region
          %s2702 = smul.u32 8, %s35
          %s2704 = ssub.s32 1024, 1024
          %2705 = vsyncadd %s2695, %s2704
          %s2706 = smul.addr %s2702, 128
          %s2707 = scalar_lea.hbm %s21, %s2706
          %s2708 = sshll.u32 %s2698, 4
          %s2709 = int_to_ptr.vmem [resolvable:$true] %s2708
          %2714 = dma.vmem_to_hbm [thread:$0]  %s2709, 1024, %s2707, %s2695, 128, 128, 8
        $region108: #{c2psa_forward_pallas.1} parent=103 // pred_fallthru
          _
      $region104: #{c2psa_forward_pallas.1} parent=5 // pred_fallthru
        _
      %p2715 = scmp.le.s32.totalorder 2, %s30
      // Predicated region
      $region109: #{c2psa_forward_pallas.1} parent=5 // pred_check
        %p2716 = pneg %p2715
      $region110: #{c2psa_forward_pallas.1} parent=5 // pred_check_branch
        %2718 = sbr.rel (%p2716) target = $region112
      $region111: #{c2psa_forward_pallas.1} parent=5 // pred_region
        %s2719 = ssub.s32 %s30, 2
        // Predicated region
        $region113: #{c2psa_forward_pallas.1} parent=111 // pred_check
          %p2720 = pneg %p505
        $region114: #{c2psa_forward_pallas.1} parent=111 // pred_check_branch
          %2722 = sbr.rel (%p2720) target = $region116
        $region115: #{c2psa_forward_pallas.1} parent=111 // pred_region
          %s2723 = sand.u32 %s490, 1
          %s2724 = scalar_lea.sflag [#allocation3], %s2723
          %s2725 = sand.u32 %s490, 1
          %s2726 = smul.addr %s2725, 64
          %s2727 = scalar_lea.vmem [#allocation2], %s2726
          %2728 = dma.done %s2724, 1024
        $region116: #{c2psa_forward_pallas.1} parent=111 // pred_fallthru
          _
      $region112: #{c2psa_forward_pallas.1} parent=5 // pred_fallthru
        _
    $region6: #{c2psa_forward_pallas.1} parent=1 // loop_footer
      %s34 = sadd.s32 1, %s30
    $region7: #{c2psa_forward_pallas.1} parent=1 // loop_footer_branch
      %29 = sbr.rel target = $region3
    $region8: #{c2psa_forward_pallas.1} parent=1 // loop_exit
      _
    %2729 = vsyncpa [#allocation3], 1
    %s2730 = scalar_lea.sflag [#allocation3], 1
    %2731 = vsyncpa %s2730, 1

</llo_original>
